<compile_context>
chip_gen: v6e
topology: v6e:2x2x1
jax: 0.10.0
libtpu: 0.0.40
codegen_flags: <defaults>
</compile_context>

<pallas_src>
import jax
import jax.numpy as jnp
from jax.experimental import pallas as pl
from jax.experimental.pallas import tpu as pltpu

BN_EPS = 1e-5
LN_EPS = 1e-5
NPAD = 128          # lane-padded classifier width (real number of classes = 2)
C_IMG = 2048        # resnet50 trunk channels
C_TXT = 384         # MiniLM pooled width
HID = 512
C_TILE_DEFAULT = 256


def _fusion_kernel(text_ref, img_ref,
                   fc1_w, fc1_b, fc2_w, fc2_b,
                   fc3_wt, fc3_wi, fc3_b,
                   ln_g, ln_b, clf_w, clf_b,
                   out_ref, img_acc):
    c = pl.program_id(1)
    c_tile = img_ref.shape[-1]

    @pl.when(c == 0)
    def _():
        img_acc[...] = jnp.zeros(img_acc.shape, img_acc.dtype)

    # Spatial sum of this channel slice (sublane reduce, f32 accumulation).
    psum = jnp.sum(img_ref[...], axis=1, dtype=jnp.float32)          # (TB, c_tile)

    # Partial fc1 matmul for this channel slice.  BN2 and the 1/HW pooling
    # scale are pre-folded into fc1_w / fc1_b, so the kernel only needs the
    # raw spatial sum.  bf16 MXU inputs, f32 accumulation.
    row0 = pl.multiple_of(c * c_tile, c_tile)
    img_acc[...] += jnp.dot(psum.astype(fc1_w.dtype),
                            fc1_w[pl.ds(row0, c_tile), :],
                            preferred_element_type=jnp.float32)

    @pl.when(c == pl.num_programs(1) - 1)
    def _():
        wdt = fc2_w.dtype
        # img / text branches (Dropout(0.4) is identity in eval mode; BN1 is
        # folded into fc2).
        img_h = jnp.tanh(img_acc[...] + fc1_b[...])                          # (TB, 512)
        text_h = jnp.tanh(
            jnp.dot(text_ref[...].astype(wdt), fc2_w[...],
                    preferred_element_type=jnp.float32) + fc2_b[...])        # (TB, 512)

        # fc3 on concat([text, img], dim=1) expressed as a split matmul
        # (identical math, avoids a lane concat).
        cat = jnp.tanh(
            jnp.dot(text_h.astype(wdt), fc3_wt[...],
                    preferred_element_type=jnp.float32)
            + jnp.dot(img_h.astype(wdt), fc3_wi[...],
                      preferred_element_type=jnp.float32)
            + fc3_b[...])                                                    # (TB, 512)

        # LayerNorm(512), elementwise affine, in f32.
        mu = jnp.mean(cat, axis=-1, keepdims=True)
        var = jnp.mean(jnp.square(cat - mu), axis=-1, keepdims=True)
        cat = (cat - mu) * jax.lax.rsqrt(var + LN_EPS) * ln_g[...] + ln_b[...]

        # Classifier (lane-padded to 128) + softmax over dim=1, logits in f32.
        # Padded columns: zero weights, bias = -1e30 -> exp underflows to 0.
        logits = jnp.dot(cat.astype(wdt), clf_w[...],
                         preferred_element_type=jnp.float32) + clf_b[...]
        m = jnp.max(logits, axis=-1, keepdims=True)
        e = jnp.exp(logits - m)
        out_ref[...] = e / jnp.sum(e, axis=-1, keepdims=True)               # (TB, NPAD)


def _vmem_capacity_bytes():
    """Physical per-core VMEM; conservative (v7x, 64 MiB) fallback."""
    try:
        info = pltpu.get_tpu_info()
        for attr in ("vmem_capacity_bytes", "vmem_size_bytes", "vmem_bytes"):
            v = getattr(info, attr, None)
            if v:
                return int(v)
    except Exception:
        pass
    return 64 << 20


def _choose_batch_tiling(batch, block_row_bytes, per_buffer_budget):
    """Return (padded_batch, batch_tile).

    The tile is a multiple of 8 (or equals the whole padded batch), always
    divides it, and its image block fits the per-buffer budget.  There is no
    untiled over-budget fallback."""
    cap = max(1, per_buffer_budget // max(block_row_bytes, 1))
    if batch <= cap:
        # Whole batch fits one pipeline buffer.  Split in two when the halves
        # stay sublane-aligned so the "parallel" axis has >=2 steps (megacore).
        if batch >= 16 and batch % 16 == 0:
            return batch, batch // 2
        return batch, batch
    b_pad = -(-batch // 8) * 8
    tb = max(8, min(cap, b_pad) // 8 * 8)
    while b_pad % tb:
        tb -= 8
    return b_pad, tb


def init_params(key):
    """Deterministic synthetic parameters matching model1_1's head shapes.
    Linear weights stored as (in, out) = W^T; biases as (1, out)."""
    ks = jax.random.split(key, 16)
    f32 = jnp.float32

    def lin(kw, kb, fan_in, fan_out):
        w = jax.random.normal(kw, (fan_in, fan_out), f32) * 0.02
        b = jax.random.normal(kb, (1, fan_out), f32) * 0.01
        return w, b

    def bn(kg, kb, km, kv, c):
        g = 1.0 + 0.1 * jax.random.normal(kg, (1, c), f32)
        b = 0.05 * jax.random.normal(kb, (1, c), f32)
        m = 0.1 * jax.random.normal(km, (1, c), f32)
        v = jax.random.uniform(kv, (1, c), f32, 0.5, 1.5)
        return g, b, m, v

    return dict(
        bn1=bn(ks[8], ks[9], ks[10], ks[11], C_TXT),
        bn2=bn(ks[12], ks[13], ks[14], ks[15], C_IMG),
        fc1=lin(ks[0], ks[1], C_IMG, HID),
        fc2=lin(ks[2], ks[3], C_TXT, HID),
        fc3=lin(ks[4], ks[5], 2 * HID, HID),
        ln=(jnp.ones((1, HID), f32), jnp.zeros((1, HID), f32)),
        clf=lin(ks[6], ks[7], HID, 2),
    )


@jax.jit
def model1_1_forward(text_feat, img_feat_map, params):
    """text_feat: (B, 384) f32; img_feat_map: (B, H, W, 2048) NHWC (bf16 or f32)."""
    # TODO(synk): the pretrained resnet50 / MiniLM-L12 backbones are not
    # re-implemented; this consumes their feature outputs.  The image feature
    # map is expected in NHWC (native for a JAX backbone); an NCHW-only
    # producer would need a one-time transpose upstream of this call.
    B, H, W, C = img_feat_map.shape
    HW = H * W
    # NHWC -> (B, HW, C) is a free contiguous reshape.  Stream the dominant
    # tensor in whatever dtype the backbone emits (no extra cast pass).
    img_fm = img_feat_map.reshape(B, HW, C)
    text_feat = text_feat.astype(jnp.float32)

    bn1_g, bn1_b, bn1_m, bn1_v = params["bn1"]
    bn2_g, bn2_b, bn2_m, bn2_v = params["bn2"]
    fc1_w, fc1_b = params["fc1"]
    fc2_w, fc2_b = params["fc2"]
    fc3_w, fc3_b = params["fc3"]
    ln_g, ln_b = params["ln"]
    clf_w, clf_b = params["clf"]

    wdt = jnp.bfloat16   # MXU-native weight dtype; accumulation stays f32.

    # Fold BatchNorm1d (eval, running stats) and the 1/HW pooling scale into
    # fc2 / fc1 at trace time:  bn(x) = x*s + t;  fc(bn(x)) = x @ (s*W) + (t@W + b).
    s1 = bn1_g * jax.lax.rsqrt(bn1_v + BN_EPS)                 # (1, 384)
    t1 = bn1_b - bn1_m * s1
    fc2_wf = (s1.reshape(-1, 1) * fc2_w).astype(wdt)           # (384, 512)
    fc2_bf = t1 @ fc2_w + fc2_b                                # (1, 512) f32

    s2 = bn2_g * jax.lax.rsqrt(bn2_v + BN_EPS)                 # (1, 2048)
    t2 = bn2_b - bn2_m * s2
    fc1_wf = ((s2 / HW).reshape(-1, 1) * fc1_w).astype(wdt)    # consumes spatial SUM
    fc1_bf = t2 @ fc1_w + fc1_b                                # (1, 512) f32

    fc3_wt = fc3_w[:HID, :].astype(wdt)                        # concat order [text | img]
    fc3_wi = fc3_w[HID:, :].astype(wdt)

    n_cls = clf_w.shape[1]
    clf_w_p = jnp.pad(clf_w, ((0, 0), (0, NPAD - n_cls))).astype(wdt)
    clf_b_p = jnp.pad(clf_b, ((0, 0), (0, NPAD - n_cls)), constant_values=-1e30)

    weights = (fc1_wf, fc1_bf, fc2_wf, fc2_bf,
               fc3_wt, fc3_wi, fc3_b, ln_g, ln_b, clf_w_p, clf_b_p)

    # ---- generation-aware VMEM budget & tiling ------------------------------
    c_tile = C_TILE_DEFAULT if C % C_TILE_DEFAULT == 0 else C
    itemsize = img_fm.dtype.itemsize
    hw_pad = -(-HW // 16) * 16                                 # sublane-pad bound
    block_row_bytes = hw_pad * c_tile * itemsize               # per batch row / c-step

    weight_bytes = sum(int(w.size) * w.dtype.itemsize for w in weights)
    vmem_limit = max(32 << 20, min(_vmem_capacity_bytes() * 3 // 4, 110 << 20))
    # Budget /4: two pipeline buffers for the image block plus headroom for a
    # possible widened (f32) reduce temp of the live block + small scratch.
    fm_budget = max(1 << 20,
                    min(32 << 20, (vmem_limit - 2 * weight_bytes - (2 << 20)) // 4))

    b_pad, tb = _choose_batch_tiling(B, block_row_bytes, fm_budget)
    if b_pad != B:
        img_fm = jnp.pad(img_fm, ((0, b_pad - B), (0, 0), (0, 0)))
        text_p = jnp.pad(text_feat, ((0, b_pad - B), (0, 0)))
    else:
        text_p = text_feat

    grid = (b_pad // tb, C // c_tile)

    def const_spec(shape):      # resident weights: same block every grid step
        nd = len(shape)
        return pl.BlockSpec(shape, lambda b, c, _nd=nd: (0,) * _nd)

    in_specs = [
        pl.BlockSpec((tb, C_TXT), lambda b, c: (b, 0)),
        pl.BlockSpec((tb, HW, c_tile), lambda b, c: (b, 0, c)),
    ] + [const_spec(w.shape) for w in weights]

    flops = (b_pad * HW * C
             + 2 * b_pad * (C * HID + C_TXT * HID + 2 * HID * HID + HID * NPAD))
    cost = pl.CostEstimate(
        flops=int(flops),
        transcendentals=int(b_pad * (3 * HID + NPAD)),
        bytes_accessed=int(img_fm.size * itemsize + text_p.size * 4
                           + weight_bytes + b_pad * NPAD * 4))

    out_padded = pl.pallas_call(
        _fusion_kernel,
        out_shape=jax.ShapeDtypeStruct((b_pad, NPAD), jnp.float32),
        grid=grid,
        in_specs=in_specs,
        out_specs=pl.BlockSpec((tb, NPAD), lambda b, c: (b, 0)),
        scratch_shapes=[pltpu.VMEM((tb, HID), jnp.float32)],
        compiler_params=pltpu.CompilerParams(
            dimension_semantics=("parallel", "arbitrary"),
            vmem_limit_bytes=int(vmem_limit)),
        cost_estimate=cost,
    )(text_p, img_fm, *weights)

    return out_padded[:B, :n_cls]


def model1_1_reference(text_feat, img_feat_map, params):
    """Pure-JAX f32 reference of model1_1's head (eval mode)."""
    B, H, W, C = img_feat_map.shape
    img_vec = jnp.mean(img_feat_map.astype(jnp.float32).reshape(B, H * W, C), axis=1)
    bn1_g, bn1_b, bn1_m, bn1_v = params["bn1"]
    bn2_g, bn2_b, bn2_m, bn2_v = params["bn2"]
    fc1_w, fc1_b = params["fc1"]
    fc2_w, fc2_b = params["fc2"]
    fc3_w, fc3_b = params["fc3"]
    ln_g, ln_b = params["ln"]
    clf_w, clf_b = params["clf"]

    t = (text_feat - bn1_m) * jax.lax.rsqrt(bn1_v + BN_EPS) * bn1_g + bn1_b
    i = (img_vec - bn2_m) * jax.lax.rsqrt(bn2_v + BN_EPS) * bn2_g + bn2_b
    t = jnp.tanh(t @ fc2_w + fc2_b)
    i = jnp.tanh(i @ fc1_w + fc1_b)
    cat = jnp.tanh(jnp.concatenate([t, i], axis=1) @ fc3_w + fc3_b)
    mu = jnp.mean(cat, axis=-1, keepdims=True)
    var = jnp.mean(jnp.square(cat - mu), axis=-1, keepdims=True)
    cat = (cat - mu) * jax.lax.rsqrt(var + LN_EPS) * ln_g + ln_b
    return jax.nn.softmax(cat @ clf_w + clf_b, axis=-1)


if __name__ == "__main__":
    key = jax.random.PRNGKey(0)
    k_params, k_text, k_img = jax.random.split(key, 3)

    B, H, W = 2, 4, 4
    params = init_params(k_params)
    text_feat = jax.random.normal(k_text, (B, C_TXT), jnp.float32)      # text_model(...)[1]
    # Backbone conv-trunk feature map in NHWC, emitted in bf16 by the backbone
    # (the kernel streams whatever dtype it receives; no wrapper cast pass).
    img_feat_map = jax.random.normal(
        k_img, (B, H, W, C_IMG), jnp.float32).astype(jnp.bfloat16)

    out = model1_1_forward(text_feat, img_feat_map, params)
    jax.block_until_ready(out)

    ref = model1_1_reference(text_feat, img_feat_map, params)
    assert out.shape == (B, 2)
    assert bool(jnp.all(jnp.isfinite(out)))
    assert bool(jnp.allclose(jnp.sum(out, axis=-1), 1.0, atol=1e-3))
    # bf16 streaming / bf16 weights -> allow a few 1e-2 on the probabilities.
    assert bool(jnp.allclose(out, ref, atol=3e-2)), (
        f"max|diff|={float(jnp.max(jnp.abs(out - ref)))}")
    print("KERNEL_OK")
</pallas_src>

<mosaic_0001>
module attributes {stable_mosaic.version = 11 : i64} {
  func.func @_fusion_kernel(%arg0: i32, %arg1: i32, %arg2: memref<2x384xf32, #tpu.memory_space<vmem>>, %arg3: memref<2x16x256xbf16, #tpu.memory_space<vmem>>, %arg4: memref<2048x512xbf16, #tpu.memory_space<vmem>>, %arg5: memref<1x512xf32, #tpu.memory_space<vmem>>, %arg6: memref<384x512xbf16, #tpu.memory_space<vmem>>, %arg7: memref<1x512xf32, #tpu.memory_space<vmem>>, %arg8: memref<512x512xbf16, #tpu.memory_space<vmem>>, %arg9: memref<512x512xbf16, #tpu.memory_space<vmem>>, %arg10: memref<1x512xf32, #tpu.memory_space<vmem>>, %arg11: memref<1x512xf32, #tpu.memory_space<vmem>>, %arg12: memref<1x512xf32, #tpu.memory_space<vmem>>, %arg13: memref<512x128xbf16, #tpu.memory_space<vmem>>, %arg14: memref<1x128xf32, #tpu.memory_space<vmem>>, %arg15: memref<2x128xf32, #tpu.memory_space<vmem>>, %arg16: memref<2x512xf32, #tpu.memory_space<vmem>>) attributes {dimension_semantics = [#tpu.dimension_semantics<parallel>, #tpu.dimension_semantics<arbitrary>], iteration_bounds = array<i64: 1, 8>, scalar_prefetch = 0 : i64, scratch_operands = 1 : i64, tpu.core_type = #tpu.core_type<tc>, window_params = [{transform_indices = @transform_0, window_bounds = array<i64: 2, 384>}, {transform_indices = @transform_1, window_bounds = array<i64: 2, 16, 256>}, {pipeline_mode = #tpu.pipeline_mode<synchronous>, transform_indices = @transform_2, window_bounds = array<i64: 2048, 512>}, {pipeline_mode = #tpu.pipeline_mode<synchronous>, transform_indices = @transform_3, window_bounds = array<i64: 1, 512>}, {pipeline_mode = #tpu.pipeline_mode<synchronous>, transform_indices = @transform_4, window_bounds = array<i64: 384, 512>}, {pipeline_mode = #tpu.pipeline_mode<synchronous>, transform_indices = @transform_5, window_bounds = array<i64: 1, 512>}, {pipeline_mode = #tpu.pipeline_mode<synchronous>, transform_indices = @transform_6, window_bounds = array<i64: 512, 512>}, {pipeline_mode = #tpu.pipeline_mode<synchronous>, transform_indices = @transform_7, window_bounds = array<i64: 512, 512>}, {pipeline_mode = #tpu.pipeline_mode<synchronous>, transform_indices = @transform_8, window_bounds = array<i64: 1, 512>}, {pipeline_mode = #tpu.pipeline_mode<synchronous>, transform_indices = @transform_9, window_bounds = array<i64: 1, 512>}, {pipeline_mode = #tpu.pipeline_mode<synchronous>, transform_indices = @transform_10, window_bounds = array<i64: 1, 512>}, {pipeline_mode = #tpu.pipeline_mode<synchronous>, transform_indices = @transform_11, window_bounds = array<i64: 512, 128>}, {pipeline_mode = #tpu.pipeline_mode<synchronous>, transform_indices = @transform_12, window_bounds = array<i64: 1, 128>}, {transform_indices = @transform_13, window_bounds = array<i64: 2, 128>}]} {
    %c0_i32 = arith.constant 0 : i32
    %0 = arith.cmpi eq, %arg1, %c0_i32 : i32
    %1 = arith.extui %0 : i1 to i32
    %c0_i32_0 = arith.constant 0 : i32
    %2 = arith.cmpi ne, %1, %c0_i32_0 : i32
    scf.if %2 {
      %cst_10 = arith.constant 0.000000e+00 : f32
      %18 = vector.broadcast %cst_10 : f32 to vector<2x512xf32>
      %c0_11 = arith.constant 0 : index
      %c0_12 = arith.constant 0 : index
      %19 = vector.load %arg16[%c0_11, %c0_12] : memref<2x512xf32, #tpu.memory_space<vmem>>, vector<2x512xf32>
      tpu.vector_store %arg16[%c0_11, %c0_12], %18 {strides = array<i32>} : memref<2x512xf32, #tpu.memory_space<vmem>>, vector<2x512xf32>,
    } else {
    }
    %c0 = arith.constant 0 : index
    %c0_1 = arith.constant 0 : index
    %c0_2 = arith.constant 0 : index
    %3 = vector.load %arg3[%c0, %c0_1, %c0_2] : memref<2x16x256xbf16, #tpu.memory_space<vmem>>, vector<2x16x256xbf16>
    %4 = arith.extf %3 : vector<2x16x256xbf16> to vector<2x16x256xf32>
    %cst = arith.constant dense<0.000000e+00> : vector<2x256xf32>
    %5 = vector.multi_reduction <add>, %4, %cst [1] : vector<2x16x256xf32> to vector<2x256xf32>
    %c256_i32 = arith.constant 256 : i32
    %6 = arith.muli %arg1, %c256_i32 : i32
    %7 = tpu.assume_multiple %6, 256 : i32
    %c0_3 = arith.constant 0 : index
    %c0_4 = arith.constant 0 : index
    %8 = vector.load %arg16[%c0_3, %c0_4] : memref<2x512xf32, #tpu.memory_space<vmem>>, vector<2x512xf32>
    %9 = arith.truncf %5 : vector<2x256xf32> to vector<2x256xbf16>
    %10 = arith.index_cast %7 : i32 to index
    %c0_5 = arith.constant 0 : index
    %11 = vector.load %arg4[%10, %c0_5] : memref<2048x512xbf16, #tpu.memory_space<vmem>>, vector<256x512xbf16>
    %cst_6 = arith.constant dense<0.000000e+00> : vector<2x512xf32>
    %12 = tpu.matmul %9, %11, %cst_6 {dimension_numbers = #tpu.dot_dimension_numbers<[1], [0], [0], [1], [0, 0, 1, 1], [], []>} : vector<2x256xbf16>, vector<256x512xbf16>, vector<2x512xf32> -> vector<2x512xf32>
    %13 = arith.addf %8, %12 : vector<2x512xf32>
    %c0_7 = arith.constant 0 : index
    %c0_8 = arith.constant 0 : index
    %14 = vector.load %arg16[%c0_7, %c0_8] : memref<2x512xf32, #tpu.memory_space<vmem>>, vector<2x512xf32>
    tpu.vector_store %arg16[%c0_7, %c0_8], %13 {strides = array<i32>} : memref<2x512xf32, #tpu.memory_space<vmem>>, vector<2x512xf32>,
    %c7_i32 = arith.constant 7 : i32
    %15 = arith.cmpi eq, %arg1, %c7_i32 : i32
    %16 = arith.extui %15 : i1 to i32
    %c0_i32_9 = arith.constant 0 : i32
    %17 = arith.cmpi ne, %16, %c0_i32_9 : i32
    scf.if %17 {
      %c0_10 = arith.constant 0 : index
      %c0_11 = arith.constant 0 : index
      %18 = vector.load %arg16[%c0_10, %c0_11] : memref<2x512xf32, #tpu.memory_space<vmem>>, vector<2x512xf32>
      %c0_12 = arith.constant 0 : index
      %c0_13 = arith.constant 0 : index
      %19 = vector.load %arg5[%c0_12, %c0_13] : memref<1x512xf32, #tpu.memory_space<vmem>>, vector<1x512xf32>
      %20 = vector.broadcast %19 : vector<1x512xf32> to vector<2x512xf32>
      %21 = arith.addf %18, %20 : vector<2x512xf32>
      %22 = math.tanh %21 : vector<2x512xf32>
      %c0_14 = arith.constant 0 : index
      %c0_15 = arith.constant 0 : index
      %23 = vector.load %arg2[%c0_14, %c0_15] : memref<2x384xf32, #tpu.memory_space<vmem>>, vector<2x384xf32>
      %24 = arith.truncf %23 : vector<2x384xf32> to vector<2x384xbf16>
      %c0_16 = arith.constant 0 : index
      %c0_17 = arith.constant 0 : index
      %25 = vector.load %arg6[%c0_16, %c0_17] : memref<384x512xbf16, #tpu.memory_space<vmem>>, vector<384x512xbf16>
      %cst_18 = arith.constant dense<0.000000e+00> : vector<2x512xf32>
      %26 = tpu.matmul %24, %25, %cst_18 {dimension_numbers = #tpu.dot_dimension_numbers<[1], [0], [0], [1], [0, 0, 1, 1], [], []>} : vector<2x384xbf16>, vector<384x512xbf16>, vector<2x512xf32> -> vector<2x512xf32>
      %c0_19 = arith.constant 0 : index
      %c0_20 = arith.constant 0 : index
      %27 = vector.load %arg7[%c0_19, %c0_20] : memref<1x512xf32, #tpu.memory_space<vmem>>, vector<1x512xf32>
      %28 = vector.broadcast %27 : vector<1x512xf32> to vector<2x512xf32>
      %29 = arith.addf %26, %28 : vector<2x512xf32>
      %30 = math.tanh %29 : vector<2x512xf32>
      %31 = arith.truncf %30 : vector<2x512xf32> to vector<2x512xbf16>
      %c0_21 = arith.constant 0 : index
      %c0_22 = arith.constant 0 : index
      %32 = vector.load %arg8[%c0_21, %c0_22] : memref<512x512xbf16, #tpu.memory_space<vmem>>, vector<512x512xbf16>
      %cst_23 = arith.constant dense<0.000000e+00> : vector<2x512xf32>
      %33 = tpu.matmul %31, %32, %cst_23 {dimension_numbers = #tpu.dot_dimension_numbers<[1], [0], [0], [1], [0, 0, 1, 1], [], []>} : vector<2x512xbf16>, vector<512x512xbf16>, vector<2x512xf32> -> vector<2x512xf32>
      %34 = arith.truncf %22 : vector<2x512xf32> to vector<2x512xbf16>
      %c0_24 = arith.constant 0 : index
      %c0_25 = arith.constant 0 : index
      %35 = vector.load %arg9[%c0_24, %c0_25] : memref<512x512xbf16, #tpu.memory_space<vmem>>, vector<512x512xbf16>
      %cst_26 = arith.constant dense<0.000000e+00> : vector<2x512xf32>
      %36 = tpu.matmul %34, %35, %cst_26 {dimension_numbers = #tpu.dot_dimension_numbers<[1], [0], [0], [1], [0, 0, 1, 1], [], []>} : vector<2x512xbf16>, vector<512x512xbf16>, vector<2x512xf32> -> vector<2x512xf32>
      %37 = arith.addf %33, %36 : vector<2x512xf32>
      %c0_27 = arith.constant 0 : index
      %c0_28 = arith.constant 0 : index
      %38 = vector.load %arg10[%c0_27, %c0_28] : memref<1x512xf32, #tpu.memory_space<vmem>>, vector<1x512xf32>
      %39 = vector.broadcast %38 : vector<1x512xf32> to vector<2x512xf32>
      %40 = arith.addf %37, %39 : vector<2x512xf32>
      %41 = math.tanh %40 : vector<2x512xf32>
      %cst_29 = arith.constant dense<0.000000e+00> : vector<2xf32>
      %42 = vector.multi_reduction <add>, %41, %cst_29 [1] : vector<2x512xf32> to vector<2xf32>
      %43 = vector.shape_cast %42 : vector<2xf32> to vector<2x1xf32>
      %cst_30 = arith.constant 5.120000e+02 : f32
      %44 = vector.broadcast %cst_30 : f32 to vector<2x1xf32>
      %45 = arith.divf %43, %44 : vector<2x1xf32>
      %46 = vector.broadcast %45 : vector<2x1xf32> to vector<2x512xf32>
      %47 = arith.subf %41, %46 : vector<2x512xf32>
      %48 = arith.mulf %47, %47 : vector<2x512xf32>
      %cst_31 = arith.constant dense<0.000000e+00> : vector<2xf32>
      %49 = vector.multi_reduction <add>, %48, %cst_31 [1] : vector<2x512xf32> to vector<2xf32>
      %50 = vector.shape_cast %49 : vector<2xf32> to vector<2x1xf32>
      %cst_32 = arith.constant 5.120000e+02 : f32
      %51 = vector.broadcast %cst_32 : f32 to vector<2x1xf32>
      %52 = arith.divf %50, %51 : vector<2x1xf32>
      %53 = vector.broadcast %45 : vector<2x1xf32> to vector<2x512xf32>
      %54 = arith.subf %41, %53 : vector<2x512xf32>
      %cst_33 = arith.constant 9.99999974E-6 : f32
      %55 = vector.broadcast %cst_33 : f32 to vector<2x1xf32>
      %56 = arith.addf %52, %55 : vector<2x1xf32>
      %57 = math.rsqrt %56 : vector<2x1xf32>
      %58 = vector.broadcast %57 : vector<2x1xf32> to vector<2x512xf32>
      %59 = arith.mulf %54, %58 : vector<2x512xf32>
      %c0_34 = arith.constant 0 : index
      %c0_35 = arith.constant 0 : index
      %60 = vector.load %arg11[%c0_34, %c0_35] : memref<1x512xf32, #tpu.memory_space<vmem>>, vector<1x512xf32>
      %61 = vector.broadcast %60 : vector<1x512xf32> to vector<2x512xf32>
      %62 = arith.mulf %59, %61 : vector<2x512xf32>
      %c0_36 = arith.constant 0 : index
      %c0_37 = arith.constant 0 : index
      %63 = vector.load %arg12[%c0_36, %c0_37] : memref<1x512xf32, #tpu.memory_space<vmem>>, vector<1x512xf32>
      %64 = vector.broadcast %63 : vector<1x512xf32> to vector<2x512xf32>
      %65 = arith.addf %62, %64 : vector<2x512xf32>
      %66 = arith.truncf %65 : vector<2x512xf32> to vector<2x512xbf16>
      %c0_38 = arith.constant 0 : index
      %c0_39 = arith.constant 0 : index
      %67 = vector.load %arg13[%c0_38, %c0_39] : memref<512x128xbf16, #tpu.memory_space<vmem>>, vector<512x128xbf16>
      %cst_40 = arith.constant dense<0.000000e+00> : vector<2x128xf32>
      %68 = tpu.matmul %66, %67, %cst_40 {dimension_numbers = #tpu.dot_dimension_numbers<[1], [0], [0], [1], [0, 0, 1, 1], [], []>} : vector<2x512xbf16>, vector<512x128xbf16>, vector<2x128xf32> -> vector<2x128xf32>
      %c0_41 = arith.constant 0 : index
      %c0_42 = arith.constant 0 : index
      %69 = vector.load %arg14[%c0_41, %c0_42] : memref<1x128xf32, #tpu.memory_space<vmem>>, vector<1x128xf32>
      %70 = vector.broadcast %69 : vector<1x128xf32> to vector<2x128xf32>
      %71 = arith.addf %68, %70 : vector<2x128xf32>
      %cst_43 = arith.constant dense<0xFF800000> : vector<2xf32>
      %72 = vector.multi_reduction <maximumf>, %71, %cst_43 [1] : vector<2x128xf32> to vector<2xf32>
      %73 = vector.shape_cast %72 : vector<2xf32> to vector<2x1xf32>
      %74 = vector.broadcast %73 : vector<2x1xf32> to vector<2x128xf32>
      %75 = arith.subf %71, %74 : vector<2x128xf32>
      %76 = math.exp %75 : vector<2x128xf32>
      %cst_44 = arith.constant dense<0.000000e+00> : vector<2xf32>
      %77 = vector.multi_reduction <add>, %76, %cst_44 [1] : vector<2x128xf32> to vector<2xf32>
      %78 = vector.shape_cast %77 : vector<2xf32> to vector<2x1xf32>
      %79 = vector.broadcast %78 : vector<2x1xf32> to vector<2x128xf32>
      %80 = arith.divf %76, %79 : vector<2x128xf32>
      %c0_45 = arith.constant 0 : index
      %c0_46 = arith.constant 0 : index
      %81 = vector.load %arg15[%c0_45, %c0_46] : memref<2x128xf32, #tpu.memory_space<vmem>>, vector<2x128xf32>
      tpu.vector_store %arg15[%c0_45, %c0_46], %80 {strides = array<i32>} : memref<2x128xf32, #tpu.memory_space<vmem>>, vector<2x128xf32>,
    } else {
    }
    return
  }
  func.func @transform_0(%arg0: i32, %arg1: i32) -> (i32, i32) {
    %c0_i32 = arith.constant 0 : i32
    %c0_i32_0 = arith.constant 0 : i32
    return %arg0, %c0_i32 : i32, i32
  }
  func.func @transform_1(%arg0: i32, %arg1: i32) -> (i32, i32, i32) {
    %c0_i32 = arith.constant 0 : i32
    %c0_i32_0 = arith.constant 0 : i32
    return %arg0, %c0_i32, %arg1 : i32, i32, i32
  }
  func.func @transform_2(%arg0: i32, %arg1: i32) -> (i32, i32) {
    %c0_i32 = arith.constant 0 : i32
    %c0_i32_0 = arith.constant 0 : i32
    %c0_i32_1 = arith.constant 0 : i32
    return %c0_i32, %c0_i32_0 : i32, i32
  }
  func.func @transform_3(%arg0: i32, %arg1: i32) -> (i32, i32) {
    %c0_i32 = arith.constant 0 : i32
    %c0_i32_0 = arith.constant 0 : i32
    %c0_i32_1 = arith.constant 0 : i32
    return %c0_i32, %c0_i32_0 : i32, i32
  }
  func.func @transform_4(%arg0: i32, %arg1: i32) -> (i32, i32) {
    %c0_i32 = arith.constant 0 : i32
    %c0_i32_0 = arith.constant 0 : i32
    %c0_i32_1 = arith.constant 0 : i32
    return %c0_i32, %c0_i32_0 : i32, i32
  }
  func.func @transform_5(%arg0: i32, %arg1: i32) -> (i32, i32) {
    %c0_i32 = arith.constant 0 : i32
    %c0_i32_0 = arith.constant 0 : i32
    %c0_i32_1 = arith.constant 0 : i32
    return %c0_i32, %c0_i32_0 : i32, i32
  }
  func.func @transform_6(%arg0: i32, %arg1: i32) -> (i32, i32) {
    %c0_i32 = arith.constant 0 : i32
    %c0_i32_0 = arith.constant 0 : i32
    %c0_i32_1 = arith.constant 0 : i32
    return %c0_i32, %c0_i32_0 : i32, i32
  }
  func.func @transform_7(%arg0: i32, %arg1: i32) -> (i32, i32) {
    %c0_i32 = arith.constant 0 : i32
    %c0_i32_0 = arith.constant 0 : i32
    %c0_i32_1 = arith.constant 0 : i32
    return %c0_i32, %c0_i32_0 : i32, i32
  }
  func.func @transform_8(%arg0: i32, %arg1: i32) -> (i32, i32) {
    %c0_i32 = arith.constant 0 : i32
    %c0_i32_0 = arith.constant 0 : i32
    %c0_i32_1 = arith.constant 0 : i32
    return %c0_i32, %c0_i32_0 : i32, i32
  }
  func.func @transform_9(%arg0: i32, %arg1: i32) -> (i32, i32) {
    %c0_i32 = arith.constant 0 : i32
    %c0_i32_0 = arith.constant 0 : i32
    %c0_i32_1 = arith.constant 0 : i32
    return %c0_i32, %c0_i32_0 : i32, i32
  }
  func.func @transform_10(%arg0: i32, %arg1: i32) -> (i32, i32) {
    %c0_i32 = arith.constant 0 : i32
    %c0_i32_0 = arith.constant 0 : i32
    %c0_i32_1 = arith.constant 0 : i32
    return %c0_i32, %c0_i32_0 : i32, i32
  }
  func.func @transform_11(%arg0: i32, %arg1: i32) -> (i32, i32) {
    %c0_i32 = arith.constant 0 : i32
    %c0_i32_0 = arith.constant 0 : i32
    %c0_i32_1 = arith.constant 0 : i32
    return %c0_i32, %c0_i32_0 : i32, i32
  }
  func.func @transform_12(%arg0: i32, %arg1: i32) -> (i32, i32) {
    %c0_i32 = arith.constant 0 : i32
    %c0_i32_0 = arith.constant 0 : i32
    %c0_i32_1 = arith.constant 0 : i32
    return %c0_i32, %c0_i32_0 : i32, i32
  }
  func.func @transform_13(%arg0: i32, %arg1: i32) -> (i32, i32) {
    %c0_i32 = arith.constant 0 : i32
    %c0_i32_0 = arith.constant 0 : i32
    return %arg0, %c0_i32 : i32, i32
  }
}

</mosaic_0001>

<llo_original>
// kernel: model1_1_forward.1
$region0: #{model1_1_forward.1}
  #allocation0 [shape = 'u32[]', space=smem, size = 0x4, offset = 0x4, fixed_abs, tag = 'smem constant byte address 0x4 - core index']
  #allocation1 [shape = 'u32[144,128]{1,0:T(1,128)}', space=vmem, size = 0x12000, scoped, tag = 'internal scratch']
  #allocation2 [shape = 'f32[2,512]{1,0:T(2,128)}', space=vmem, size = 0x1000, scoped, tag = 'scratch operand']
  %s0 = inlined_call_operand.vmem [shape: f32[2,384], index: 0, kind: input, shape index: {}]
  %s1 = inlined_call_operand.vmem [shape: bf16[2,16,2048], index: 1, kind: input, shape index: {}]
  %s2 = inlined_call_operand.vmem [shape: bf16[2048,512], index: 2, kind: input, shape index: {}]
  %s3 = inlined_call_operand.vmem [shape: f32[1,512], index: 3, kind: input, shape index: {}]
  %s4 = inlined_call_operand.vmem [shape: bf16[384,512], index: 4, kind: input, shape index: {}]
  %s5 = inlined_call_operand.vmem [shape: f32[1,512], index: 5, kind: input, shape index: {}]
  %s6 = inlined_call_operand.vmem [shape: bf16[512,512], index: 6, kind: input, shape index: {}]
  %s7 = inlined_call_operand.vmem [shape: bf16[512,512], index: 7, kind: input, shape index: {}]
  %s8 = inlined_call_operand.vmem [shape: f32[1,512], index: 8, kind: input, shape index: {}]
  %s9 = inlined_call_operand.vmem [shape: f32[1,512], index: 9, kind: input, shape index: {}]
  %s10 = inlined_call_operand.vmem [shape: f32[1,512], index: 10, kind: input, shape index: {}]
  %s11 = inlined_call_operand.vmem [shape: bf16[512,128], index: 11, kind: input, shape index: {}]
  %s12 = inlined_call_operand.vmem [shape: f32[1,128], index: 12, kind: input, shape index: {}]
  %s13 = inlined_call_operand.hbm [shape: f32[2,128], index: 13, kind: output, shape index: {}]
  %s14 = sld [smem:[#allocation0]]
  $region131: #{model1_1_forward.1} parent=0
    _
  %s16 = ssub.s32 1, %s14
  %s17 = scalar_select 0, %s16, %s14
  $region1: #{model1_1_forward.1} parent=0
    #allocation3 [shape = 'u8[32768]{0}', space=vmem, size = 0x8000, scoped, tag = 'input window, operand 1']
    #allocation4 [shape = 'u8[1024]{0}', space=vmem, size = 0x400, scoped, tag = 'output window, operand 0, single buffered']
    #allocation5 [shape = 's32[2]{0}', space=sflag, size = 0x8, scoped, tag = 'scoped memory for model1_1_forward.1']
    %18 = vsyncpa [#allocation5], 0
    loop: start=0, step=1, limit=10
    $region2: #{model1_1_forward.1} parent=1 // loop_pre_header
      _
    $region3: #{model1_1_forward.1} parent=1 // loop_header
      %s20 = sphi 0, %s24
      %p21 = scmp.ge.s32.totalorder %s20, 10
      %s27 = sphi 0, %s39
      %s28 = sphi 0, %s35
      %s29 = sphi 0, %s27
      %s30 = sphi 0, %s28
      %s31 = sphi 0, %s29
      %s32 = sphi 0, %s30
      %s42 = sphi 0, %s44
      %s45 = sphi 0, %s42
      %s46 = sphi 0, %s45
      %s62 = sphi 0, %s46
      %s70 = sphi 0, %s72
      %s73 = sphi 0, %s70
      %s74 = sphi 0, %s73
      %s90 = sphi 0, %s74
      %s94 = sphi 0, %s94
      %s96 = sphi 0, %s94
      %s97 = sphi 0, %s96
      %s111 = sphi 0, %s97
      %s115 = sphi 0, %s115
      %s117 = sphi 0, %s115
      %s118 = sphi 0, %s117
      %s132 = sphi 0, %s118
      %s136 = sphi 0, %s136
      %s138 = sphi 0, %s136
      %s139 = sphi 0, %s138
      %s153 = sphi 0, %s139
      %s157 = sphi 0, %s157
      %s159 = sphi 0, %s157
      %s160 = sphi 0, %s159
      %s174 = sphi 0, %s160
      %s178 = sphi 0, %s178
      %s180 = sphi 0, %s178
      %s181 = sphi 0, %s180
      %s195 = sphi 0, %s181
      %s199 = sphi 0, %s199
      %s201 = sphi 0, %s199
      %s202 = sphi 0, %s201
      %s216 = sphi 0, %s202
      %s220 = sphi 0, %s220
      %s222 = sphi 0, %s220
      %s223 = sphi 0, %s222
      %s237 = sphi 0, %s223
      %s241 = sphi 0, %s241
      %s243 = sphi 0, %s241
      %s244 = sphi 0, %s243
      %s258 = sphi 0, %s244
      %s262 = sphi 0, %s262
      %s264 = sphi 0, %s262
      %s265 = sphi 0, %s264
      %s279 = sphi 0, %s265
      %s283 = sphi 0, %s283
      %s285 = sphi 0, %s283
      %s286 = sphi 0, %s285
      %s300 = sphi 0, %s286
      %s304 = sphi 0, %s304
      %s306 = sphi 0, %s304
      %s307 = sphi 0, %s306
      %s321 = sphi 0, %s307
      %s327 = sphi 0, %s329
      %s330 = sphi 0, %s327
      %s331 = sphi 0, %s330
      %s347 = sphi 0, %s331
    $region4: #{model1_1_forward.1} parent=1 // loop_header_branch
      %23 = sbr.rel (%p21) target = $region8
    $region5: #{model1_1_forward.1} parent=1 // loop_body
      %s25 = ssub.s32 %s20, 1
      %s26 = ssub.s32 %s20, 2
      %s33 = sadd.s32 1, %s28
      %p34 = scmp.ge.s32.totalorder %s33, 8
      %s35 = scalar_select %p34, 0, %s33
      %s36 = sadd.s32 1, %s27
      %s37 = scalar_select %p34, %s36, %s27
      %p38 = scmp.ge.s32.totalorder %s37, 1
      %s39 = scalar_select %p38, 0, %s37
      %s40 = ssub.s32 %s27, %s39
      %p41 = scmp.eq.s32.totalorder %s40, 0
      %s43 = sadd.s32 %s42, 1
      %s44 = scalar_select %p41, %s42, %s43
      %p47 = pneg %p41
      %p48 = scmp.eq.s32.totalorder %s20, 7
      %p49 = por %p47, %p48
      %p50 = scmp.ne.s32.totalorder %s42, %s45
      %p51 = scmp.eq.s32.totalorder %s20, 0
      %p52 = por %p50, %p51
      %p53 = scmp.ne.s32.totalorder %s42, %s45
      %p54 = scmp.eq.s32.totalorder %s25, 7
      %p55 = por %p53, %p54
      %p56 = scmp.ne.s32.totalorder %s45, %s46
      %p57 = scmp.eq.s32.totalorder %s25, 0
      %p58 = por %p56, %p57
      %p59 = scmp.ne.s32.totalorder %s45, %s46
      %p60 = scmp.eq.s32.totalorder %s26, 7
      %p61 = por %p59, %p60
      %p63 = scmp.ne.s32.totalorder %s46, %s62
      %p64 = scmp.eq.s32.totalorder %s26, 0
      %p65 = por %p63, %p64
      %s66 = ssub.s32 %s27, %s39
      %s67 = ssub.s32 %s28, %s35
      %s68 = sor.u32 %s66, %s67
      %p69 = scmp.eq.s32.totalorder %s68, 0
      %s71 = sadd.s32 %s70, 1
      %s72 = scalar_select %p69, %s70, %s71
      %p75 = pneg %p69
      %p76 = scmp.eq.s32.totalorder %s20, 7
      %p77 = por %p75, %p76
      %p78 = scmp.ne.s32.totalorder %s70, %s73
      %p79 = scmp.eq.s32.totalorder %s20, 0
      %p80 = por %p78, %p79
      %p81 = scmp.ne.s32.totalorder %s70, %s73
      %p82 = scmp.eq.s32.totalorder %s25, 7
      %p83 = por %p81, %p82
      %p84 = scmp.ne.s32.totalorder %s73, %s74
      %p85 = scmp.eq.s32.totalorder %s25, 0
      %p86 = por %p84, %p85
      %p87 = scmp.ne.s32.totalorder %s73, %s74
      %p88 = scmp.eq.s32.totalorder %s26, 7
      %p89 = por %p87, %p88
      %p91 = scmp.ne.s32.totalorder %s74, %s90
      %p92 = scmp.eq.s32.totalorder %s26, 0
      %p93 = por %p91, %p92
      %s95 = sadd.s32 %s94, 1
      %p98 = scmp.eq.s32.totalorder %s20, 7
      %p99 = scmp.ne.s32.totalorder %s94, %s96
      %p100 = scmp.eq.s32.totalorder %s20, 0
      %p101 = por %p99, %p100
      %p102 = scmp.ne.s32.totalorder %s94, %s96
      %p103 = scmp.eq.s32.totalorder %s25, 7
      %p104 = por %p102, %p103
      %p105 = scmp.ne.s32.totalorder %s96, %s97
      %p106 = scmp.eq.s32.totalorder %s25, 0
      %p107 = por %p105, %p106
      %p108 = scmp.ne.s32.totalorder %s96, %s97
      %p109 = scmp.eq.s32.totalorder %s26, 7
      %p110 = por %p108, %p109
      %p112 = scmp.ne.s32.totalorder %s97, %s111
      %p113 = scmp.eq.s32.totalorder %s26, 0
      %p114 = por %p112, %p113
      %s116 = sadd.s32 %s115, 1
      %p119 = scmp.eq.s32.totalorder %s20, 7
      %p120 = scmp.ne.s32.totalorder %s115, %s117
      %p121 = scmp.eq.s32.totalorder %s20, 0
      %p122 = por %p120, %p121
      %p123 = scmp.ne.s32.totalorder %s115, %s117
      %p124 = scmp.eq.s32.totalorder %s25, 7
      %p125 = por %p123, %p124
      %p126 = scmp.ne.s32.totalorder %s117, %s118
      %p127 = scmp.eq.s32.totalorder %s25, 0
      %p128 = por %p126, %p127
      %p129 = scmp.ne.s32.totalorder %s117, %s118
      %p130 = scmp.eq.s32.totalorder %s26, 7
      %p131 = por %p129, %p130
      %p133 = scmp.ne.s32.totalorder %s118, %s132
      %p134 = scmp.eq.s32.totalorder %s26, 0
      %p135 = por %p133, %p134
      %s137 = sadd.s32 %s136, 1
      %p140 = scmp.eq.s32.totalorder %s20, 7
      %p141 = scmp.ne.s32.totalorder %s136, %s138
      %p142 = scmp.eq.s32.totalorder %s20, 0
      %p143 = por %p141, %p142
      %p144 = scmp.ne.s32.totalorder %s136, %s138
      %p145 = scmp.eq.s32.totalorder %s25, 7
      %p146 = por %p144, %p145
      %p147 = scmp.ne.s32.totalorder %s138, %s139
      %p148 = scmp.eq.s32.totalorder %s25, 0
      %p149 = por %p147, %p148
      %p150 = scmp.ne.s32.totalorder %s138, %s139
      %p151 = scmp.eq.s32.totalorder %s26, 7
      %p152 = por %p150, %p151
      %p154 = scmp.ne.s32.totalorder %s139, %s153
      %p155 = scmp.eq.s32.totalorder %s26, 0
      %p156 = por %p154, %p155
      %s158 = sadd.s32 %s157, 1
      %p161 = scmp.eq.s32.totalorder %s20, 7
      %p162 = scmp.ne.s32.totalorder %s157, %s159
      %p163 = scmp.eq.s32.totalorder %s20, 0
      %p164 = por %p162, %p163
      %p165 = scmp.ne.s32.totalorder %s157, %s159
      %p166 = scmp.eq.s32.totalorder %s25, 7
      %p167 = por %p165, %p166
      %p168 = scmp.ne.s32.totalorder %s159, %s160
      %p169 = scmp.eq.s32.totalorder %s25, 0
      %p170 = por %p168, %p169
      %p171 = scmp.ne.s32.totalorder %s159, %s160
      %p172 = scmp.eq.s32.totalorder %s26, 7
      %p173 = por %p171, %p172
      %p175 = scmp.ne.s32.totalorder %s160, %s174
      %p176 = scmp.eq.s32.totalorder %s26, 0
      %p177 = por %p175, %p176
      %s179 = sadd.s32 %s178, 1
      %p182 = scmp.eq.s32.totalorder %s20, 7
      %p183 = scmp.ne.s32.totalorder %s178, %s180
      %p184 = scmp.eq.s32.totalorder %s20, 0
      %p185 = por %p183, %p184
      %p186 = scmp.ne.s32.totalorder %s178, %s180
      %p187 = scmp.eq.s32.totalorder %s25, 7
      %p188 = por %p186, %p187
      %p189 = scmp.ne.s32.totalorder %s180, %s181
      %p190 = scmp.eq.s32.totalorder %s25, 0
      %p191 = por %p189, %p190
      %p192 = scmp.ne.s32.totalorder %s180, %s181
      %p193 = scmp.eq.s32.totalorder %s26, 7
      %p194 = por %p192, %p193
      %p196 = scmp.ne.s32.totalorder %s181, %s195
      %p197 = scmp.eq.s32.totalorder %s26, 0
      %p198 = por %p196, %p197
      %s200 = sadd.s32 %s199, 1
      %p203 = scmp.eq.s32.totalorder %s20, 7
      %p204 = scmp.ne.s32.totalorder %s199, %s201
      %p205 = scmp.eq.s32.totalorder %s20, 0
      %p206 = por %p204, %p205
      %p207 = scmp.ne.s32.totalorder %s199, %s201
      %p208 = scmp.eq.s32.totalorder %s25, 7
      %p209 = por %p207, %p208
      %p210 = scmp.ne.s32.totalorder %s201, %s202
      %p211 = scmp.eq.s32.totalorder %s25, 0
      %p212 = por %p210, %p211
      %p213 = scmp.ne.s32.totalorder %s201, %s202
      %p214 = scmp.eq.s32.totalorder %s26, 7
      %p215 = por %p213, %p214
      %p217 = scmp.ne.s32.totalorder %s202, %s216
      %p218 = scmp.eq.s32.totalorder %s26, 0
      %p219 = por %p217, %p218
      %s221 = sadd.s32 %s220, 1
      %p224 = scmp.eq.s32.totalorder %s20, 7
      %p225 = scmp.ne.s32.totalorder %s220, %s222
      %p226 = scmp.eq.s32.totalorder %s20, 0
      %p227 = por %p225, %p226
      %p228 = scmp.ne.s32.totalorder %s220, %s222
      %p229 = scmp.eq.s32.totalorder %s25, 7
      %p230 = por %p228, %p229
      %p231 = scmp.ne.s32.totalorder %s222, %s223
      %p232 = scmp.eq.s32.totalorder %s25, 0
      %p233 = por %p231, %p232
      %p234 = scmp.ne.s32.totalorder %s222, %s223
      %p235 = scmp.eq.s32.totalorder %s26, 7
      %p236 = por %p234, %p235
      %p238 = scmp.ne.s32.totalorder %s223, %s237
      %p239 = scmp.eq.s32.totalorder %s26, 0
      %p240 = por %p238, %p239
      %s242 = sadd.s32 %s241, 1
      %p245 = scmp.eq.s32.totalorder %s20, 7
      %p246 = scmp.ne.s32.totalorder %s241, %s243
      %p247 = scmp.eq.s32.totalorder %s20, 0
      %p248 = por %p246, %p247
      %p249 = scmp.ne.s32.totalorder %s241, %s243
      %p250 = scmp.eq.s32.totalorder %s25, 7
      %p251 = por %p249, %p250
      %p252 = scmp.ne.s32.totalorder %s243, %s244
      %p253 = scmp.eq.s32.totalorder %s25, 0
      %p254 = por %p252, %p253
      %p255 = scmp.ne.s32.totalorder %s243, %s244
      %p256 = scmp.eq.s32.totalorder %s26, 7
      %p257 = por %p255, %p256
      %p259 = scmp.ne.s32.totalorder %s244, %s258
      %p260 = scmp.eq.s32.totalorder %s26, 0
      %p261 = por %p259, %p260
      %s263 = sadd.s32 %s262, 1
      %p266 = scmp.eq.s32.totalorder %s20, 7
      %p267 = scmp.ne.s32.totalorder %s262, %s264
      %p268 = scmp.eq.s32.totalorder %s20, 0
      %p269 = por %p267, %p268
      %p270 = scmp.ne.s32.totalorder %s262, %s264
      %p271 = scmp.eq.s32.totalorder %s25, 7
      %p272 = por %p270, %p271
      %p273 = scmp.ne.s32.totalorder %s264, %s265
      %p274 = scmp.eq.s32.totalorder %s25, 0
      %p275 = por %p273, %p274
      %p276 = scmp.ne.s32.totalorder %s264, %s265
      %p277 = scmp.eq.s32.totalorder %s26, 7
      %p278 = por %p276, %p277
      %p280 = scmp.ne.s32.totalorder %s265, %s279
      %p281 = scmp.eq.s32.totalorder %s26, 0
      %p282 = por %p280, %p281
      %s284 = sadd.s32 %s283, 1
      %p287 = scmp.eq.s32.totalorder %s20, 7
      %p288 = scmp.ne.s32.totalorder %s283, %s285
      %p289 = scmp.eq.s32.totalorder %s20, 0
      %p290 = por %p288, %p289
      %p291 = scmp.ne.s32.totalorder %s283, %s285
      %p292 = scmp.eq.s32.totalorder %s25, 7
      %p293 = por %p291, %p292
      %p294 = scmp.ne.s32.totalorder %s285, %s286
      %p295 = scmp.eq.s32.totalorder %s25, 0
      %p296 = por %p294, %p295
      %p297 = scmp.ne.s32.totalorder %s285, %s286
      %p298 = scmp.eq.s32.totalorder %s26, 7
      %p299 = por %p297, %p298
      %p301 = scmp.ne.s32.totalorder %s286, %s300
      %p302 = scmp.eq.s32.totalorder %s26, 0
      %p303 = por %p301, %p302
      %s305 = sadd.s32 %s304, 1
      %p308 = scmp.eq.s32.totalorder %s20, 7
      %p309 = scmp.ne.s32.totalorder %s304, %s306
      %p310 = scmp.eq.s32.totalorder %s20, 0
      %p311 = por %p309, %p310
      %p312 = scmp.ne.s32.totalorder %s304, %s306
      %p313 = scmp.eq.s32.totalorder %s25, 7
      %p314 = por %p312, %p313
      %p315 = scmp.ne.s32.totalorder %s306, %s307
      %p316 = scmp.eq.s32.totalorder %s25, 0
      %p317 = por %p315, %p316
      %p318 = scmp.ne.s32.totalorder %s306, %s307
      %p319 = scmp.eq.s32.totalorder %s26, 7
      %p320 = por %p318, %p319
      %p322 = scmp.ne.s32.totalorder %s307, %s321
      %p323 = scmp.eq.s32.totalorder %s26, 0
      %p324 = por %p322, %p323
      %s325 = ssub.s32 %s27, %s39
      %p326 = scmp.eq.s32.totalorder %s325, 0
      %s328 = sadd.s32 %s327, 1
      %s329 = scalar_select %p326, %s327, %s328
      %p332 = pneg %p326
      %p333 = scmp.eq.s32.totalorder %s20, 7
      %p334 = por %p332, %p333
      %p335 = scmp.ne.s32.totalorder %s327, %s330
      %p336 = scmp.eq.s32.totalorder %s20, 0
      %p337 = por %p335, %p336
      %p338 = scmp.ne.s32.totalorder %s327, %s330
      %p339 = scmp.eq.s32.totalorder %s25, 7
      %p340 = por %p338, %p339
      %p341 = scmp.ne.s32.totalorder %s330, %s331
      %p342 = scmp.eq.s32.totalorder %s25, 0
      %p343 = por %p341, %p342
      %p344 = scmp.ne.s32.totalorder %s330, %s331
      %p345 = scmp.eq.s32.totalorder %s26, 7
      %p346 = por %p344, %p345
      %p348 = scmp.ne.s32.totalorder %s331, %s347
      %p349 = scmp.eq.s32.totalorder %s26, 0
      %p350 = por %p348, %p349
      %p351 = scmp.le.s32.totalorder 1, %s20
      %p352 = scmp.lt.s32.totalorder %s20, 9
      %p353 = pnand %p351, %p352
      %p354 = pneg %p353
      // Predicated region
      $region9: #{model1_1_forward.1} parent=5 // pred_check
        _
      $region10: #{model1_1_forward.1} parent=5 // pred_check_branch
        %356 = sbr.rel (%p353) target = $region12
      $region11: #{model1_1_forward.1} parent=5 // pred_region
        %s357 = ssub.s32 %s20, 1
        // Predicated region
        $region13: #{model1_1_forward.1} parent=11 // pred_check
          %p358 = pneg %p58
        $region14: #{model1_1_forward.1} parent=11 // pred_check_branch
          %360 = sbr.rel (%p358) target = $region16
        $region15: #{model1_1_forward.1} parent=11 // pred_region
          %p361 = scmp.lt.s32.totalorder %s29, 0
          %s362 = scalar_select %p361, %s29, 0
          %s363 = smul.addr %s362, 3
          %s364 = smul.addr %s363, 2
          %s365 = scalar_lea.vmem %s0, %s364
        $region16: #{model1_1_forward.1} parent=11 // pred_fallthru
          _
        // Predicated region
        $region17: #{model1_1_forward.1} parent=11 // pred_check
          %p366 = pneg %p107
        $region18: #{model1_1_forward.1} parent=11 // pred_check_branch
          %368 = sbr.rel (%p366) target = $region20
        $region19: #{model1_1_forward.1} parent=11 // pred_region
          _
        $region20: #{model1_1_forward.1} parent=11 // pred_fallthru
          _
        // Predicated region
        $region21: #{model1_1_forward.1} parent=11 // pred_check
          %p369 = pneg %p128
        $region22: #{model1_1_forward.1} parent=11 // pred_check_branch
          %371 = sbr.rel (%p369) target = $region24
        $region23: #{model1_1_forward.1} parent=11 // pred_region
          _
        $region24: #{model1_1_forward.1} parent=11 // pred_fallthru
          _
        // Predicated region
        $region25: #{model1_1_forward.1} parent=11 // pred_check
          %p372 = pneg %p149
        $region26: #{model1_1_forward.1} parent=11 // pred_check_branch
          %374 = sbr.rel (%p372) target = $region28
        $region27: #{model1_1_forward.1} parent=11 // pred_region
          _
        $region28: #{model1_1_forward.1} parent=11 // pred_fallthru
          _
        // Predicated region
        $region29: #{model1_1_forward.1} parent=11 // pred_check
          %p375 = pneg %p170
        $region30: #{model1_1_forward.1} parent=11 // pred_check_branch
          %377 = sbr.rel (%p375) target = $region32
        $region31: #{model1_1_forward.1} parent=11 // pred_region
          _
        $region32: #{model1_1_forward.1} parent=11 // pred_fallthru
          _
        // Predicated region
        $region33: #{model1_1_forward.1} parent=11 // pred_check
          %p378 = pneg %p191
        $region34: #{model1_1_forward.1} parent=11 // pred_check_branch
          %380 = sbr.rel (%p378) target = $region36
        $region35: #{model1_1_forward.1} parent=11 // pred_region
          _
        $region36: #{model1_1_forward.1} parent=11 // pred_fallthru
          _
        // Predicated region
        $region37: #{model1_1_forward.1} parent=11 // pred_check
          %p381 = pneg %p212
        $region38: #{model1_1_forward.1} parent=11 // pred_check_branch
          %383 = sbr.rel (%p381) target = $region40
        $region39: #{model1_1_forward.1} parent=11 // pred_region
          _
        $region40: #{model1_1_forward.1} parent=11 // pred_fallthru
          _
        // Predicated region
        $region41: #{model1_1_forward.1} parent=11 // pred_check
          %p384 = pneg %p233
        $region42: #{model1_1_forward.1} parent=11 // pred_check_branch
          %386 = sbr.rel (%p384) target = $region44
        $region43: #{model1_1_forward.1} parent=11 // pred_region
          _
        $region44: #{model1_1_forward.1} parent=11 // pred_fallthru
          _
        // Predicated region
        $region45: #{model1_1_forward.1} parent=11 // pred_check
          %p387 = pneg %p254
        $region46: #{model1_1_forward.1} parent=11 // pred_check_branch
          %389 = sbr.rel (%p387) target = $region48
        $region47: #{model1_1_forward.1} parent=11 // pred_region
          _
        $region48: #{model1_1_forward.1} parent=11 // pred_fallthru
          _
        // Predicated region
        $region49: #{model1_1_forward.1} parent=11 // pred_check
          %p390 = pneg %p275
        $region50: #{model1_1_forward.1} parent=11 // pred_check_branch
          %392 = sbr.rel (%p390) target = $region52
        $region51: #{model1_1_forward.1} parent=11 // pred_region
          _
        $region52: #{model1_1_forward.1} parent=11 // pred_fallthru
          _
        // Predicated region
        $region53: #{model1_1_forward.1} parent=11 // pred_check
          %p393 = pneg %p296
        $region54: #{model1_1_forward.1} parent=11 // pred_check_branch
          %395 = sbr.rel (%p393) target = $region56
        $region55: #{model1_1_forward.1} parent=11 // pred_region
          _
        $region56: #{model1_1_forward.1} parent=11 // pred_fallthru
          _
        // Predicated region
        $region57: #{model1_1_forward.1} parent=11 // pred_check
          %p396 = pneg %p317
        $region58: #{model1_1_forward.1} parent=11 // pred_check_branch
          %398 = sbr.rel (%p396) target = $region60
        $region59: #{model1_1_forward.1} parent=11 // pred_region
          _
        $region60: #{model1_1_forward.1} parent=11 // pred_fallthru
          _
      $region12: #{model1_1_forward.1} parent=5 // pred_fallthru
        _
      %p399 = scmp.lt.s32.totalorder %s20, 8
      // Predicated region
      $region61: #{model1_1_forward.1} parent=5 // pred_check
        %p400 = pneg %p399
      $region62: #{model1_1_forward.1} parent=5 // pred_check_branch
        %402 = sbr.rel (%p400) target = $region64
      $region63: #{model1_1_forward.1} parent=5 // pred_region
        // Predicated region
        $region65: #{model1_1_forward.1} parent=63 // pred_check
          %p403 = pneg %p80
        $region66: #{model1_1_forward.1} parent=63 // pred_check_branch
          %405 = sbr.rel (%p403) target = $region68
        $region67: #{model1_1_forward.1} parent=63 // pred_region
          %s406 = sand.u32 %s70, 1
          %s407 = sand.u32 %s70, 1
          %s408 = smul.addr %s407, 32
          %s409 = scalar_lea.vmem [#allocation3], %s408
          %s410 = smul.u32 2, %s27
          %s411 = smul.u32 2, %s28
          %s412 = smul.addr %s410, 32
          %s413 = sadd.s32 %s411, %s412
          %s414 = smul.addr %s413, 4
          %s415 = scalar_lea.vmem %s1, %s414
          // Predicated region
          $region69: #{model1_1_forward.1} parent=67 // pred_check
            _
          $region70: #{model1_1_forward.1} parent=67 // pred_check_branch
            %417 = sbr.rel (0) target = $region72
          $region71: #{model1_1_forward.1} parent=67 // pred_region
            // Predicated region
            $region73: #{model1_1_forward.1} parent=71 // pred_check
              _
            $region74: #{model1_1_forward.1} parent=71 // pred_check_branch
              %419 = sbr.rel (0) target = $region76
            $region75: #{model1_1_forward.1} parent=71 // pred_region
              // Predicated region
              $region88: #{model1_1_forward.1} parent=75 // pred_check
                _
              $region89: #{model1_1_forward.1} parent=75 // pred_check_branch
                %441 = sbr.rel (0) target = $region91
              $region90: #{model1_1_forward.1} parent=75 // pred_region
                loop: start=0, step=1, limit=1
                $region92: #{model1_1_forward.1} parent=90 // loop_pre_header
                  _
                $region93: #{model1_1_forward.1} parent=90 // loop_header
                  %s443 = sphi 0, %s447
                  %p444 = scmp.ge.s32.totalorder %s443, 1
                  %s448 = sphi %s415, %s415
                  %s449 = sphi %s409, %s409
                $region94: #{model1_1_forward.1} parent=90 // loop_header_branch
                  %446 = sbr.rel (%p444) target = $region98
                $region95: #{model1_1_forward.1} parent=90 // loop_body
                  %v450 = vld [vmem:[%s448] sm:$0xff]
                  %451 = vst [vmem:[%s449] sm:$0xff] %v450
                  %v452 = vld [vmem:[%s448 + $0x40] sm:$0xff]
                  %453 = vst [vmem:[%s449 + $0x8] sm:$0xff] %v452
                  %v454 = vld [vmem:[%s448 + $0x80] sm:$0xff]
                  %455 = vst [vmem:[%s449 + $0x10] sm:$0xff] %v454
                  %v456 = vld [vmem:[%s448 + $0xc0] sm:$0xff]
                  %457 = vst [vmem:[%s449 + $0x18] sm:$0xff] %v456
                $region96: #{model1_1_forward.1} parent=90 // loop_footer
                  %s447 = sadd.s32 1, %s443
                $region97: #{model1_1_forward.1} parent=90 // loop_footer_branch
                  %442 = sbr.rel target = $region93
                $region98: #{model1_1_forward.1} parent=90 // loop_exit
                  _
              $region91: #{model1_1_forward.1} parent=75 // pred_fallthru
                _
              // Predicated region
              $region99: #{model1_1_forward.1} parent=75 // pred_check
                _
              $region100: #{model1_1_forward.1} parent=75 // pred_check_branch
                %459 = sbr.rel target = $region102
              $region101: #{model1_1_forward.1} parent=75 // pred_region
                _
              $region102: #{model1_1_forward.1} parent=75 // pred_fallthru
                _
            $region76: #{model1_1_forward.1} parent=71 // pred_fallthru
              _
            // Predicated region
            $region77: #{model1_1_forward.1} parent=71 // pred_check
              _
            $region78: #{model1_1_forward.1} parent=71 // pred_check_branch
              %421 = sbr.rel target = $region80
            $region79: #{model1_1_forward.1} parent=71 // pred_region
              %s423 = ssub.s32 256, 1
              loop: start=0, step=1, limit=1
              $region81: #{model1_1_forward.1} parent=79 // loop_pre_header
                _
              $region82: #{model1_1_forward.1} parent=79 // loop_header
                %s425 = sphi 0, %s429
                %p426 = scmp.ge.s32.totalorder %s425, 1
                %s430 = sphi %s415, %s415
                %s431 = sphi %s409, %s409
              $region83: #{model1_1_forward.1} parent=79 // loop_header_branch
                %428 = sbr.rel (%p426) target = $region87
              $region84: #{model1_1_forward.1} parent=79 // loop_body
                %v432 = vld [vmem:[%s430] sm:%s423]
                %433 = vst [vmem:[%s431] sm:%s423] %v432
                %v434 = vld [vmem:[%s430 + $0x40] sm:%s423]
                %435 = vst [vmem:[%s431 + $0x8] sm:%s423] %v434
                %v436 = vld [vmem:[%s430 + $0x80] sm:%s423]
                %437 = vst [vmem:[%s431 + $0x10] sm:%s423] %v436
                %v438 = vld [vmem:[%s430 + $0xc0] sm:%s423]
                %439 = vst [vmem:[%s431 + $0x18] sm:%s423] %v438
              $region85: #{model1_1_forward.1} parent=79 // loop_footer
                %s429 = sadd.s32 1, %s425
              $region86: #{model1_1_forward.1} parent=79 // loop_footer_branch
                %424 = sbr.rel target = $region82
              $region87: #{model1_1_forward.1} parent=79 // loop_exit
                _
            $region80: #{model1_1_forward.1} parent=71 // pred_fallthru
              _
          $region72: #{model1_1_forward.1} parent=67 // pred_fallthru
            _
          %460 = vnop
        $region68: #{model1_1_forward.1} parent=63 // pred_fallthru
          _
      $region64: #{model1_1_forward.1} parent=5 // pred_fallthru
        _
      %p461 = scmp.le.s32.totalorder 1, %s20
      %p462 = scmp.lt.s32.totalorder %s20, 9
      %p463 = pnand %p461, %p462
      %p464 = pneg %p463
      // Predicated region
      $region103: #{model1_1_forward.1} parent=5 // pred_check
        _
      $region104: #{model1_1_forward.1} parent=5 // pred_check_branch
        %466 = sbr.rel (%p463) target = $region106
      $region105: #{model1_1_forward.1} parent=5 // pred_region
        %s467 = ssub.s32 %s20, 1
        %s468 = sand.u32 %s73, 1
        %s469 = sand.u32 %s73, 1
        %s470 = smul.addr %s469, 32
        %s471 = scalar_lea.vmem [#allocation3], %s470
        // Predicated region
        $region107: #{model1_1_forward.1} parent=105 // pred_check
          %p472 = pneg %p86
        $region108: #{model1_1_forward.1} parent=105 // pred_check_branch
          %474 = sbr.rel (%p472) target = $region110
        $region109: #{model1_1_forward.1} parent=105 // pred_region
          _
        $region110: #{model1_1_forward.1} parent=105 // pred_fallthru
          _
        %p475 = scmp.lt.s32.totalorder %s29, 0
        %s476 = scalar_select %p475, %s29, 0
        %s477 = smul.addr %s476, 3
        %s478 = smul.addr %s477, 2
        %s479 = scalar_lea.vmem %s0, %s478
        %p480 = pneg %p58
        %p481 = pneg %p55
        %s482 = sand.u32 %s73, 1
        %s483 = sand.u32 %s73, 1
        %s484 = smul.addr %s483, 32
        %s485 = scalar_lea.vmem [#allocation3], %s484
        %p486 = pneg %p86
        %p487 = pneg %p83
        %p488 = pneg %p107
        %p489 = pneg %p104
        %p490 = pneg %p128
        %p491 = pneg %p125
        %p492 = pneg %p149
        %p493 = pneg %p146
        %p494 = pneg %p170
        %p495 = pneg %p167
        %p496 = pneg %p191
        %p497 = pneg %p188
        %p498 = pneg %p212
        %p499 = pneg %p209
        %p500 = pneg %p233
        %p501 = pneg %p230
        %p502 = pneg %p254
        %p503 = pneg %p251
        %p504 = pneg %p275
        %p505 = pneg %p272
        %p506 = pneg %p296
        %p507 = pneg %p293
        %p508 = pneg %p317
        %p509 = pneg %p314
        %p510 = pneg %p343
        %p511 = pneg %p340
        %p512 = scmp.lt.s32.totalorder %s29, 0
        %s513 = scalar_select %p512, %s29, 0
        %s514 = smul.addr %s513, 3
        %s515 = smul.addr %s514, 2
        %s516 = scalar_lea.vmem %s0, %s515
        %s517 = smul.u32 2, %s29
        %s518 = smul.u32 2, %s30
        %p520 = scmp.eq.s32.totalorder %s30, 0
        // Predicated region
        $region111: #{model1_1_forward.1} parent=105 // pred_check
          %p521 = pneg %p520
        $region112: #{model1_1_forward.1} parent=105 // pred_check_branch
          %523 = sbr.rel (%p521) target = $region114
        $region113: #{model1_1_forward.1} parent=105 // pred_region
          %524 = vst [vmem:[#allocation2] sm:$0xff] 0.0
        $region114: #{model1_1_forward.1} parent=105 // pred_fallthru
          _
        %v525 = vld [vmem:[%s471] sm:$0xff]
        %v526 = vld [vmem:[%s471 + $0x8] sm:$0xff]
        %v527 = vld [vmem:[%s471 + $0x10] sm:$0xff]
        %v528 = vld [vmem:[%s471 + $0x18] sm:$0xff]
        %v529 = vunpack.c.l.bf16 %v525
        %v530 = vunpack.c.h.bf16 %v525
        %v531 = vunpack.c.l.bf16 %v526
        %v532 = vunpack.c.h.bf16 %v526
        %v533 = vunpack.c.l.bf16 %v527
        %v534 = vunpack.c.h.bf16 %v527
        %v535 = vunpack.c.l.bf16 %v528
        %v536 = vunpack.c.h.bf16 %v528
        %v537 = vadd.f32 %v529, %v531
        %v538 = vrot.slane %v537, 4
        %v539 = vadd.f32 %v537, %v538
        %v540 = vrot.slane %v539, 2
        %v541 = vadd.f32 %v539, %v540
        %v542 = vrot.slane %v541, 1
        %v543 = vadd.f32 %v541, %v542
        %v544 = vadd.f32 %v530, %v532
        %v545 = vrot.slane %v544, 4
        %v546 = vadd.f32 %v544, %v545
        %v547 = vrot.slane %v546, 2
        %v548 = vadd.f32 %v546, %v547
        %v549 = vrot.slane %v548, 1
        %v550 = vadd.f32 %v548, %v549
        %v551 = vadd.f32 %v533, %v535
        %v552 = vrot.slane %v551, 4
        %v553 = vadd.f32 %v551, %v552
        %v554 = vrot.slane %v553, 2
        %v555 = vadd.f32 %v553, %v554
        %v556 = vrot.slane %v555, 1
        %v557 = vadd.f32 %v555, %v556
        %v558 = vadd.f32 %v534, %v536
        %v559 = vrot.slane %v558, 4
        %v560 = vadd.f32 %v558, %v559
        %v561 = vrot.slane %v560, 2
        %v562 = vadd.f32 %v560, %v561
        %v563 = vrot.slane %v562, 1
        %v564 = vadd.f32 %v562, %v563
        %s565 = smul.u32 %s30, 256
        %v566 = vld [vmem:[#allocation2] sm:$0xff]
        %v567 = vpack.c.bf16 %v543, %v543
        %v568 = vpack.c.bf16 %v550, %v550
        %v569 = vpack.c.bf16 %v557, %v557
        %v570 = vpack.c.bf16 %v564, %v564
        %s571 = sshra.s32 %s565, 3
        %s572 = sand.u32 %s565, 7
        %s573 = smul.u32 %s571, 4
        %s574 = smul.addr %s573, 4
        %s575 = scalar_lea.vmem %s2, %s574
        %v576 = vld [vmem:[%s575] sm:$0xff]
        %v577 = vld [vmem:[%s575 + $0x8] sm:$0xff]
        %v578 = vld [vmem:[%s575 + $0x10] sm:$0xff]
        %v579 = vld [vmem:[%s575 + $0x18] sm:$0xff]
        %v580 = vld [vmem:[%s575 + $0x20] sm:$0xff]
        %v581 = vld [vmem:[%s575 + $0x28] sm:$0xff]
        %v582 = vld [vmem:[%s575 + $0x30] sm:$0xff]
        %v583 = vld [vmem:[%s575 + $0x38] sm:$0xff]
        %v584 = vld [vmem:[%s575 + $0x40] sm:$0xff]
        %v585 = vld [vmem:[%s575 + $0x48] sm:$0xff]
        %v586 = vld [vmem:[%s575 + $0x50] sm:$0xff]
        %v587 = vld [vmem:[%s575 + $0x58] sm:$0xff]
        %v588 = vld [vmem:[%s575 + $0x60] sm:$0xff]
        %v589 = vld [vmem:[%s575 + $0x68] sm:$0xff]
        %v590 = vld [vmem:[%s575 + $0x70] sm:$0xff]
        %v591 = vld [vmem:[%s575 + $0x78] sm:$0xff]
        %v592 = vld [vmem:[%s575 + $0x80] sm:$0xff]
        %v593 = vld [vmem:[%s575 + $0x88] sm:$0xff]
        %v594 = vld [vmem:[%s575 + $0x90] sm:$0xff]
        %v595 = vld [vmem:[%s575 + $0x98] sm:$0xff]
        %v596 = vld [vmem:[%s575 + $0xa0] sm:$0xff]
        %v597 = vld [vmem:[%s575 + $0xa8] sm:$0xff]
        %v598 = vld [vmem:[%s575 + $0xb0] sm:$0xff]
        %v599 = vld [vmem:[%s575 + $0xb8] sm:$0xff]
        %v600 = vld [vmem:[%s575 + $0xc0] sm:$0xff]
        %v601 = vld [vmem:[%s575 + $0xc8] sm:$0xff]
        %v602 = vld [vmem:[%s575 + $0xd0] sm:$0xff]
        %v603 = vld [vmem:[%s575 + $0xd8] sm:$0xff]
        %v604 = vld [vmem:[%s575 + $0xe0] sm:$0xff]
        %v605 = vld [vmem:[%s575 + $0xe8] sm:$0xff]
        %v606 = vld [vmem:[%s575 + $0xf0] sm:$0xff]
        %v607 = vld [vmem:[%s575 + $0xf8] sm:$0xff]
        %v608 = vld [vmem:[%s575 + $0x100] sm:$0xff]
        %v609 = vld [vmem:[%s575 + $0x108] sm:$0xff]
        %v610 = vld [vmem:[%s575 + $0x110] sm:$0xff]
        %v611 = vld [vmem:[%s575 + $0x118] sm:$0xff]
        %v612 = vld [vmem:[%s575 + $0x120] sm:$0xff]
        %v613 = vld [vmem:[%s575 + $0x128] sm:$0xff]
        %v614 = vld [vmem:[%s575 + $0x130] sm:$0xff]
        %v615 = vld [vmem:[%s575 + $0x138] sm:$0xff]
        %v616 = vld [vmem:[%s575 + $0x140] sm:$0xff]
        %v617 = vld [vmem:[%s575 + $0x148] sm:$0xff]
        %v618 = vld [vmem:[%s575 + $0x150] sm:$0xff]
        %v619 = vld [vmem:[%s575 + $0x158] sm:$0xff]
        %v620 = vld [vmem:[%s575 + $0x160] sm:$0xff]
        %v621 = vld [vmem:[%s575 + $0x168] sm:$0xff]
        %v622 = vld [vmem:[%s575 + $0x170] sm:$0xff]
        %v623 = vld [vmem:[%s575 + $0x178] sm:$0xff]
        %v624 = vld [vmem:[%s575 + $0x180] sm:$0xff]
        %v625 = vld [vmem:[%s575 + $0x188] sm:$0xff]
        %v626 = vld [vmem:[%s575 + $0x190] sm:$0xff]
        %v627 = vld [vmem:[%s575 + $0x198] sm:$0xff]
        %v628 = vld [vmem:[%s575 + $0x1a0] sm:$0xff]
        %v629 = vld [vmem:[%s575 + $0x1a8] sm:$0xff]
        %v630 = vld [vmem:[%s575 + $0x1b0] sm:$0xff]
        %v631 = vld [vmem:[%s575 + $0x1b8] sm:$0xff]
        %v632 = vld [vmem:[%s575 + $0x1c0] sm:$0xff]
        %v633 = vld [vmem:[%s575 + $0x1c8] sm:$0xff]
        %v634 = vld [vmem:[%s575 + $0x1d0] sm:$0xff]
        %v635 = vld [vmem:[%s575 + $0x1d8] sm:$0xff]
        %v636 = vld [vmem:[%s575 + $0x1e0] sm:$0xff]
        %v637 = vld [vmem:[%s575 + $0x1e8] sm:$0xff]
        %v638 = vld [vmem:[%s575 + $0x1f0] sm:$0xff]
        %v639 = vld [vmem:[%s575 + $0x1f8] sm:$0xff]
        %v644 = vunpack.c.l.b16 %v567
        %v645 = vunpack.c.l.b16 %v568
        %v646 = vunpack.c.l.b16 %v569
        %v647 = vunpack.c.l.b16 %v570
        %vm648 = vcmask 1041409
        %v649 = vsel %vm648, %v646, %v644
        %v650 = vsel %vm648, %v647, %v645
        %v651 = vpack.c.b16 %v649, %v649
        %v652 = vpack.c.b16 %v650, %v650
        %v719 = vunpack.c.l.b16 %v576
        %v720 = vunpack.c.h.b16 %v576
        %v721 = vunpack.c.l.b16 %v577
        %v722 = vunpack.c.h.b16 %v577
        %v723 = vunpack.c.l.b16 %v578
        %v724 = vunpack.c.h.b16 %v578
        %v725 = vunpack.c.l.b16 %v579
        %v726 = vunpack.c.h.b16 %v579
        %v727 = vunpack.c.l.b16 %v580
        %v728 = vunpack.c.h.b16 %v580
        %v729 = vunpack.c.l.b16 %v581
        %v730 = vunpack.c.h.b16 %v581
        %v731 = vunpack.c.l.b16 %v582
        %v732 = vunpack.c.h.b16 %v582
        %v733 = vunpack.c.l.b16 %v583
        %v734 = vunpack.c.h.b16 %v583
        %v735 = vunpack.c.l.b16 %v584
        %v736 = vunpack.c.h.b16 %v584
        %v737 = vunpack.c.l.b16 %v585
        %v738 = vunpack.c.h.b16 %v585
        %v739 = vunpack.c.l.b16 %v586
        %v740 = vunpack.c.h.b16 %v586
        %v741 = vunpack.c.l.b16 %v587
        %v742 = vunpack.c.h.b16 %v587
        %v743 = vunpack.c.l.b16 %v588
        %v744 = vunpack.c.h.b16 %v588
        %v745 = vunpack.c.l.b16 %v589
        %v746 = vunpack.c.h.b16 %v589
        %v747 = vunpack.c.l.b16 %v590
        %v748 = vunpack.c.h.b16 %v590
        %v749 = vunpack.c.l.b16 %v591
        %v750 = vunpack.c.h.b16 %v591
        %v751 = vunpack.c.l.b16 %v592
        %v752 = vunpack.c.h.b16 %v592
        %v753 = vunpack.c.l.b16 %v593
        %v754 = vunpack.c.h.b16 %v593
        %v755 = vunpack.c.l.b16 %v594
        %v756 = vunpack.c.h.b16 %v594
        %v757 = vunpack.c.l.b16 %v595
        %v758 = vunpack.c.h.b16 %v595
        %v759 = vunpack.c.l.b16 %v596
        %v760 = vunpack.c.h.b16 %v596
        %v761 = vunpack.c.l.b16 %v597
        %v762 = vunpack.c.h.b16 %v597
        %v763 = vunpack.c.l.b16 %v598
        %v764 = vunpack.c.h.b16 %v598
        %v765 = vunpack.c.l.b16 %v599
        %v766 = vunpack.c.h.b16 %v599
        %v767 = vunpack.c.l.b16 %v600
        %v768 = vunpack.c.h.b16 %v600
        %v769 = vunpack.c.l.b16 %v601
        %v770 = vunpack.c.h.b16 %v601
        %v771 = vunpack.c.l.b16 %v602
        %v772 = vunpack.c.h.b16 %v602
        %v773 = vunpack.c.l.b16 %v603
        %v774 = vunpack.c.h.b16 %v603
        %v775 = vunpack.c.l.b16 %v604
        %v776 = vunpack.c.h.b16 %v604
        %v777 = vunpack.c.l.b16 %v605
        %v778 = vunpack.c.h.b16 %v605
        %v779 = vunpack.c.l.b16 %v606
        %v780 = vunpack.c.h.b16 %v606
        %v781 = vunpack.c.l.b16 %v607
        %v782 = vunpack.c.h.b16 %v607
        %v783 = vunpack.c.l.b16 %v608
        %v784 = vunpack.c.h.b16 %v608
        %v785 = vunpack.c.l.b16 %v609
        %v786 = vunpack.c.h.b16 %v609
        %v787 = vunpack.c.l.b16 %v610
        %v788 = vunpack.c.h.b16 %v610
        %v789 = vunpack.c.l.b16 %v611
        %v790 = vunpack.c.h.b16 %v611
        %v791 = vunpack.c.l.b16 %v612
        %v792 = vunpack.c.h.b16 %v612
        %v793 = vunpack.c.l.b16 %v613
        %v794 = vunpack.c.h.b16 %v613
        %v795 = vunpack.c.l.b16 %v614
        %v796 = vunpack.c.h.b16 %v614
        %v797 = vunpack.c.l.b16 %v615
        %v798 = vunpack.c.h.b16 %v615
        %v799 = vunpack.c.l.b16 %v616
        %v800 = vunpack.c.h.b16 %v616
        %v801 = vunpack.c.l.b16 %v617
        %v802 = vunpack.c.h.b16 %v617
        %v803 = vunpack.c.l.b16 %v618
        %v804 = vunpack.c.h.b16 %v618
        %v805 = vunpack.c.l.b16 %v619
        %v806 = vunpack.c.h.b16 %v619
        %v807 = vunpack.c.l.b16 %v620
        %v808 = vunpack.c.h.b16 %v620
        %v809 = vunpack.c.l.b16 %v621
        %v810 = vunpack.c.h.b16 %v621
        %v811 = vunpack.c.l.b16 %v622
        %v812 = vunpack.c.h.b16 %v622
        %v813 = vunpack.c.l.b16 %v623
        %v814 = vunpack.c.h.b16 %v623
        %v815 = vunpack.c.l.b16 %v624
        %v816 = vunpack.c.h.b16 %v624
        %v817 = vunpack.c.l.b16 %v625
        %v818 = vunpack.c.h.b16 %v625
        %v819 = vunpack.c.l.b16 %v626
        %v820 = vunpack.c.h.b16 %v626
        %v821 = vunpack.c.l.b16 %v627
        %v822 = vunpack.c.h.b16 %v627
        %v823 = vunpack.c.l.b16 %v628
        %v824 = vunpack.c.h.b16 %v628
        %v825 = vunpack.c.l.b16 %v629
        %v826 = vunpack.c.h.b16 %v629
        %v827 = vunpack.c.l.b16 %v630
        %v828 = vunpack.c.h.b16 %v630
        %v829 = vunpack.c.l.b16 %v631
        %v830 = vunpack.c.h.b16 %v631
        %v831 = vunpack.c.l.b16 %v632
        %v832 = vunpack.c.h.b16 %v632
        %v833 = vunpack.c.l.b16 %v633
        %v834 = vunpack.c.h.b16 %v633
        %v835 = vunpack.c.l.b16 %v634
        %v836 = vunpack.c.h.b16 %v634
        %v837 = vunpack.c.l.b16 %v635
        %v838 = vunpack.c.h.b16 %v635
        %v839 = vunpack.c.l.b16 %v636
        %v840 = vunpack.c.h.b16 %v636
        %v841 = vunpack.c.l.b16 %v637
        %v842 = vunpack.c.h.b16 %v637
        %v843 = vunpack.c.l.b16 %v638
        %v844 = vunpack.c.h.b16 %v638
        %v845 = vunpack.c.l.b16 %v639
        %v846 = vunpack.c.h.b16 %v639
        %v847 = vpack.c.b16 %v723, %v719
        %v848 = vpack.c.b16 %v724, %v720
        %v849 = vpack.c.b16 %v725, %v721
        %v850 = vpack.c.b16 %v726, %v722
        %v851 = vpack.c.b16 %v731, %v727
        %v852 = vpack.c.b16 %v732, %v728
        %v853 = vpack.c.b16 %v733, %v729
        %v854 = vpack.c.b16 %v734, %v730
        %v855 = vpack.c.b16 %v739, %v735
        %v856 = vpack.c.b16 %v740, %v736
        %v857 = vpack.c.b16 %v741, %v737
        %v858 = vpack.c.b16 %v742, %v738
        %v859 = vpack.c.b16 %v747, %v743
        %v860 = vpack.c.b16 %v748, %v744
        %v861 = vpack.c.b16 %v749, %v745
        %v862 = vpack.c.b16 %v750, %v746
        %v863 = vpack.c.b16 %v755, %v751
        %v864 = vpack.c.b16 %v756, %v752
        %v865 = vpack.c.b16 %v757, %v753
        %v866 = vpack.c.b16 %v758, %v754
        %v867 = vpack.c.b16 %v763, %v759
        %v868 = vpack.c.b16 %v764, %v760
        %v869 = vpack.c.b16 %v765, %v761
        %v870 = vpack.c.b16 %v766, %v762
        %v871 = vpack.c.b16 %v771, %v767
        %v872 = vpack.c.b16 %v772, %v768
        %v873 = vpack.c.b16 %v773, %v769
        %v874 = vpack.c.b16 %v774, %v770
        %v875 = vpack.c.b16 %v779, %v775
        %v876 = vpack.c.b16 %v780, %v776
        %v877 = vpack.c.b16 %v781, %v777
        %v878 = vpack.c.b16 %v782, %v778
        %v879 = vpack.c.b16 %v787, %v783
        %v880 = vpack.c.b16 %v788, %v784
        %v881 = vpack.c.b16 %v789, %v785
        %v882 = vpack.c.b16 %v790, %v786
        %v883 = vpack.c.b16 %v795, %v791
        %v884 = vpack.c.b16 %v796, %v792
        %v885 = vpack.c.b16 %v797, %v793
        %v886 = vpack.c.b16 %v798, %v794
        %v887 = vpack.c.b16 %v803, %v799
        %v888 = vpack.c.b16 %v804, %v800
        %v889 = vpack.c.b16 %v805, %v801
        %v890 = vpack.c.b16 %v806, %v802
        %v891 = vpack.c.b16 %v811, %v807
        %v892 = vpack.c.b16 %v812, %v808
        %v893 = vpack.c.b16 %v813, %v809
        %v894 = vpack.c.b16 %v814, %v810
        %v895 = vpack.c.b16 %v819, %v815
        %v896 = vpack.c.b16 %v820, %v816
        %v897 = vpack.c.b16 %v821, %v817
        %v898 = vpack.c.b16 %v822, %v818
        %v899 = vpack.c.b16 %v827, %v823
        %v900 = vpack.c.b16 %v828, %v824
        %v901 = vpack.c.b16 %v829, %v825
        %v902 = vpack.c.b16 %v830, %v826
        %v903 = vpack.c.b16 %v835, %v831
        %v904 = vpack.c.b16 %v836, %v832
        %v905 = vpack.c.b16 %v837, %v833
        %v906 = vpack.c.b16 %v838, %v834
        %v907 = vpack.c.b16 %v843, %v839
        %v908 = vpack.c.b16 %v844, %v840
        %v909 = vpack.c.b16 %v845, %v841
        %v910 = vpack.c.b16 %v846, %v842
        %975 = vmatprep.subr.bf16.mxu0 %v876
        %976 = vmatpush1.bf16.msra.mxu0 %v875
        %977 = vmatprep.subr.bf16.mxu0 %v872
        %978 = vmatpush1.bf16.msra.mxu0 %v871
        %979 = vmatprep.subr.bf16.mxu0 %v868
        %980 = vmatpush1.bf16.msra.mxu0 %v867
        %981 = vmatprep.subr.bf16.mxu0 %v864
        %982 = vmatpush1.bf16.msra.mxu0 %v863
        %983 = vmatprep.subr.bf16.mxu0 %v860
        %984 = vmatpush1.bf16.msra.mxu0 %v859
        %985 = vmatprep.subr.bf16.mxu0 %v856
        %986 = vmatpush1.bf16.msra.mxu0 %v855
        %987 = vmatprep.subr.bf16.mxu0 %v852
        %988 = vmatpush1.bf16.msra.mxu0 %v851
        %989 = vmatprep.subr.bf16.mxu0 %v848
        %990 = vmatpush1.bf16.msra.mxu0 %v847
        %991 = vmatprep.subr.bf16.mxu0 %v908
        %992 = vmatpush2.bf16.msra.mxu0 %v907
        %993 = vmatprep.subr.bf16.mxu0 %v904
        %994 = vmatpush2.bf16.msra.mxu0 %v903
        %995 = vmatprep.subr.bf16.mxu0 %v900
        %996 = vmatpush2.bf16.msra.mxu0 %v899
        %997 = vmatprep.subr.bf16.mxu0 %v896
        %998 = vmatpush2.bf16.msra.mxu0 %v895
        %999 = vmatprep.subr.bf16.mxu0 %v892
        %1000 = vmatpush2.bf16.msra.mxu0 %v891
        %1001 = vmatprep.subr.bf16.mxu0 %v888
        %1002 = vmatpush2.bf16.msra.mxu0 %v887
        %1003 = vmatprep.subr.bf16.mxu0 %v884
        %1004 = vmatpush2.bf16.msra.mxu0 %v883
        %1005 = vmatprep.subr.bf16.mxu0 %v880
        %1006 = vmatpush2.bf16.msra.mxu0 %v879
        %1007 = vmatprep.mubr.bf16.mxu0 %v652
        %1008 = vmatmul.mubr.bf16.gmra.mxu0 %v651
        %v1009 = vpop.f32.mrf.mxu0
        %v1010 = vadd.f32 0.0, %v1009
        %v1011 = vpop.f32.mrf.mxu0
        %v1012 = vadd.f32 0.0, %v1011
        %v1013 = vpop.f32.mrf.mxu0
        %v1014 = vpop.f32.mrf.mxu0
        %1015 = vdwg.mxu0
        %1016 = vmatprep.subr.bf16.mxu0 %v878
        %1017 = vmatpush1.bf16.msra.mxu0 %v877
        %1018 = vmatprep.subr.bf16.mxu0 %v874
        %1019 = vmatpush1.bf16.msra.mxu0 %v873
        %1020 = vmatprep.subr.bf16.mxu0 %v870
        %1021 = vmatpush1.bf16.msra.mxu0 %v869
        %1022 = vmatprep.subr.bf16.mxu0 %v866
        %1023 = vmatpush1.bf16.msra.mxu0 %v865
        %1024 = vmatprep.subr.bf16.mxu0 %v862
        %1025 = vmatpush1.bf16.msra.mxu0 %v861
        %1026 = vmatprep.subr.bf16.mxu0 %v858
        %1027 = vmatpush1.bf16.msra.mxu0 %v857
        %1028 = vmatprep.subr.bf16.mxu0 %v854
        %1029 = vmatpush1.bf16.msra.mxu0 %v853
        %1030 = vmatprep.subr.bf16.mxu0 %v850
        %1031 = vmatpush1.bf16.msra.mxu0 %v849
        %1032 = vmatprep.subr.bf16.mxu0 %v910
        %1033 = vmatpush2.bf16.msra.mxu0 %v909
        %1034 = vmatprep.subr.bf16.mxu0 %v906
        %1035 = vmatpush2.bf16.msra.mxu0 %v905
        %1036 = vmatprep.subr.bf16.mxu0 %v902
        %1037 = vmatpush2.bf16.msra.mxu0 %v901
        %1038 = vmatprep.subr.bf16.mxu0 %v898
        %1039 = vmatpush2.bf16.msra.mxu0 %v897
        %1040 = vmatprep.subr.bf16.mxu0 %v894
        %1041 = vmatpush2.bf16.msra.mxu0 %v893
        %1042 = vmatprep.subr.bf16.mxu0 %v890
        %1043 = vmatpush2.bf16.msra.mxu0 %v889
        %1044 = vmatprep.subr.bf16.mxu0 %v886
        %1045 = vmatpush2.bf16.msra.mxu0 %v885
        %1046 = vmatprep.subr.bf16.mxu0 %v882
        %1047 = vmatpush2.bf16.msra.mxu0 %v881
        %1048 = vmatprep.mubr.bf16.mxu0 %v652
        %1049 = vmatmul.mubr.bf16.gmra.mxu0 %v651
        %v1050 = vpop.f32.mrf.mxu0
        %v1051 = vadd.f32 0.0, %v1050
        %v1052 = vpop.f32.mrf.mxu0
        %v1053 = vadd.f32 0.0, %v1052
        %v1054 = vpop.f32.mrf.mxu0
        %v1055 = vpop.f32.mrf.mxu0
        %1056 = vdwg.mxu0
        %v1061 = vcombine.low %v1010, %v1012
        %v1062 = vcombine.low %v1051, %v1053
        %v1064 = vunpack.c.l.s4 1983009808
        %v1065 = vunpack.c.0.s8 %v1064
        %v1066 = vlaneseq
        %v1067 = vshrl.u32 %v1066, 7
        %v1068 = vsub.s32 %v1065, %v1067
        %v1069 = vrot.slane %v1061, %v1068
        %v1071 = vunpack.c.l.s4 1983009808
        %v1072 = vunpack.c.0.s8 %v1071
        %v1073 = vlaneseq
        %v1074 = vshrl.u32 %v1073, 7
        %v1075 = vsub.s32 %v1072, %v1074
        %v1076 = vrot.slane %v1062, %v1075
        %v1077 = vcombine.low %v1069, %v1076
        %v1079 = vadd.f32 %v566, %v1077
        %1080 = vst [vmem:[#allocation2] sm:$0xff] %v1079
        %p1081 = scmp.eq.s32.totalorder %s30, 7
        // Predicated region
        $region115: #{model1_1_forward.1} parent=105 // pred_check
          %p1082 = pneg %p1081
        $region116: #{model1_1_forward.1} parent=105 // pred_check_branch
          %1084 = sbr.rel (%p1082) target = $region118
        $region117: #{model1_1_forward.1} parent=105 // pred_region
          %v1085 = vld [vmem:[#allocation2] sm:$0xff]
          %v1086 = vld [vmem:[%s3] sm:$0xf]
          %v1088 = vlaneseq
          %v1089 = vshrl.u32 %v1088, 7
          %v1090 = vsub.s32 0, %v1089
          %v1091 = vrot.slane %v1086, %v1090
          %v1092 = vlaneseq
          %v1093 = vshrl.u32 %v1092, 7
          %v1094 = vsub.s32 1, %v1093
          %v1095 = vrot.slane %v1086, %v1094
          %v1096 = vlaneseq
          %v1097 = vshrl.u32 %v1096, 7
          %v1098 = vsub.s32 2, %v1097
          %v1099 = vrot.slane %v1086, %v1098
          %v1100 = vlaneseq
          %v1101 = vshrl.u32 %v1100, 7
          %v1102 = vsub.s32 3, %v1101
          %v1103 = vrot.slane %v1086, %v1102
          %v1104 = vcombine.low %v1091, %v1095
          %v1105 = vcombine.low %v1099, %v1103
          %v1107 = vunpack.c.l.s4 1983009808
          %v1108 = vunpack.c.0.s8 %v1107
          %v1109 = vlaneseq
          %v1110 = vshrl.u32 %v1109, 7
          %v1111 = vsub.s32 %v1108, %v1110
          %v1112 = vrot.slane %v1104, %v1111
          %v1114 = vunpack.c.l.s4 1983009808
          %v1115 = vunpack.c.0.s8 %v1114
          %v1116 = vlaneseq
          %v1117 = vshrl.u32 %v1116, 7
          %v1118 = vsub.s32 %v1115, %v1117
          %v1119 = vrot.slane %v1105, %v1118
          %v1120 = vcombine.low %v1112, %v1119
          %v1122 = vadd.f32 %v1085, %v1120
          %v1123 = vtanh.pop %v1122
          %v1124 = vld [vmem:[%s516] sm:$0x3f]
          %v1126 = vcombine.high %v1124, %v1124
          %v1128 = vunpack.c.l.s4 1983009808
          %v1129 = vunpack.c.0.s8 %v1128
          %v1130 = vlaneseq
          %v1131 = vshrl.u32 %v1130, 7
          %v1132 = vsub.s32 %v1129, %v1131
          %v1133 = vrot.slane %v1124, %v1132
          %v1135 = vunpack.c.l.s4 1983009808
          %v1136 = vunpack.c.0.s8 %v1135
          %v1137 = vlaneseq
          %v1138 = vshrl.u32 %v1137, 7
          %v1139 = vsub.s32 %v1136, %v1138
          %v1140 = vrot.slane %v1126, %v1139
          %v1141 = vcombine.high %v1133, %v1133
          %v1145 = vpack.c.bf16 %v1133, %v1133
          %v1146 = vpack.c.bf16 %v1141, %v1141
          %v1147 = vpack.c.bf16 %v1140, %v1140
          %v1148 = vld [vmem:[%s4] sm:$0xff]
          %v1149 = vld [vmem:[%s4 + $0x8] sm:$0xff]
          %v1150 = vld [vmem:[%s4 + $0x10] sm:$0xff]
          %v1151 = vld [vmem:[%s4 + $0x18] sm:$0xff]
          %v1152 = vld [vmem:[%s4 + $0x20] sm:$0xff]
          %v1153 = vld [vmem:[%s4 + $0x28] sm:$0xff]
          %v1154 = vld [vmem:[%s4 + $0x30] sm:$0xff]
          %v1155 = vld [vmem:[%s4 + $0x38] sm:$0xff]
          %v1156 = vld [vmem:[%s4 + $0x40] sm:$0xff]
          %v1157 = vld [vmem:[%s4 + $0x48] sm:$0xff]
          %v1158 = vld [vmem:[%s4 + $0x50] sm:$0xff]
          %v1159 = vld [vmem:[%s4 + $0x58] sm:$0xff]
          %v1160 = vld [vmem:[%s4 + $0x60] sm:$0xff]
          %v1161 = vld [vmem:[%s4 + $0x68] sm:$0xff]
          %v1162 = vld [vmem:[%s4 + $0x70] sm:$0xff]
          %v1163 = vld [vmem:[%s4 + $0x78] sm:$0xff]
          %v1164 = vld [vmem:[%s4 + $0x80] sm:$0xff]
          %v1165 = vld [vmem:[%s4 + $0x88] sm:$0xff]
          %v1166 = vld [vmem:[%s4 + $0x90] sm:$0xff]
          %v1167 = vld [vmem:[%s4 + $0x98] sm:$0xff]
          %v1168 = vld [vmem:[%s4 + $0xa0] sm:$0xff]
          %v1169 = vld [vmem:[%s4 + $0xa8] sm:$0xff]
          %v1170 = vld [vmem:[%s4 + $0xb0] sm:$0xff]
          %v1171 = vld [vmem:[%s4 + $0xb8] sm:$0xff]
          %v1172 = vld [vmem:[%s4 + $0xc0] sm:$0xff]
          %v1173 = vld [vmem:[%s4 + $0xc8] sm:$0xff]
          %v1174 = vld [vmem:[%s4 + $0xd0] sm:$0xff]
          %v1175 = vld [vmem:[%s4 + $0xd8] sm:$0xff]
          %v1176 = vld [vmem:[%s4 + $0xe0] sm:$0xff]
          %v1177 = vld [vmem:[%s4 + $0xe8] sm:$0xff]
          %v1178 = vld [vmem:[%s4 + $0xf0] sm:$0xff]
          %v1179 = vld [vmem:[%s4 + $0xf8] sm:$0xff]
          %v1180 = vld [vmem:[%s4 + $0x100] sm:$0xff]
          %v1181 = vld [vmem:[%s4 + $0x108] sm:$0xff]
          %v1182 = vld [vmem:[%s4 + $0x110] sm:$0xff]
          %v1183 = vld [vmem:[%s4 + $0x118] sm:$0xff]
          %v1184 = vld [vmem:[%s4 + $0x120] sm:$0xff]
          %v1185 = vld [vmem:[%s4 + $0x128] sm:$0xff]
          %v1186 = vld [vmem:[%s4 + $0x130] sm:$0xff]
          %v1187 = vld [vmem:[%s4 + $0x138] sm:$0xff]
          %v1188 = vld [vmem:[%s4 + $0x140] sm:$0xff]
          %v1189 = vld [vmem:[%s4 + $0x148] sm:$0xff]
          %v1190 = vld [vmem:[%s4 + $0x150] sm:$0xff]
          %v1191 = vld [vmem:[%s4 + $0x158] sm:$0xff]
          %v1192 = vld [vmem:[%s4 + $0x160] sm:$0xff]
          %v1193 = vld [vmem:[%s4 + $0x168] sm:$0xff]
          %v1194 = vld [vmem:[%s4 + $0x170] sm:$0xff]
          %v1195 = vld [vmem:[%s4 + $0x178] sm:$0xff]
          %v1196 = vld [vmem:[%s4 + $0x180] sm:$0xff]
          %v1197 = vld [vmem:[%s4 + $0x188] sm:$0xff]
          %v1198 = vld [vmem:[%s4 + $0x190] sm:$0xff]
          %v1199 = vld [vmem:[%s4 + $0x198] sm:$0xff]
          %v1200 = vld [vmem:[%s4 + $0x1a0] sm:$0xff]
          %v1201 = vld [vmem:[%s4 + $0x1a8] sm:$0xff]
          %v1202 = vld [vmem:[%s4 + $0x1b0] sm:$0xff]
          %v1203 = vld [vmem:[%s4 + $0x1b8] sm:$0xff]
          %v1204 = vld [vmem:[%s4 + $0x1c0] sm:$0xff]
          %v1205 = vld [vmem:[%s4 + $0x1c8] sm:$0xff]
          %v1206 = vld [vmem:[%s4 + $0x1d0] sm:$0xff]
          %v1207 = vld [vmem:[%s4 + $0x1d8] sm:$0xff]
          %v1208 = vld [vmem:[%s4 + $0x1e0] sm:$0xff]
          %v1209 = vld [vmem:[%s4 + $0x1e8] sm:$0xff]
          %v1210 = vld [vmem:[%s4 + $0x1f0] sm:$0xff]
          %v1211 = vld [vmem:[%s4 + $0x1f8] sm:$0xff]
          %v1212 = vld [vmem:[%s4 + $0x200] sm:$0xff]
          %v1213 = vld [vmem:[%s4 + $0x208] sm:$0xff]
          %v1214 = vld [vmem:[%s4 + $0x210] sm:$0xff]
          %v1215 = vld [vmem:[%s4 + $0x218] sm:$0xff]
          %v1216 = vld [vmem:[%s4 + $0x220] sm:$0xff]
          %v1217 = vld [vmem:[%s4 + $0x228] sm:$0xff]
          %v1218 = vld [vmem:[%s4 + $0x230] sm:$0xff]
          %v1219 = vld [vmem:[%s4 + $0x238] sm:$0xff]
          %v1220 = vld [vmem:[%s4 + $0x240] sm:$0xff]
          %v1221 = vld [vmem:[%s4 + $0x248] sm:$0xff]
          %v1222 = vld [vmem:[%s4 + $0x250] sm:$0xff]
          %v1223 = vld [vmem:[%s4 + $0x258] sm:$0xff]
          %v1224 = vld [vmem:[%s4 + $0x260] sm:$0xff]
          %v1225 = vld [vmem:[%s4 + $0x268] sm:$0xff]
          %v1226 = vld [vmem:[%s4 + $0x270] sm:$0xff]
          %v1227 = vld [vmem:[%s4 + $0x278] sm:$0xff]
          %v1228 = vld [vmem:[%s4 + $0x280] sm:$0xff]
          %v1229 = vld [vmem:[%s4 + $0x288] sm:$0xff]
          %v1230 = vld [vmem:[%s4 + $0x290] sm:$0xff]
          %v1231 = vld [vmem:[%s4 + $0x298] sm:$0xff]
          %v1232 = vld [vmem:[%s4 + $0x2a0] sm:$0xff]
          %v1233 = vld [vmem:[%s4 + $0x2a8] sm:$0xff]
          %v1234 = vld [vmem:[%s4 + $0x2b0] sm:$0xff]
          %v1235 = vld [vmem:[%s4 + $0x2b8] sm:$0xff]
          %v1236 = vld [vmem:[%s4 + $0x2c0] sm:$0xff]
          %v1237 = vld [vmem:[%s4 + $0x2c8] sm:$0xff]
          %v1238 = vld [vmem:[%s4 + $0x2d0] sm:$0xff]
          %v1239 = vld [vmem:[%s4 + $0x2d8] sm:$0xff]
          %v1240 = vld [vmem:[%s4 + $0x2e0] sm:$0xff]
          %v1241 = vld [vmem:[%s4 + $0x2e8] sm:$0xff]
          %v1242 = vld [vmem:[%s4 + $0x2f0] sm:$0xff]
          %v1243 = vld [vmem:[%s4 + $0x2f8] sm:$0xff]
          %v1244 = vld [vmem:[%s5] sm:$0xf]
          %v1246 = vlaneseq
          %v1247 = vshrl.u32 %v1246, 7
          %v1248 = vsub.s32 0, %v1247
          %v1249 = vrot.slane %v1244, %v1248
          %v1250 = vlaneseq
          %v1251 = vshrl.u32 %v1250, 7
          %v1252 = vsub.s32 1, %v1251
          %v1253 = vrot.slane %v1244, %v1252
          %v1254 = vlaneseq
          %v1255 = vshrl.u32 %v1254, 7
          %v1256 = vsub.s32 2, %v1255
          %v1257 = vrot.slane %v1244, %v1256
          %v1258 = vlaneseq
          %v1259 = vshrl.u32 %v1258, 7
          %v1260 = vsub.s32 3, %v1259
          %v1261 = vrot.slane %v1244, %v1260
          %v1362 = vunpack.c.l.b16 %v1148
          %v1363 = vunpack.c.h.b16 %v1148
          %v1364 = vunpack.c.l.b16 %v1149
          %v1365 = vunpack.c.h.b16 %v1149
          %v1366 = vunpack.c.l.b16 %v1150
          %v1367 = vunpack.c.h.b16 %v1150
          %v1368 = vunpack.c.l.b16 %v1151
          %v1369 = vunpack.c.h.b16 %v1151
          %v1370 = vunpack.c.l.b16 %v1152
          %v1371 = vunpack.c.h.b16 %v1152
          %v1372 = vunpack.c.l.b16 %v1153
          %v1373 = vunpack.c.h.b16 %v1153
          %v1374 = vunpack.c.l.b16 %v1154
          %v1375 = vunpack.c.h.b16 %v1154
          %v1376 = vunpack.c.l.b16 %v1155
          %v1377 = vunpack.c.h.b16 %v1155
          %v1378 = vunpack.c.l.b16 %v1156
          %v1379 = vunpack.c.h.b16 %v1156
          %v1380 = vunpack.c.l.b16 %v1157
          %v1381 = vunpack.c.h.b16 %v1157
          %v1382 = vunpack.c.l.b16 %v1158
          %v1383 = vunpack.c.h.b16 %v1158
          %v1384 = vunpack.c.l.b16 %v1159
          %v1385 = vunpack.c.h.b16 %v1159
          %v1386 = vunpack.c.l.b16 %v1160
          %v1387 = vunpack.c.h.b16 %v1160
          %v1388 = vunpack.c.l.b16 %v1161
          %v1389 = vunpack.c.h.b16 %v1161
          %v1390 = vunpack.c.l.b16 %v1162
          %v1391 = vunpack.c.h.b16 %v1162
          %v1392 = vunpack.c.l.b16 %v1163
          %v1393 = vunpack.c.h.b16 %v1163
          %v1394 = vunpack.c.l.b16 %v1164
          %v1395 = vunpack.c.h.b16 %v1164
          %v1396 = vunpack.c.l.b16 %v1165
          %v1397 = vunpack.c.h.b16 %v1165
          %v1398 = vunpack.c.l.b16 %v1166
          %v1399 = vunpack.c.h.b16 %v1166
          %v1400 = vunpack.c.l.b16 %v1167
          %v1401 = vunpack.c.h.b16 %v1167
          %v1402 = vunpack.c.l.b16 %v1168
          %v1403 = vunpack.c.h.b16 %v1168
          %v1404 = vunpack.c.l.b16 %v1169
          %v1405 = vunpack.c.h.b16 %v1169
          %v1406 = vunpack.c.l.b16 %v1170
          %v1407 = vunpack.c.h.b16 %v1170
          %v1408 = vunpack.c.l.b16 %v1171
          %v1409 = vunpack.c.h.b16 %v1171
          %v1410 = vunpack.c.l.b16 %v1172
          %v1411 = vunpack.c.h.b16 %v1172
          %v1412 = vunpack.c.l.b16 %v1173
          %v1413 = vunpack.c.h.b16 %v1173
          %v1414 = vunpack.c.l.b16 %v1174
          %v1415 = vunpack.c.h.b16 %v1174
          %v1416 = vunpack.c.l.b16 %v1175
          %v1417 = vunpack.c.h.b16 %v1175
          %v1418 = vunpack.c.l.b16 %v1176
          %v1419 = vunpack.c.h.b16 %v1176
          %v1420 = vunpack.c.l.b16 %v1177
          %v1421 = vunpack.c.h.b16 %v1177
          %v1422 = vunpack.c.l.b16 %v1178
          %v1423 = vunpack.c.h.b16 %v1178
          %v1424 = vunpack.c.l.b16 %v1179
          %v1425 = vunpack.c.h.b16 %v1179
          %v1426 = vunpack.c.l.b16 %v1180
          %v1427 = vunpack.c.h.b16 %v1180
          %v1428 = vunpack.c.l.b16 %v1181
          %v1429 = vunpack.c.h.b16 %v1181
          %v1430 = vunpack.c.l.b16 %v1182
          %v1431 = vunpack.c.h.b16 %v1182
          %v1432 = vunpack.c.l.b16 %v1183
          %v1433 = vunpack.c.h.b16 %v1183
          %v1434 = vunpack.c.l.b16 %v1184
          %v1435 = vunpack.c.h.b16 %v1184
          %v1436 = vunpack.c.l.b16 %v1185
          %v1437 = vunpack.c.h.b16 %v1185
          %v1438 = vunpack.c.l.b16 %v1186
          %v1439 = vunpack.c.h.b16 %v1186
          %v1440 = vunpack.c.l.b16 %v1187
          %v1441 = vunpack.c.h.b16 %v1187
          %v1442 = vunpack.c.l.b16 %v1188
          %v1443 = vunpack.c.h.b16 %v1188
          %v1444 = vunpack.c.l.b16 %v1189
          %v1445 = vunpack.c.h.b16 %v1189
          %v1446 = vunpack.c.l.b16 %v1190
          %v1447 = vunpack.c.h.b16 %v1190
          %v1448 = vunpack.c.l.b16 %v1191
          %v1449 = vunpack.c.h.b16 %v1191
          %v1450 = vunpack.c.l.b16 %v1192
          %v1451 = vunpack.c.h.b16 %v1192
          %v1452 = vunpack.c.l.b16 %v1193
          %v1453 = vunpack.c.h.b16 %v1193
          %v1454 = vunpack.c.l.b16 %v1194
          %v1455 = vunpack.c.h.b16 %v1194
          %v1456 = vunpack.c.l.b16 %v1195
          %v1457 = vunpack.c.h.b16 %v1195
          %v1458 = vunpack.c.l.b16 %v1196
          %v1459 = vunpack.c.h.b16 %v1196
          %v1460 = vunpack.c.l.b16 %v1197
          %v1461 = vunpack.c.h.b16 %v1197
          %v1462 = vunpack.c.l.b16 %v1198
          %v1463 = vunpack.c.h.b16 %v1198
          %v1464 = vunpack.c.l.b16 %v1199
          %v1465 = vunpack.c.h.b16 %v1199
          %v1466 = vunpack.c.l.b16 %v1200
          %v1467 = vunpack.c.h.b16 %v1200
          %v1468 = vunpack.c.l.b16 %v1201
          %v1469 = vunpack.c.h.b16 %v1201
          %v1470 = vunpack.c.l.b16 %v1202
          %v1471 = vunpack.c.h.b16 %v1202
          %v1472 = vunpack.c.l.b16 %v1203
          %v1473 = vunpack.c.h.b16 %v1203
          %v1474 = vunpack.c.l.b16 %v1204
          %v1475 = vunpack.c.h.b16 %v1204
          %v1476 = vunpack.c.l.b16 %v1205
          %v1477 = vunpack.c.h.b16 %v1205
          %v1478 = vunpack.c.l.b16 %v1206
          %v1479 = vunpack.c.h.b16 %v1206
          %v1480 = vunpack.c.l.b16 %v1207
          %v1481 = vunpack.c.h.b16 %v1207
          %v1482 = vunpack.c.l.b16 %v1208
          %v1483 = vunpack.c.h.b16 %v1208
          %v1484 = vunpack.c.l.b16 %v1209
          %v1485 = vunpack.c.h.b16 %v1209
          %v1486 = vunpack.c.l.b16 %v1210
          %v1487 = vunpack.c.h.b16 %v1210
          %v1488 = vunpack.c.l.b16 %v1211
          %v1489 = vunpack.c.h.b16 %v1211
          %v1490 = vunpack.c.l.b16 %v1212
          %v1491 = vunpack.c.h.b16 %v1212
          %v1492 = vunpack.c.l.b16 %v1213
          %v1493 = vunpack.c.h.b16 %v1213
          %v1494 = vunpack.c.l.b16 %v1214
          %v1495 = vunpack.c.h.b16 %v1214
          %v1496 = vunpack.c.l.b16 %v1215
          %v1497 = vunpack.c.h.b16 %v1215
          %v1498 = vunpack.c.l.b16 %v1216
          %v1499 = vunpack.c.h.b16 %v1216
          %v1500 = vunpack.c.l.b16 %v1217
          %v1501 = vunpack.c.h.b16 %v1217
          %v1502 = vunpack.c.l.b16 %v1218
          %v1503 = vunpack.c.h.b16 %v1218
          %v1504 = vunpack.c.l.b16 %v1219
          %v1505 = vunpack.c.h.b16 %v1219
          %v1506 = vunpack.c.l.b16 %v1220
          %v1507 = vunpack.c.h.b16 %v1220
          %v1508 = vunpack.c.l.b16 %v1221
          %v1509 = vunpack.c.h.b16 %v1221
          %v1510 = vunpack.c.l.b16 %v1222
          %v1511 = vunpack.c.h.b16 %v1222
          %v1512 = vunpack.c.l.b16 %v1223
          %v1513 = vunpack.c.h.b16 %v1223
          %v1514 = vunpack.c.l.b16 %v1224
          %v1515 = vunpack.c.h.b16 %v1224
          %v1516 = vunpack.c.l.b16 %v1225
          %v1517 = vunpack.c.h.b16 %v1225
          %v1518 = vunpack.c.l.b16 %v1226
          %v1519 = vunpack.c.h.b16 %v1226
          %v1520 = vunpack.c.l.b16 %v1227
          %v1521 = vunpack.c.h.b16 %v1227
          %v1522 = vunpack.c.l.b16 %v1228
          %v1523 = vunpack.c.h.b16 %v1228
          %v1524 = vunpack.c.l.b16 %v1229
          %v1525 = vunpack.c.h.b16 %v1229
          %v1526 = vunpack.c.l.b16 %v1230
          %v1527 = vunpack.c.h.b16 %v1230
          %v1528 = vunpack.c.l.b16 %v1231
          %v1529 = vunpack.c.h.b16 %v1231
          %v1530 = vunpack.c.l.b16 %v1232
          %v1531 = vunpack.c.h.b16 %v1232
          %v1532 = vunpack.c.l.b16 %v1233
          %v1533 = vunpack.c.h.b16 %v1233
          %v1534 = vunpack.c.l.b16 %v1234
          %v1535 = vunpack.c.h.b16 %v1234
          %v1536 = vunpack.c.l.b16 %v1235
          %v1537 = vunpack.c.h.b16 %v1235
          %v1538 = vunpack.c.l.b16 %v1236
          %v1539 = vunpack.c.h.b16 %v1236
          %v1540 = vunpack.c.l.b16 %v1237
          %v1541 = vunpack.c.h.b16 %v1237
          %v1542 = vunpack.c.l.b16 %v1238
          %v1543 = vunpack.c.h.b16 %v1238
          %v1544 = vunpack.c.l.b16 %v1239
          %v1545 = vunpack.c.h.b16 %v1239
          %v1546 = vunpack.c.l.b16 %v1240
          %v1547 = vunpack.c.h.b16 %v1240
          %v1548 = vunpack.c.l.b16 %v1241
          %v1549 = vunpack.c.h.b16 %v1241
          %v1550 = vunpack.c.l.b16 %v1242
          %v1551 = vunpack.c.h.b16 %v1242
          %v1552 = vunpack.c.l.b16 %v1243
          %v1553 = vunpack.c.h.b16 %v1243
          %v1554 = vpack.c.b16 %v1366, %v1362
          %v1555 = vpack.c.b16 %v1367, %v1363
          %v1556 = vpack.c.b16 %v1368, %v1364
          %v1557 = vpack.c.b16 %v1369, %v1365
          %v1558 = vpack.c.b16 %v1374, %v1370
          %v1559 = vpack.c.b16 %v1375, %v1371
          %v1560 = vpack.c.b16 %v1376, %v1372
          %v1561 = vpack.c.b16 %v1377, %v1373
          %v1562 = vpack.c.b16 %v1382, %v1378
          %v1563 = vpack.c.b16 %v1383, %v1379
          %v1564 = vpack.c.b16 %v1384, %v1380
          %v1565 = vpack.c.b16 %v1385, %v1381
          %v1566 = vpack.c.b16 %v1390, %v1386
          %v1567 = vpack.c.b16 %v1391, %v1387
          %v1568 = vpack.c.b16 %v1392, %v1388
          %v1569 = vpack.c.b16 %v1393, %v1389
          %v1570 = vpack.c.b16 %v1398, %v1394
          %v1571 = vpack.c.b16 %v1399, %v1395
          %v1572 = vpack.c.b16 %v1400, %v1396
          %v1573 = vpack.c.b16 %v1401, %v1397
          %v1574 = vpack.c.b16 %v1406, %v1402
          %v1575 = vpack.c.b16 %v1407, %v1403
          %v1576 = vpack.c.b16 %v1408, %v1404
          %v1577 = vpack.c.b16 %v1409, %v1405
          %v1578 = vpack.c.b16 %v1414, %v1410
          %v1579 = vpack.c.b16 %v1415, %v1411
          %v1580 = vpack.c.b16 %v1416, %v1412
          %v1581 = vpack.c.b16 %v1417, %v1413
          %v1582 = vpack.c.b16 %v1422, %v1418
          %v1583 = vpack.c.b16 %v1423, %v1419
          %v1584 = vpack.c.b16 %v1424, %v1420
          %v1585 = vpack.c.b16 %v1425, %v1421
          %v1586 = vpack.c.b16 %v1430, %v1426
          %v1587 = vpack.c.b16 %v1431, %v1427
          %v1588 = vpack.c.b16 %v1432, %v1428
          %v1589 = vpack.c.b16 %v1433, %v1429
          %v1590 = vpack.c.b16 %v1438, %v1434
          %v1591 = vpack.c.b16 %v1439, %v1435
          %v1592 = vpack.c.b16 %v1440, %v1436
          %v1593 = vpack.c.b16 %v1441, %v1437
          %v1594 = vpack.c.b16 %v1446, %v1442
          %v1595 = vpack.c.b16 %v1447, %v1443
          %v1596 = vpack.c.b16 %v1448, %v1444
          %v1597 = vpack.c.b16 %v1449, %v1445
          %v1598 = vpack.c.b16 %v1454, %v1450
          %v1599 = vpack.c.b16 %v1455, %v1451
          %v1600 = vpack.c.b16 %v1456, %v1452
          %v1601 = vpack.c.b16 %v1457, %v1453
          %v1602 = vpack.c.b16 %v1462, %v1458
          %v1603 = vpack.c.b16 %v1463, %v1459
          %v1604 = vpack.c.b16 %v1464, %v1460
          %v1605 = vpack.c.b16 %v1465, %v1461
          %v1606 = vpack.c.b16 %v1470, %v1466
          %v1607 = vpack.c.b16 %v1471, %v1467
          %v1608 = vpack.c.b16 %v1472, %v1468
          %v1609 = vpack.c.b16 %v1473, %v1469
          %v1610 = vpack.c.b16 %v1478, %v1474
          %v1611 = vpack.c.b16 %v1479, %v1475
          %v1612 = vpack.c.b16 %v1480, %v1476
          %v1613 = vpack.c.b16 %v1481, %v1477
          %v1614 = vpack.c.b16 %v1486, %v1482
          %v1615 = vpack.c.b16 %v1487, %v1483
          %v1616 = vpack.c.b16 %v1488, %v1484
          %v1617 = vpack.c.b16 %v1489, %v1485
          %v1618 = vpack.c.b16 %v1494, %v1490
          %v1619 = vpack.c.b16 %v1495, %v1491
          %v1620 = vpack.c.b16 %v1496, %v1492
          %v1621 = vpack.c.b16 %v1497, %v1493
          %v1622 = vpack.c.b16 %v1502, %v1498
          %v1623 = vpack.c.b16 %v1503, %v1499
          %v1624 = vpack.c.b16 %v1504, %v1500
          %v1625 = vpack.c.b16 %v1505, %v1501
          %v1626 = vpack.c.b16 %v1510, %v1506
          %v1627 = vpack.c.b16 %v1511, %v1507
          %v1628 = vpack.c.b16 %v1512, %v1508
          %v1629 = vpack.c.b16 %v1513, %v1509
          %v1630 = vpack.c.b16 %v1518, %v1514
          %v1631 = vpack.c.b16 %v1519, %v1515
          %v1632 = vpack.c.b16 %v1520, %v1516
          %v1633 = vpack.c.b16 %v1521, %v1517
          %v1634 = vpack.c.b16 %v1526, %v1522
          %v1635 = vpack.c.b16 %v1527, %v1523
          %v1636 = vpack.c.b16 %v1528, %v1524
          %v1637 = vpack.c.b16 %v1529, %v1525
          %v1638 = vpack.c.b16 %v1534, %v1530
          %v1639 = vpack.c.b16 %v1535, %v1531
          %v1640 = vpack.c.b16 %v1536, %v1532
          %v1641 = vpack.c.b16 %v1537, %v1533
          %v1642 = vpack.c.b16 %v1542, %v1538
          %v1643 = vpack.c.b16 %v1543, %v1539
          %v1644 = vpack.c.b16 %v1544, %v1540
          %v1645 = vpack.c.b16 %v1545, %v1541
          %v1646 = vpack.c.b16 %v1550, %v1546
          %v1647 = vpack.c.b16 %v1551, %v1547
          %v1648 = vpack.c.b16 %v1552, %v1548
          %v1649 = vpack.c.b16 %v1553, %v1549
          %1746 = vmatprep.subr.bf16.mxu0 %v1583
          %1747 = vmatpush1.bf16.msra.mxu0 %v1582
          %1748 = vmatprep.subr.bf16.mxu0 %v1579
          %1749 = vmatpush1.bf16.msra.mxu0 %v1578
          %1750 = vmatprep.subr.bf16.mxu0 %v1575
          %1751 = vmatpush1.bf16.msra.mxu0 %v1574
          %1752 = vmatprep.subr.bf16.mxu0 %v1571
          %1753 = vmatpush1.bf16.msra.mxu0 %v1570
          %1754 = vmatprep.subr.bf16.mxu0 %v1567
          %1755 = vmatpush1.bf16.msra.mxu0 %v1566
          %1756 = vmatprep.subr.bf16.mxu0 %v1563
          %1757 = vmatpush1.bf16.msra.mxu0 %v1562
          %1758 = vmatprep.subr.bf16.mxu0 %v1559
          %1759 = vmatpush1.bf16.msra.mxu0 %v1558
          %1760 = vmatprep.subr.bf16.mxu0 %v1555
          %1761 = vmatpush1.bf16.msra.mxu0 %v1554
          %1762 = vmatprep.subr.bf16.mxu0 %v1615
          %1763 = vmatpush2.bf16.msra.mxu0 %v1614
          %1764 = vmatprep.subr.bf16.mxu0 %v1611
          %1765 = vmatpush2.bf16.msra.mxu0 %v1610
          %1766 = vmatprep.subr.bf16.mxu0 %v1607
          %1767 = vmatpush2.bf16.msra.mxu0 %v1606
          %1768 = vmatprep.subr.bf16.mxu0 %v1603
          %1769 = vmatpush2.bf16.msra.mxu0 %v1602
          %1770 = vmatprep.subr.bf16.mxu0 %v1599
          %1771 = vmatpush2.bf16.msra.mxu0 %v1598
          %1772 = vmatprep.subr.bf16.mxu0 %v1595
          %1773 = vmatpush2.bf16.msra.mxu0 %v1594
          %1774 = vmatprep.subr.bf16.mxu0 %v1591
          %1775 = vmatpush2.bf16.msra.mxu0 %v1590
          %1776 = vmatprep.subr.bf16.mxu0 %v1587
          %1777 = vmatpush2.bf16.msra.mxu0 %v1586
          %1778 = vmatprep.mubr.bf16.mxu0 %v1146
          %1779 = vmatmul.mubr.bf16.gmra.mxu0 %v1145
          %v1780 = vpop.f32.mrf.mxu0
          %v1781 = vadd.f32 %v1249, %v1780
          %v1782 = vpop.f32.mrf.mxu0
          %v1783 = vadd.f32 %v1253, %v1782
          %v1784 = vpop.f32.mrf.mxu0
          %v1785 = vpop.f32.mrf.mxu0
          %1786 = vdwg.mxu0
          %1787 = vmatprep.subr.bf16.mxu0 %v1647
          %1788 = vmatpush1.bf16.msra.mxu0 %v1646
          %1789 = vmatprep.subr.bf16.mxu0 %v1643
          %1790 = vmatpush1.bf16.msra.mxu0 %v1642
          %1791 = vmatprep.subr.bf16.mxu0 %v1639
          %1792 = vmatpush1.bf16.msra.mxu0 %v1638
          %1793 = vmatprep.subr.bf16.mxu0 %v1635
          %1794 = vmatpush1.bf16.msra.mxu0 %v1634
          %1795 = vmatprep.subr.bf16.mxu0 %v1631
          %1796 = vmatpush1.bf16.msra.mxu0 %v1630
          %1797 = vmatprep.subr.bf16.mxu0 %v1627
          %1798 = vmatpush1.bf16.msra.mxu0 %v1626
          %1799 = vmatprep.subr.bf16.mxu0 %v1623
          %1800 = vmatpush1.bf16.msra.mxu0 %v1622
          %1801 = vmatprep.subr.bf16.mxu0 %v1619
          %1802 = vmatpush1.bf16.msra.mxu0 %v1618
          %1803 = vmatprep.subr.bf16.mxu0 0
          %1804 = vmatpush2.bf16.msra.mxu0 0
          %1805 = vmatprep.subr.bf16.mxu0 0
          %1806 = vmatpush2.bf16.msra.mxu0 0
          %1807 = vmatprep.subr.bf16.mxu0 0
          %1808 = vmatpush2.bf16.msra.mxu0 0
          %1809 = vmatprep.subr.bf16.mxu0 0
          %1810 = vmatpush2.bf16.msra.mxu0 0
          %1811 = vmatprep.subr.bf16.mxu0 0
          %1812 = vmatpush2.bf16.msra.mxu0 0
          %1813 = vmatprep.subr.bf16.mxu0 0
          %1814 = vmatpush2.bf16.msra.mxu0 0
          %1815 = vmatprep.subr.bf16.mxu0 0
          %1816 = vmatpush2.bf16.msra.mxu0 0
          %1817 = vmatprep.subr.bf16.mxu0 0
          %1818 = vmatpush2.bf16.msra.mxu0 0
          %1819 = vmatprep.mubr.bf16.mxu0 0
          %1820 = vmatmul.mubr.bf16.gmra.mxu0 %v1147
          %v1821 = vpop.f32.mrf.mxu0
          %v1822 = vadd.f32 %v1781, %v1821
          %v1823 = vpop.f32.mrf.mxu0
          %v1824 = vadd.f32 %v1783, %v1823
          %v1825 = vpop.f32.mrf.mxu0
          %v1826 = vpop.f32.mrf.mxu0
          %1827 = vdwg.mxu0
          %1828 = vmatprep.subr.bf16.mxu0 %v1585
          %1829 = vmatpush1.bf16.msra.mxu0 %v1584
          %1830 = vmatprep.subr.bf16.mxu0 %v1581
          %1831 = vmatpush1.bf16.msra.mxu0 %v1580
          %1832 = vmatprep.subr.bf16.mxu0 %v1577
          %1833 = vmatpush1.bf16.msra.mxu0 %v1576
          %1834 = vmatprep.subr.bf16.mxu0 %v1573
          %1835 = vmatpush1.bf16.msra.mxu0 %v1572
          %1836 = vmatprep.subr.bf16.mxu0 %v1569
          %1837 = vmatpush1.bf16.msra.mxu0 %v1568
          %1838 = vmatprep.subr.bf16.mxu0 %v1565
          %1839 = vmatpush1.bf16.msra.mxu0 %v1564
          %1840 = vmatprep.subr.bf16.mxu0 %v1561
          %1841 = vmatpush1.bf16.msra.mxu0 %v1560
          %1842 = vmatprep.subr.bf16.mxu0 %v1557
          %1843 = vmatpush1.bf16.msra.mxu0 %v1556
          %1844 = vmatprep.subr.bf16.mxu0 %v1617
          %1845 = vmatpush2.bf16.msra.mxu0 %v1616
          %1846 = vmatprep.subr.bf16.mxu0 %v1613
          %1847 = vmatpush2.bf16.msra.mxu0 %v1612
          %1848 = vmatprep.subr.bf16.mxu0 %v1609
          %1849 = vmatpush2.bf16.msra.mxu0 %v1608
          %1850 = vmatprep.subr.bf16.mxu0 %v1605
          %1851 = vmatpush2.bf16.msra.mxu0 %v1604
          %1852 = vmatprep.subr.bf16.mxu0 %v1601
          %1853 = vmatpush2.bf16.msra.mxu0 %v1600
          %1854 = vmatprep.subr.bf16.mxu0 %v1597
          %1855 = vmatpush2.bf16.msra.mxu0 %v1596
          %1856 = vmatprep.subr.bf16.mxu0 %v1593
          %1857 = vmatpush2.bf16.msra.mxu0 %v1592
          %1858 = vmatprep.subr.bf16.mxu0 %v1589
          %1859 = vmatpush2.bf16.msra.mxu0 %v1588
          %1860 = vmatprep.mubr.bf16.mxu0 %v1146
          %1861 = vmatmul.mubr.bf16.gmra.mxu0 %v1145
          %v1862 = vpop.f32.mrf.mxu0
          %v1863 = vadd.f32 %v1257, %v1862
          %v1864 = vpop.f32.mrf.mxu0
          %v1865 = vadd.f32 %v1261, %v1864
          %v1866 = vpop.f32.mrf.mxu0
          %v1867 = vpop.f32.mrf.mxu0
          %1868 = vdwg.mxu0
          %1869 = vmatprep.subr.bf16.mxu0 %v1649
          %1870 = vmatpush1.bf16.msra.mxu0 %v1648
          %1871 = vmatprep.subr.bf16.mxu0 %v1645
          %1872 = vmatpush1.bf16.msra.mxu0 %v1644
          %1873 = vmatprep.subr.bf16.mxu0 %v1641
          %1874 = vmatpush1.bf16.msra.mxu0 %v1640
          %1875 = vmatprep.subr.bf16.mxu0 %v1637
          %1876 = vmatpush1.bf16.msra.mxu0 %v1636
          %1877 = vmatprep.subr.bf16.mxu0 %v1633
          %1878 = vmatpush1.bf16.msra.mxu0 %v1632
          %1879 = vmatprep.subr.bf16.mxu0 %v1629
          %1880 = vmatpush1.bf16.msra.mxu0 %v1628
          %1881 = vmatprep.subr.bf16.mxu0 %v1625
          %1882 = vmatpush1.bf16.msra.mxu0 %v1624
          %1883 = vmatprep.subr.bf16.mxu0 %v1621
          %1884 = vmatpush1.bf16.msra.mxu0 %v1620
          %1885 = vmatprep.subr.bf16.mxu0 0
          %1886 = vmatpush2.bf16.msra.mxu0 0
          %1887 = vmatprep.subr.bf16.mxu0 0
          %1888 = vmatpush2.bf16.msra.mxu0 0
          %1889 = vmatprep.subr.bf16.mxu0 0
          %1890 = vmatpush2.bf16.msra.mxu0 0
          %1891 = vmatprep.subr.bf16.mxu0 0
          %1892 = vmatpush2.bf16.msra.mxu0 0
          %1893 = vmatprep.subr.bf16.mxu0 0
          %1894 = vmatpush2.bf16.msra.mxu0 0
          %1895 = vmatprep.subr.bf16.mxu0 0
          %1896 = vmatpush2.bf16.msra.mxu0 0
          %1897 = vmatprep.subr.bf16.mxu0 0
          %1898 = vmatpush2.bf16.msra.mxu0 0
          %1899 = vmatprep.subr.bf16.mxu0 0
          %1900 = vmatpush2.bf16.msra.mxu0 0
          %1901 = vmatprep.mubr.bf16.mxu0 0
          %1902 = vmatmul.mubr.bf16.gmra.mxu0 %v1147
          %v1903 = vpop.f32.mrf.mxu0
          %v1904 = vadd.f32 %v1863, %v1903
          %v1905 = vpop.f32.mrf.mxu0
          %v1906 = vadd.f32 %v1865, %v1905
          %v1907 = vpop.f32.mrf.mxu0
          %v1908 = vpop.f32.mrf.mxu0
          %1909 = vdwg.mxu0
          %v1910 = vtanh.pop %v1822
          %v1911 = vtanh.pop %v1824
          %v1912 = vtanh.pop %v1904
          %v1913 = vtanh.pop %v1906
          %v1914 = vpack.c.bf16 %v1910, %v1910
          %v1915 = vpack.c.bf16 %v1911, %v1911
          %v1916 = vpack.c.bf16 %v1912, %v1912
          %v1917 = vpack.c.bf16 %v1913, %v1913
          %v1918 = vld [vmem:[%s6] sm:$0xff]
          %v1919 = vld [vmem:[%s6 + $0x8] sm:$0xff]
          %v1920 = vld [vmem:[%s6 + $0x10] sm:$0xff]
          %v1921 = vld [vmem:[%s6 + $0x18] sm:$0xff]
          %v1922 = vld [vmem:[%s6 + $0x20] sm:$0xff]
          %v1923 = vld [vmem:[%s6 + $0x28] sm:$0xff]
          %v1924 = vld [vmem:[%s6 + $0x30] sm:$0xff]
          %v1925 = vld [vmem:[%s6 + $0x38] sm:$0xff]
          %v1926 = vld [vmem:[%s6 + $0x40] sm:$0xff]
          %v1927 = vld [vmem:[%s6 + $0x48] sm:$0xff]
          %v1928 = vld [vmem:[%s6 + $0x50] sm:$0xff]
          %v1929 = vld [vmem:[%s6 + $0x58] sm:$0xff]
          %v1930 = vld [vmem:[%s6 + $0x60] sm:$0xff]
          %v1931 = vld [vmem:[%s6 + $0x68] sm:$0xff]
          %v1932 = vld [vmem:[%s6 + $0x70] sm:$0xff]
          %v1933 = vld [vmem:[%s6 + $0x78] sm:$0xff]
          %v1934 = vld [vmem:[%s6 + $0x80] sm:$0xff]
          %v1935 = vld [vmem:[%s6 + $0x88] sm:$0xff]
          %v1936 = vld [vmem:[%s6 + $0x90] sm:$0xff]
          %v1937 = vld [vmem:[%s6 + $0x98] sm:$0xff]
          %v1938 = vld [vmem:[%s6 + $0xa0] sm:$0xff]
          %v1939 = vld [vmem:[%s6 + $0xa8] sm:$0xff]
          %v1940 = vld [vmem:[%s6 + $0xb0] sm:$0xff]
          %v1941 = vld [vmem:[%s6 + $0xb8] sm:$0xff]
          %v1942 = vld [vmem:[%s6 + $0xc0] sm:$0xff]
          %v1943 = vld [vmem:[%s6 + $0xc8] sm:$0xff]
          %v1944 = vld [vmem:[%s6 + $0xd0] sm:$0xff]
          %v1945 = vld [vmem:[%s6 + $0xd8] sm:$0xff]
          %v1946 = vld [vmem:[%s6 + $0xe0] sm:$0xff]
          %v1947 = vld [vmem:[%s6 + $0xe8] sm:$0xff]
          %v1948 = vld [vmem:[%s6 + $0xf0] sm:$0xff]
          %v1949 = vld [vmem:[%s6 + $0xf8] sm:$0xff]
          %v1950 = vld [vmem:[%s6 + $0x100] sm:$0xff]
          %v1951 = vld [vmem:[%s6 + $0x108] sm:$0xff]
          %v1952 = vld [vmem:[%s6 + $0x110] sm:$0xff]
          %v1953 = vld [vmem:[%s6 + $0x118] sm:$0xff]
          %v1954 = vld [vmem:[%s6 + $0x120] sm:$0xff]
          %v1955 = vld [vmem:[%s6 + $0x128] sm:$0xff]
          %v1956 = vld [vmem:[%s6 + $0x130] sm:$0xff]
          %v1957 = vld [vmem:[%s6 + $0x138] sm:$0xff]
          %v1958 = vld [vmem:[%s6 + $0x140] sm:$0xff]
          %v1959 = vld [vmem:[%s6 + $0x148] sm:$0xff]
          %v1960 = vld [vmem:[%s6 + $0x150] sm:$0xff]
          %v1961 = vld [vmem:[%s6 + $0x158] sm:$0xff]
          %v1962 = vld [vmem:[%s6 + $0x160] sm:$0xff]
          %v1963 = vld [vmem:[%s6 + $0x168] sm:$0xff]
          %v1964 = vld [vmem:[%s6 + $0x170] sm:$0xff]
          %v1965 = vld [vmem:[%s6 + $0x178] sm:$0xff]
          %v1966 = vld [vmem:[%s6 + $0x180] sm:$0xff]
          %v1967 = vld [vmem:[%s6 + $0x188] sm:$0xff]
          %v1968 = vld [vmem:[%s6 + $0x190] sm:$0xff]
          %v1969 = vld [vmem:[%s6 + $0x198] sm:$0xff]
          %v1970 = vld [vmem:[%s6 + $0x1a0] sm:$0xff]
          %v1971 = vld [vmem:[%s6 + $0x1a8] sm:$0xff]
          %v1972 = vld [vmem:[%s6 + $0x1b0] sm:$0xff]
          %v1973 = vld [vmem:[%s6 + $0x1b8] sm:$0xff]
          %v1974 = vld [vmem:[%s6 + $0x1c0] sm:$0xff]
          %v1975 = vld [vmem:[%s6 + $0x1c8] sm:$0xff]
          %v1976 = vld [vmem:[%s6 + $0x1d0] sm:$0xff]
          %v1977 = vld [vmem:[%s6 + $0x1d8] sm:$0xff]
          %v1978 = vld [vmem:[%s6 + $0x1e0] sm:$0xff]
          %v1979 = vld [vmem:[%s6 + $0x1e8] sm:$0xff]
          %v1980 = vld [vmem:[%s6 + $0x1f0] sm:$0xff]
          %v1981 = vld [vmem:[%s6 + $0x1f8] sm:$0xff]
          %v1982 = vld [vmem:[%s6 + $0x200] sm:$0xff]
          %v1983 = vld [vmem:[%s6 + $0x208] sm:$0xff]
          %v1984 = vld [vmem:[%s6 + $0x210] sm:$0xff]
          %v1985 = vld [vmem:[%s6 + $0x218] sm:$0xff]
          %v1986 = vld [vmem:[%s6 + $0x220] sm:$0xff]
          %v1987 = vld [vmem:[%s6 + $0x228] sm:$0xff]
          %v1988 = vld [vmem:[%s6 + $0x230] sm:$0xff]
          %v1989 = vld [vmem:[%s6 + $0x238] sm:$0xff]
          %v1990 = vld [vmem:[%s6 + $0x240] sm:$0xff]
          %v1991 = vld [vmem:[%s6 + $0x248] sm:$0xff]
          %v1992 = vld [vmem:[%s6 + $0x250] sm:$0xff]
          %v1993 = vld [vmem:[%s6 + $0x258] sm:$0xff]
          %v1994 = vld [vmem:[%s6 + $0x260] sm:$0xff]
          %v1995 = vld [vmem:[%s6 + $0x268] sm:$0xff]
          %v1996 = vld [vmem:[%s6 + $0x270] sm:$0xff]
          %v1997 = vld [vmem:[%s6 + $0x278] sm:$0xff]
          %v1998 = vld [vmem:[%s6 + $0x280] sm:$0xff]
          %v1999 = vld [vmem:[%s6 + $0x288] sm:$0xff]
          %v2000 = vld [vmem:[%s6 + $0x290] sm:$0xff]
          %v2001 = vld [vmem:[%s6 + $0x298] sm:$0xff]
          %v2002 = vld [vmem:[%s6 + $0x2a0] sm:$0xff]
          %v2003 = vld [vmem:[%s6 + $0x2a8] sm:$0xff]
          %v2004 = vld [vmem:[%s6 + $0x2b0] sm:$0xff]
          %v2005 = vld [vmem:[%s6 + $0x2b8] sm:$0xff]
          %v2006 = vld [vmem:[%s6 + $0x2c0] sm:$0xff]
          %v2007 = vld [vmem:[%s6 + $0x2c8] sm:$0xff]
          %v2008 = vld [vmem:[%s6 + $0x2d0] sm:$0xff]
          %v2009 = vld [vmem:[%s6 + $0x2d8] sm:$0xff]
          %v2010 = vld [vmem:[%s6 + $0x2e0] sm:$0xff]
          %v2011 = vld [vmem:[%s6 + $0x2e8] sm:$0xff]
          %v2012 = vld [vmem:[%s6 + $0x2f0] sm:$0xff]
          %v2013 = vld [vmem:[%s6 + $0x2f8] sm:$0xff]
          %v2014 = vld [vmem:[%s6 + $0x300] sm:$0xff]
          %v2015 = vld [vmem:[%s6 + $0x308] sm:$0xff]
          %v2016 = vld [vmem:[%s6 + $0x310] sm:$0xff]
          %v2017 = vld [vmem:[%s6 + $0x318] sm:$0xff]
          %v2018 = vld [vmem:[%s6 + $0x320] sm:$0xff]
          %v2019 = vld [vmem:[%s6 + $0x328] sm:$0xff]
          %v2020 = vld [vmem:[%s6 + $0x330] sm:$0xff]
          %v2021 = vld [vmem:[%s6 + $0x338] sm:$0xff]
          %v2022 = vld [vmem:[%s6 + $0x340] sm:$0xff]
          %v2023 = vld [vmem:[%s6 + $0x348] sm:$0xff]
          %v2024 = vld [vmem:[%s6 + $0x350] sm:$0xff]
          %v2025 = vld [vmem:[%s6 + $0x358] sm:$0xff]
          %v2026 = vld [vmem:[%s6 + $0x360] sm:$0xff]
          %v2027 = vld [vmem:[%s6 + $0x368] sm:$0xff]
          %v2028 = vld [vmem:[%s6 + $0x370] sm:$0xff]
          %v2029 = vld [vmem:[%s6 + $0x378] sm:$0xff]
          %v2030 = vld [vmem:[%s6 + $0x380] sm:$0xff]
          %v2031 = vld [vmem:[%s6 + $0x388] sm:$0xff]
          %v2032 = vld [vmem:[%s6 + $0x390] sm:$0xff]
          %v2033 = vld [vmem:[%s6 + $0x398] sm:$0xff]
          %v2034 = vld [vmem:[%s6 + $0x3a0] sm:$0xff]
          %v2035 = vld [vmem:[%s6 + $0x3a8] sm:$0xff]
          %v2036 = vld [vmem:[%s6 + $0x3b0] sm:$0xff]
          %v2037 = vld [vmem:[%s6 + $0x3b8] sm:$0xff]
          %v2038 = vld [vmem:[%s6 + $0x3c0] sm:$0xff]
          %v2039 = vld [vmem:[%s6 + $0x3c8] sm:$0xff]
          %v2040 = vld [vmem:[%s6 + $0x3d0] sm:$0xff]
          %v2041 = vld [vmem:[%s6 + $0x3d8] sm:$0xff]
          %v2042 = vld [vmem:[%s6 + $0x3e0] sm:$0xff]
          %v2043 = vld [vmem:[%s6 + $0x3e8] sm:$0xff]
          %v2044 = vld [vmem:[%s6 + $0x3f0] sm:$0xff]
          %v2045 = vld [vmem:[%s6 + $0x3f8] sm:$0xff]
          %v2047 = vcombine.high %v1123, %v1123
          %v2049 = vunpack.c.l.s4 1983009808
          %v2050 = vunpack.c.0.s8 %v2049
          %v2051 = vlaneseq
          %v2052 = vshrl.u32 %v2051, 7
          %v2053 = vsub.s32 %v2050, %v2052
          %v2054 = vrot.slane %v1123, %v2053
          %v2056 = vunpack.c.l.s4 1983009808
          %v2057 = vunpack.c.0.s8 %v2056
          %v2058 = vlaneseq
          %v2059 = vshrl.u32 %v2058, 7
          %v2060 = vsub.s32 %v2057, %v2059
          %v2061 = vrot.slane %v2047, %v2060
          %v2062 = vcombine.high %v2054, %v2054
          %v2063 = vcombine.high %v2061, %v2061
          %v2068 = vpack.c.bf16 %v2054, %v2054
          %v2069 = vpack.c.bf16 %v2062, %v2062
          %v2070 = vpack.c.bf16 %v2061, %v2061
          %v2071 = vpack.c.bf16 %v2063, %v2063
          %v2072 = vld [vmem:[%s7] sm:$0xff]
          %v2073 = vld [vmem:[%s7 + $0x8] sm:$0xff]
          %v2074 = vld [vmem:[%s7 + $0x10] sm:$0xff]
          %v2075 = vld [vmem:[%s7 + $0x18] sm:$0xff]
          %v2076 = vld [vmem:[%s7 + $0x20] sm:$0xff]
          %v2077 = vld [vmem:[%s7 + $0x28] sm:$0xff]
          %v2078 = vld [vmem:[%s7 + $0x30] sm:$0xff]
          %v2079 = vld [vmem:[%s7 + $0x38] sm:$0xff]
          %v2080 = vld [vmem:[%s7 + $0x40] sm:$0xff]
          %v2081 = vld [vmem:[%s7 + $0x48] sm:$0xff]
          %v2082 = vld [vmem:[%s7 + $0x50] sm:$0xff]
          %v2083 = vld [vmem:[%s7 + $0x58] sm:$0xff]
          %v2084 = vld [vmem:[%s7 + $0x60] sm:$0xff]
          %v2085 = vld [vmem:[%s7 + $0x68] sm:$0xff]
          %v2086 = vld [vmem:[%s7 + $0x70] sm:$0xff]
          %v2087 = vld [vmem:[%s7 + $0x78] sm:$0xff]
          %v2088 = vld [vmem:[%s7 + $0x80] sm:$0xff]
          %v2089 = vld [vmem:[%s7 + $0x88] sm:$0xff]
          %v2090 = vld [vmem:[%s7 + $0x90] sm:$0xff]
          %v2091 = vld [vmem:[%s7 + $0x98] sm:$0xff]
          %v2092 = vld [vmem:[%s7 + $0xa0] sm:$0xff]
          %v2093 = vld [vmem:[%s7 + $0xa8] sm:$0xff]
          %v2094 = vld [vmem:[%s7 + $0xb0] sm:$0xff]
          %v2095 = vld [vmem:[%s7 + $0xb8] sm:$0xff]
          %v2096 = vld [vmem:[%s7 + $0xc0] sm:$0xff]
          %v2097 = vld [vmem:[%s7 + $0xc8] sm:$0xff]
          %v2098 = vld [vmem:[%s7 + $0xd0] sm:$0xff]
          %v2099 = vld [vmem:[%s7 + $0xd8] sm:$0xff]
          %v2100 = vld [vmem:[%s7 + $0xe0] sm:$0xff]
          %v2101 = vld [vmem:[%s7 + $0xe8] sm:$0xff]
          %v2102 = vld [vmem:[%s7 + $0xf0] sm:$0xff]
          %v2103 = vld [vmem:[%s7 + $0xf8] sm:$0xff]
          %v2104 = vld [vmem:[%s7 + $0x100] sm:$0xff]
          %v2105 = vld [vmem:[%s7 + $0x108] sm:$0xff]
          %v2106 = vld [vmem:[%s7 + $0x110] sm:$0xff]
          %v2107 = vld [vmem:[%s7 + $0x118] sm:$0xff]
          %v2108 = vld [vmem:[%s7 + $0x120] sm:$0xff]
          %v2109 = vld [vmem:[%s7 + $0x128] sm:$0xff]
          %v2110 = vld [vmem:[%s7 + $0x130] sm:$0xff]
          %v2111 = vld [vmem:[%s7 + $0x138] sm:$0xff]
          %v2112 = vld [vmem:[%s7 + $0x140] sm:$0xff]
          %v2113 = vld [vmem:[%s7 + $0x148] sm:$0xff]
          %v2114 = vld [vmem:[%s7 + $0x150] sm:$0xff]
          %v2115 = vld [vmem:[%s7 + $0x158] sm:$0xff]
          %v2116 = vld [vmem:[%s7 + $0x160] sm:$0xff]
          %v2117 = vld [vmem:[%s7 + $0x168] sm:$0xff]
          %v2118 = vld [vmem:[%s7 + $0x170] sm:$0xff]
          %v2119 = vld [vmem:[%s7 + $0x178] sm:$0xff]
          %v2120 = vld [vmem:[%s7 + $0x180] sm:$0xff]
          %v2121 = vld [vmem:[%s7 + $0x188] sm:$0xff]
          %v2122 = vld [vmem:[%s7 + $0x190] sm:$0xff]
          %v2123 = vld [vmem:[%s7 + $0x198] sm:$0xff]
          %v2124 = vld [vmem:[%s7 + $0x1a0] sm:$0xff]
          %v2125 = vld [vmem:[%s7 + $0x1a8] sm:$0xff]
          %v2126 = vld [vmem:[%s7 + $0x1b0] sm:$0xff]
          %v2127 = vld [vmem:[%s7 + $0x1b8] sm:$0xff]
          %v2128 = vld [vmem:[%s7 + $0x1c0] sm:$0xff]
          %v2129 = vld [vmem:[%s7 + $0x1c8] sm:$0xff]
          %v2130 = vld [vmem:[%s7 + $0x1d0] sm:$0xff]
          %v2131 = vld [vmem:[%s7 + $0x1d8] sm:$0xff]
          %v2132 = vld [vmem:[%s7 + $0x1e0] sm:$0xff]
          %v2133 = vld [vmem:[%s7 + $0x1e8] sm:$0xff]
          %v2134 = vld [vmem:[%s7 + $0x1f0] sm:$0xff]
          %v2135 = vld [vmem:[%s7 + $0x1f8] sm:$0xff]
          %v2136 = vld [vmem:[%s7 + $0x200] sm:$0xff]
          %v2137 = vld [vmem:[%s7 + $0x208] sm:$0xff]
          %v2138 = vld [vmem:[%s7 + $0x210] sm:$0xff]
          %v2139 = vld [vmem:[%s7 + $0x218] sm:$0xff]
          %v2140 = vld [vmem:[%s7 + $0x220] sm:$0xff]
          %v2141 = vld [vmem:[%s7 + $0x228] sm:$0xff]
          %v2142 = vld [vmem:[%s7 + $0x230] sm:$0xff]
          %v2143 = vld [vmem:[%s7 + $0x238] sm:$0xff]
          %v2144 = vld [vmem:[%s7 + $0x240] sm:$0xff]
          %v2145 = vld [vmem:[%s7 + $0x248] sm:$0xff]
          %v2146 = vld [vmem:[%s7 + $0x250] sm:$0xff]
          %v2147 = vld [vmem:[%s7 + $0x258] sm:$0xff]
          %v2148 = vld [vmem:[%s7 + $0x260] sm:$0xff]
          %v2149 = vld [vmem:[%s7 + $0x268] sm:$0xff]
          %v2150 = vld [vmem:[%s7 + $0x270] sm:$0xff]
          %v2151 = vld [vmem:[%s7 + $0x278] sm:$0xff]
          %v2152 = vld [vmem:[%s7 + $0x280] sm:$0xff]
          %v2153 = vld [vmem:[%s7 + $0x288] sm:$0xff]
          %v2154 = vld [vmem:[%s7 + $0x290] sm:$0xff]
          %v2155 = vld [vmem:[%s7 + $0x298] sm:$0xff]
          %v2156 = vld [vmem:[%s7 + $0x2a0] sm:$0xff]
          %v2157 = vld [vmem:[%s7 + $0x2a8] sm:$0xff]
          %v2158 = vld [vmem:[%s7 + $0x2b0] sm:$0xff]
          %v2159 = vld [vmem:[%s7 + $0x2b8] sm:$0xff]
          %v2160 = vld [vmem:[%s7 + $0x2c0] sm:$0xff]
          %v2161 = vld [vmem:[%s7 + $0x2c8] sm:$0xff]
          %v2162 = vld [vmem:[%s7 + $0x2d0] sm:$0xff]
          %v2163 = vld [vmem:[%s7 + $0x2d8] sm:$0xff]
          %v2164 = vld [vmem:[%s7 + $0x2e0] sm:$0xff]
          %v2165 = vld [vmem:[%s7 + $0x2e8] sm:$0xff]
          %v2166 = vld [vmem:[%s7 + $0x2f0] sm:$0xff]
          %v2167 = vld [vmem:[%s7 + $0x2f8] sm:$0xff]
          %v2168 = vld [vmem:[%s7 + $0x300] sm:$0xff]
          %v2169 = vld [vmem:[%s7 + $0x308] sm:$0xff]
          %v2170 = vld [vmem:[%s7 + $0x310] sm:$0xff]
          %v2171 = vld [vmem:[%s7 + $0x318] sm:$0xff]
          %v2172 = vld [vmem:[%s7 + $0x320] sm:$0xff]
          %v2173 = vld [vmem:[%s7 + $0x328] sm:$0xff]
          %v2174 = vld [vmem:[%s7 + $0x330] sm:$0xff]
          %v2175 = vld [vmem:[%s7 + $0x338] sm:$0xff]
          %v2176 = vld [vmem:[%s7 + $0x340] sm:$0xff]
          %v2177 = vld [vmem:[%s7 + $0x348] sm:$0xff]
          %v2178 = vld [vmem:[%s7 + $0x350] sm:$0xff]
          %v2179 = vld [vmem:[%s7 + $0x358] sm:$0xff]
          %v2180 = vld [vmem:[%s7 + $0x360] sm:$0xff]
          %v2181 = vld [vmem:[%s7 + $0x368] sm:$0xff]
          %v2182 = vld [vmem:[%s7 + $0x370] sm:$0xff]
          %v2183 = vld [vmem:[%s7 + $0x378] sm:$0xff]
          %v2184 = vld [vmem:[%s7 + $0x380] sm:$0xff]
          %v2185 = vld [vmem:[%s7 + $0x388] sm:$0xff]
          %v2186 = vld [vmem:[%s7 + $0x390] sm:$0xff]
          %v2187 = vld [vmem:[%s7 + $0x398] sm:$0xff]
          %v2188 = vld [vmem:[%s7 + $0x3a0] sm:$0xff]
          %v2189 = vld [vmem:[%s7 + $0x3a8] sm:$0xff]
          %v2190 = vld [vmem:[%s7 + $0x3b0] sm:$0xff]
          %v2191 = vld [vmem:[%s7 + $0x3b8] sm:$0xff]
          %v2192 = vld [vmem:[%s7 + $0x3c0] sm:$0xff]
          %v2193 = vld [vmem:[%s7 + $0x3c8] sm:$0xff]
          %v2194 = vld [vmem:[%s7 + $0x3d0] sm:$0xff]
          %v2195 = vld [vmem:[%s7 + $0x3d8] sm:$0xff]
          %v2196 = vld [vmem:[%s7 + $0x3e0] sm:$0xff]
          %v2197 = vld [vmem:[%s7 + $0x3e8] sm:$0xff]
          %v2198 = vld [vmem:[%s7 + $0x3f0] sm:$0xff]
          %v2199 = vld [vmem:[%s7 + $0x3f8] sm:$0xff]
          %v2328 = vunpack.c.l.b16 %v2072
          %v2329 = vunpack.c.h.b16 %v2072
          %v2330 = vunpack.c.l.b16 %v2073
          %v2331 = vunpack.c.h.b16 %v2073
          %v2332 = vunpack.c.l.b16 %v2074
          %v2333 = vunpack.c.h.b16 %v2074
          %v2334 = vunpack.c.l.b16 %v2075
          %v2335 = vunpack.c.h.b16 %v2075
          %v2336 = vunpack.c.l.b16 %v2076
          %v2337 = vunpack.c.h.b16 %v2076
          %v2338 = vunpack.c.l.b16 %v2077
          %v2339 = vunpack.c.h.b16 %v2077
          %v2340 = vunpack.c.l.b16 %v2078
          %v2341 = vunpack.c.h.b16 %v2078
          %v2342 = vunpack.c.l.b16 %v2079
          %v2343 = vunpack.c.h.b16 %v2079
          %v2344 = vunpack.c.l.b16 %v2080
          %v2345 = vunpack.c.h.b16 %v2080
          %v2346 = vunpack.c.l.b16 %v2081
          %v2347 = vunpack.c.h.b16 %v2081
          %v2348 = vunpack.c.l.b16 %v2082
          %v2349 = vunpack.c.h.b16 %v2082
          %v2350 = vunpack.c.l.b16 %v2083
          %v2351 = vunpack.c.h.b16 %v2083
          %v2352 = vunpack.c.l.b16 %v2084
          %v2353 = vunpack.c.h.b16 %v2084
          %v2354 = vunpack.c.l.b16 %v2085
          %v2355 = vunpack.c.h.b16 %v2085
          %v2356 = vunpack.c.l.b16 %v2086
          %v2357 = vunpack.c.h.b16 %v2086
          %v2358 = vunpack.c.l.b16 %v2087
          %v2359 = vunpack.c.h.b16 %v2087
          %v2360 = vunpack.c.l.b16 %v2088
          %v2361 = vunpack.c.h.b16 %v2088
          %v2362 = vunpack.c.l.b16 %v2089
          %v2363 = vunpack.c.h.b16 %v2089
          %v2364 = vunpack.c.l.b16 %v2090
          %v2365 = vunpack.c.h.b16 %v2090
          %v2366 = vunpack.c.l.b16 %v2091
          %v2367 = vunpack.c.h.b16 %v2091
          %v2368 = vunpack.c.l.b16 %v2092
          %v2369 = vunpack.c.h.b16 %v2092
          %v2370 = vunpack.c.l.b16 %v2093
          %v2371 = vunpack.c.h.b16 %v2093
          %v2372 = vunpack.c.l.b16 %v2094
          %v2373 = vunpack.c.h.b16 %v2094
          %v2374 = vunpack.c.l.b16 %v2095
          %v2375 = vunpack.c.h.b16 %v2095
          %v2376 = vunpack.c.l.b16 %v2096
          %v2377 = vunpack.c.h.b16 %v2096
          %v2378 = vunpack.c.l.b16 %v2097
          %v2379 = vunpack.c.h.b16 %v2097
          %v2380 = vunpack.c.l.b16 %v2098
          %v2381 = vunpack.c.h.b16 %v2098
          %v2382 = vunpack.c.l.b16 %v2099
          %v2383 = vunpack.c.h.b16 %v2099
          %v2384 = vunpack.c.l.b16 %v2100
          %v2385 = vunpack.c.h.b16 %v2100
          %v2386 = vunpack.c.l.b16 %v2101
          %v2387 = vunpack.c.h.b16 %v2101
          %v2388 = vunpack.c.l.b16 %v2102
          %v2389 = vunpack.c.h.b16 %v2102
          %v2390 = vunpack.c.l.b16 %v2103
          %v2391 = vunpack.c.h.b16 %v2103
          %v2392 = vunpack.c.l.b16 %v2104
          %v2393 = vunpack.c.h.b16 %v2104
          %v2394 = vunpack.c.l.b16 %v2105
          %v2395 = vunpack.c.h.b16 %v2105
          %v2396 = vunpack.c.l.b16 %v2106
          %v2397 = vunpack.c.h.b16 %v2106
          %v2398 = vunpack.c.l.b16 %v2107
          %v2399 = vunpack.c.h.b16 %v2107
          %v2400 = vunpack.c.l.b16 %v2108
          %v2401 = vunpack.c.h.b16 %v2108
          %v2402 = vunpack.c.l.b16 %v2109
          %v2403 = vunpack.c.h.b16 %v2109
          %v2404 = vunpack.c.l.b16 %v2110
          %v2405 = vunpack.c.h.b16 %v2110
          %v2406 = vunpack.c.l.b16 %v2111
          %v2407 = vunpack.c.h.b16 %v2111
          %v2408 = vunpack.c.l.b16 %v2112
          %v2409 = vunpack.c.h.b16 %v2112
          %v2410 = vunpack.c.l.b16 %v2113
          %v2411 = vunpack.c.h.b16 %v2113
          %v2412 = vunpack.c.l.b16 %v2114
          %v2413 = vunpack.c.h.b16 %v2114
          %v2414 = vunpack.c.l.b16 %v2115
          %v2415 = vunpack.c.h.b16 %v2115
          %v2416 = vunpack.c.l.b16 %v2116
          %v2417 = vunpack.c.h.b16 %v2116
          %v2418 = vunpack.c.l.b16 %v2117
          %v2419 = vunpack.c.h.b16 %v2117
          %v2420 = vunpack.c.l.b16 %v2118
          %v2421 = vunpack.c.h.b16 %v2118
          %v2422 = vunpack.c.l.b16 %v2119
          %v2423 = vunpack.c.h.b16 %v2119
          %v2424 = vunpack.c.l.b16 %v2120
          %v2425 = vunpack.c.h.b16 %v2120
          %v2426 = vunpack.c.l.b16 %v2121
          %v2427 = vunpack.c.h.b16 %v2121
          %v2428 = vunpack.c.l.b16 %v2122
          %v2429 = vunpack.c.h.b16 %v2122
          %v2430 = vunpack.c.l.b16 %v2123
          %v2431 = vunpack.c.h.b16 %v2123
          %v2432 = vunpack.c.l.b16 %v2124
          %v2433 = vunpack.c.h.b16 %v2124
          %v2434 = vunpack.c.l.b16 %v2125
          %v2435 = vunpack.c.h.b16 %v2125
          %v2436 = vunpack.c.l.b16 %v2126
          %v2437 = vunpack.c.h.b16 %v2126
          %v2438 = vunpack.c.l.b16 %v2127
          %v2439 = vunpack.c.h.b16 %v2127
          %v2440 = vunpack.c.l.b16 %v2128
          %v2441 = vunpack.c.h.b16 %v2128
          %v2442 = vunpack.c.l.b16 %v2129
          %v2443 = vunpack.c.h.b16 %v2129
          %v2444 = vunpack.c.l.b16 %v2130
          %v2445 = vunpack.c.h.b16 %v2130
          %v2446 = vunpack.c.l.b16 %v2131
          %v2447 = vunpack.c.h.b16 %v2131
          %v2448 = vunpack.c.l.b16 %v2132
          %v2449 = vunpack.c.h.b16 %v2132
          %v2450 = vunpack.c.l.b16 %v2133
          %v2451 = vunpack.c.h.b16 %v2133
          %v2452 = vunpack.c.l.b16 %v2134
          %v2453 = vunpack.c.h.b16 %v2134
          %v2454 = vunpack.c.l.b16 %v2135
          %v2455 = vunpack.c.h.b16 %v2135
          %v2456 = vunpack.c.l.b16 %v2136
          %v2457 = vunpack.c.h.b16 %v2136
          %v2458 = vunpack.c.l.b16 %v2137
          %v2459 = vunpack.c.h.b16 %v2137
          %v2460 = vunpack.c.l.b16 %v2138
          %v2461 = vunpack.c.h.b16 %v2138
          %v2462 = vunpack.c.l.b16 %v2139
          %v2463 = vunpack.c.h.b16 %v2139
          %v2464 = vunpack.c.l.b16 %v2140
          %v2465 = vunpack.c.h.b16 %v2140
          %v2466 = vunpack.c.l.b16 %v2141
          %v2467 = vunpack.c.h.b16 %v2141
          %v2468 = vunpack.c.l.b16 %v2142
          %v2469 = vunpack.c.h.b16 %v2142
          %v2470 = vunpack.c.l.b16 %v2143
          %v2471 = vunpack.c.h.b16 %v2143
          %v2472 = vunpack.c.l.b16 %v2144
          %v2473 = vunpack.c.h.b16 %v2144
          %v2474 = vunpack.c.l.b16 %v2145
          %v2475 = vunpack.c.h.b16 %v2145
          %v2476 = vunpack.c.l.b16 %v2146
          %v2477 = vunpack.c.h.b16 %v2146
          %v2478 = vunpack.c.l.b16 %v2147
          %v2479 = vunpack.c.h.b16 %v2147
          %v2480 = vunpack.c.l.b16 %v2148
          %v2481 = vunpack.c.h.b16 %v2148
          %v2482 = vunpack.c.l.b16 %v2149
          %v2483 = vunpack.c.h.b16 %v2149
          %v2484 = vunpack.c.l.b16 %v2150
          %v2485 = vunpack.c.h.b16 %v2150
          %v2486 = vunpack.c.l.b16 %v2151
          %v2487 = vunpack.c.h.b16 %v2151
          %v2488 = vunpack.c.l.b16 %v2152
          %v2489 = vunpack.c.h.b16 %v2152
          %v2490 = vunpack.c.l.b16 %v2153
          %v2491 = vunpack.c.h.b16 %v2153
          %v2492 = vunpack.c.l.b16 %v2154
          %v2493 = vunpack.c.h.b16 %v2154
          %v2494 = vunpack.c.l.b16 %v2155
          %v2495 = vunpack.c.h.b16 %v2155
          %v2496 = vunpack.c.l.b16 %v2156
          %v2497 = vunpack.c.h.b16 %v2156
          %v2498 = vunpack.c.l.b16 %v2157
          %v2499 = vunpack.c.h.b16 %v2157
          %v2500 = vunpack.c.l.b16 %v2158
          %v2501 = vunpack.c.h.b16 %v2158
          %v2502 = vunpack.c.l.b16 %v2159
          %v2503 = vunpack.c.h.b16 %v2159
          %v2504 = vunpack.c.l.b16 %v2160
          %v2505 = vunpack.c.h.b16 %v2160
          %v2506 = vunpack.c.l.b16 %v2161
          %v2507 = vunpack.c.h.b16 %v2161
          %v2508 = vunpack.c.l.b16 %v2162
          %v2509 = vunpack.c.h.b16 %v2162
          %v2510 = vunpack.c.l.b16 %v2163
          %v2511 = vunpack.c.h.b16 %v2163
          %v2512 = vunpack.c.l.b16 %v2164
          %v2513 = vunpack.c.h.b16 %v2164
          %v2514 = vunpack.c.l.b16 %v2165
          %v2515 = vunpack.c.h.b16 %v2165
          %v2516 = vunpack.c.l.b16 %v2166
          %v2517 = vunpack.c.h.b16 %v2166
          %v2518 = vunpack.c.l.b16 %v2167
          %v2519 = vunpack.c.h.b16 %v2167
          %v2520 = vunpack.c.l.b16 %v2168
          %v2521 = vunpack.c.h.b16 %v2168
          %v2522 = vunpack.c.l.b16 %v2169
          %v2523 = vunpack.c.h.b16 %v2169
          %v2524 = vunpack.c.l.b16 %v2170
          %v2525 = vunpack.c.h.b16 %v2170
          %v2526 = vunpack.c.l.b16 %v2171
          %v2527 = vunpack.c.h.b16 %v2171
          %v2528 = vunpack.c.l.b16 %v2172
          %v2529 = vunpack.c.h.b16 %v2172
          %v2530 = vunpack.c.l.b16 %v2173
          %v2531 = vunpack.c.h.b16 %v2173
          %v2532 = vunpack.c.l.b16 %v2174
          %v2533 = vunpack.c.h.b16 %v2174
          %v2534 = vunpack.c.l.b16 %v2175
          %v2535 = vunpack.c.h.b16 %v2175
          %v2536 = vunpack.c.l.b16 %v2176
          %v2537 = vunpack.c.h.b16 %v2176
          %v2538 = vunpack.c.l.b16 %v2177
          %v2539 = vunpack.c.h.b16 %v2177
          %v2540 = vunpack.c.l.b16 %v2178
          %v2541 = vunpack.c.h.b16 %v2178
          %v2542 = vunpack.c.l.b16 %v2179
          %v2543 = vunpack.c.h.b16 %v2179
          %v2544 = vunpack.c.l.b16 %v2180
          %v2545 = vunpack.c.h.b16 %v2180
          %v2546 = vunpack.c.l.b16 %v2181
          %v2547 = vunpack.c.h.b16 %v2181
          %v2548 = vunpack.c.l.b16 %v2182
          %v2549 = vunpack.c.h.b16 %v2182
          %v2550 = vunpack.c.l.b16 %v2183
          %v2551 = vunpack.c.h.b16 %v2183
          %v2552 = vunpack.c.l.b16 %v2184
          %v2553 = vunpack.c.h.b16 %v2184
          %v2554 = vunpack.c.l.b16 %v2185
          %v2555 = vunpack.c.h.b16 %v2185
          %v2556 = vunpack.c.l.b16 %v2186
          %v2557 = vunpack.c.h.b16 %v2186
          %v2558 = vunpack.c.l.b16 %v2187
          %v2559 = vunpack.c.h.b16 %v2187
          %v2560 = vunpack.c.l.b16 %v2188
          %v2561 = vunpack.c.h.b16 %v2188
          %v2562 = vunpack.c.l.b16 %v2189
          %v2563 = vunpack.c.h.b16 %v2189
          %v2564 = vunpack.c.l.b16 %v2190
          %v2565 = vunpack.c.h.b16 %v2190
          %v2566 = vunpack.c.l.b16 %v2191
          %v2567 = vunpack.c.h.b16 %v2191
          %v2568 = vunpack.c.l.b16 %v2192
          %v2569 = vunpack.c.h.b16 %v2192
          %v2570 = vunpack.c.l.b16 %v2193
          %v2571 = vunpack.c.h.b16 %v2193
          %v2572 = vunpack.c.l.b16 %v2194
          %v2573 = vunpack.c.h.b16 %v2194
          %v2574 = vunpack.c.l.b16 %v2195
          %v2575 = vunpack.c.h.b16 %v2195
          %v2576 = vunpack.c.l.b16 %v2196
          %v2577 = vunpack.c.h.b16 %v2196
          %v2578 = vunpack.c.l.b16 %v2197
          %v2579 = vunpack.c.h.b16 %v2197
          %v2580 = vunpack.c.l.b16 %v2198
          %v2581 = vunpack.c.h.b16 %v2198
          %v2582 = vunpack.c.l.b16 %v2199
          %v2583 = vunpack.c.h.b16 %v2199
          %v2584 = vpack.c.b16 %v2332, %v2328
          %v2585 = vpack.c.b16 %v2333, %v2329
          %v2586 = vpack.c.b16 %v2334, %v2330
          %v2587 = vpack.c.b16 %v2335, %v2331
          %v2588 = vpack.c.b16 %v2340, %v2336
          %v2589 = vpack.c.b16 %v2341, %v2337
          %v2590 = vpack.c.b16 %v2342, %v2338
          %v2591 = vpack.c.b16 %v2343, %v2339
          %v2592 = vpack.c.b16 %v2348, %v2344
          %v2593 = vpack.c.b16 %v2349, %v2345
          %v2594 = vpack.c.b16 %v2350, %v2346
          %v2595 = vpack.c.b16 %v2351, %v2347
          %v2596 = vpack.c.b16 %v2356, %v2352
          %v2597 = vpack.c.b16 %v2357, %v2353
          %v2598 = vpack.c.b16 %v2358, %v2354
          %v2599 = vpack.c.b16 %v2359, %v2355
          %v2600 = vpack.c.b16 %v2364, %v2360
          %v2601 = vpack.c.b16 %v2365, %v2361
          %v2602 = vpack.c.b16 %v2366, %v2362
          %v2603 = vpack.c.b16 %v2367, %v2363
          %v2604 = vpack.c.b16 %v2372, %v2368
          %v2605 = vpack.c.b16 %v2373, %v2369
          %v2606 = vpack.c.b16 %v2374, %v2370
          %v2607 = vpack.c.b16 %v2375, %v2371
          %v2608 = vpack.c.b16 %v2380, %v2376
          %v2609 = vpack.c.b16 %v2381, %v2377
          %v2610 = vpack.c.b16 %v2382, %v2378
          %v2611 = vpack.c.b16 %v2383, %v2379
          %v2612 = vpack.c.b16 %v2388, %v2384
          %v2613 = vpack.c.b16 %v2389, %v2385
          %v2614 = vpack.c.b16 %v2390, %v2386
          %v2615 = vpack.c.b16 %v2391, %v2387
          %v2616 = vpack.c.b16 %v2396, %v2392
          %v2617 = vpack.c.b16 %v2397, %v2393
          %v2618 = vpack.c.b16 %v2398, %v2394
          %v2619 = vpack.c.b16 %v2399, %v2395
          %v2620 = vpack.c.b16 %v2404, %v2400
          %v2621 = vpack.c.b16 %v2405, %v2401
          %v2622 = vpack.c.b16 %v2406, %v2402
          %v2623 = vpack.c.b16 %v2407, %v2403
          %v2624 = vpack.c.b16 %v2412, %v2408
          %v2625 = vpack.c.b16 %v2413, %v2409
          %v2626 = vpack.c.b16 %v2414, %v2410
          %v2627 = vpack.c.b16 %v2415, %v2411
          %v2628 = vpack.c.b16 %v2420, %v2416
          %v2629 = vpack.c.b16 %v2421, %v2417
          %v2630 = vpack.c.b16 %v2422, %v2418
          %v2631 = vpack.c.b16 %v2423, %v2419
          %v2632 = vpack.c.b16 %v2428, %v2424
          %v2633 = vpack.c.b16 %v2429, %v2425
          %v2634 = vpack.c.b16 %v2430, %v2426
          %v2635 = vpack.c.b16 %v2431, %v2427
          %v2636 = vpack.c.b16 %v2436, %v2432
          %v2637 = vpack.c.b16 %v2437, %v2433
          %v2638 = vpack.c.b16 %v2438, %v2434
          %v2639 = vpack.c.b16 %v2439, %v2435
          %v2640 = vpack.c.b16 %v2444, %v2440
          %v2641 = vpack.c.b16 %v2445, %v2441
          %v2642 = vpack.c.b16 %v2446, %v2442
          %v2643 = vpack.c.b16 %v2447, %v2443
          %v2644 = vpack.c.b16 %v2452, %v2448
          %v2645 = vpack.c.b16 %v2453, %v2449
          %v2646 = vpack.c.b16 %v2454, %v2450
          %v2647 = vpack.c.b16 %v2455, %v2451
          %v2648 = vpack.c.b16 %v2460, %v2456
          %v2649 = vpack.c.b16 %v2461, %v2457
          %v2650 = vpack.c.b16 %v2462, %v2458
          %v2651 = vpack.c.b16 %v2463, %v2459
          %v2652 = vpack.c.b16 %v2468, %v2464
          %v2653 = vpack.c.b16 %v2469, %v2465
          %v2654 = vpack.c.b16 %v2470, %v2466
          %v2655 = vpack.c.b16 %v2471, %v2467
          %v2656 = vpack.c.b16 %v2476, %v2472
          %v2657 = vpack.c.b16 %v2477, %v2473
          %v2658 = vpack.c.b16 %v2478, %v2474
          %v2659 = vpack.c.b16 %v2479, %v2475
          %v2660 = vpack.c.b16 %v2484, %v2480
          %v2661 = vpack.c.b16 %v2485, %v2481
          %v2662 = vpack.c.b16 %v2486, %v2482
          %v2663 = vpack.c.b16 %v2487, %v2483
          %v2664 = vpack.c.b16 %v2492, %v2488
          %v2665 = vpack.c.b16 %v2493, %v2489
          %v2666 = vpack.c.b16 %v2494, %v2490
          %v2667 = vpack.c.b16 %v2495, %v2491
          %v2668 = vpack.c.b16 %v2500, %v2496
          %v2669 = vpack.c.b16 %v2501, %v2497
          %v2670 = vpack.c.b16 %v2502, %v2498
          %v2671 = vpack.c.b16 %v2503, %v2499
          %v2672 = vpack.c.b16 %v2508, %v2504
          %v2673 = vpack.c.b16 %v2509, %v2505
          %v2674 = vpack.c.b16 %v2510, %v2506
          %v2675 = vpack.c.b16 %v2511, %v2507
          %v2676 = vpack.c.b16 %v2516, %v2512
          %v2677 = vpack.c.b16 %v2517, %v2513
          %v2678 = vpack.c.b16 %v2518, %v2514
          %v2679 = vpack.c.b16 %v2519, %v2515
          %v2680 = vpack.c.b16 %v2524, %v2520
          %v2681 = vpack.c.b16 %v2525, %v2521
          %v2682 = vpack.c.b16 %v2526, %v2522
          %v2683 = vpack.c.b16 %v2527, %v2523
          %v2684 = vpack.c.b16 %v2532, %v2528
          %v2685 = vpack.c.b16 %v2533, %v2529
          %v2686 = vpack.c.b16 %v2534, %v2530
          %v2687 = vpack.c.b16 %v2535, %v2531
          %v2688 = vpack.c.b16 %v2540, %v2536
          %v2689 = vpack.c.b16 %v2541, %v2537
          %v2690 = vpack.c.b16 %v2542, %v2538
          %v2691 = vpack.c.b16 %v2543, %v2539
          %v2692 = vpack.c.b16 %v2548, %v2544
          %v2693 = vpack.c.b16 %v2549, %v2545
          %v2694 = vpack.c.b16 %v2550, %v2546
          %v2695 = vpack.c.b16 %v2551, %v2547
          %v2696 = vpack.c.b16 %v2556, %v2552
          %v2697 = vpack.c.b16 %v2557, %v2553
          %v2698 = vpack.c.b16 %v2558, %v2554
          %v2699 = vpack.c.b16 %v2559, %v2555
          %v2700 = vpack.c.b16 %v2564, %v2560
          %v2701 = vpack.c.b16 %v2565, %v2561
          %v2702 = vpack.c.b16 %v2566, %v2562
          %v2703 = vpack.c.b16 %v2567, %v2563
          %v2704 = vpack.c.b16 %v2572, %v2568
          %v2705 = vpack.c.b16 %v2573, %v2569
          %v2706 = vpack.c.b16 %v2574, %v2570
          %v2707 = vpack.c.b16 %v2575, %v2571
          %v2708 = vpack.c.b16 %v2580, %v2576
          %v2709 = vpack.c.b16 %v2581, %v2577
          %v2710 = vpack.c.b16 %v2582, %v2578
          %v2711 = vpack.c.b16 %v2583, %v2579
          %2840 = vmatprep.subr.bf16.mxu0 %v2613
          %2841 = vmatpush1.bf16.msra.mxu0 %v2612
          %2842 = vmatprep.subr.bf16.mxu0 %v2609
          %2843 = vmatpush1.bf16.msra.mxu0 %v2608
          %2844 = vmatprep.subr.bf16.mxu0 %v2605
          %2845 = vmatpush1.bf16.msra.mxu0 %v2604
          %2846 = vmatprep.subr.bf16.mxu0 %v2601
          %2847 = vmatpush1.bf16.msra.mxu0 %v2600
          %2848 = vmatprep.subr.bf16.mxu0 %v2597
          %2849 = vmatpush1.bf16.msra.mxu0 %v2596
          %2850 = vmatprep.subr.bf16.mxu0 %v2593
          %2851 = vmatpush1.bf16.msra.mxu0 %v2592
          %2852 = vmatprep.subr.bf16.mxu0 %v2589
          %2853 = vmatpush1.bf16.msra.mxu0 %v2588
          %2854 = vmatprep.subr.bf16.mxu0 %v2585
          %2855 = vmatpush1.bf16.msra.mxu0 %v2584
          %2856 = vmatprep.subr.bf16.mxu0 %v2645
          %2857 = vmatpush2.bf16.msra.mxu0 %v2644
          %2858 = vmatprep.subr.bf16.mxu0 %v2641
          %2859 = vmatpush2.bf16.msra.mxu0 %v2640
          %2860 = vmatprep.subr.bf16.mxu0 %v2637
          %2861 = vmatpush2.bf16.msra.mxu0 %v2636
          %2862 = vmatprep.subr.bf16.mxu0 %v2633
          %2863 = vmatpush2.bf16.msra.mxu0 %v2632
          %2864 = vmatprep.subr.bf16.mxu0 %v2629
          %2865 = vmatpush2.bf16.msra.mxu0 %v2628
          %2866 = vmatprep.subr.bf16.mxu0 %v2625
          %2867 = vmatpush2.bf16.msra.mxu0 %v2624
          %2868 = vmatprep.subr.bf16.mxu0 %v2621
          %2869 = vmatpush2.bf16.msra.mxu0 %v2620
          %2870 = vmatprep.subr.bf16.mxu0 %v2617
          %2871 = vmatpush2.bf16.msra.mxu0 %v2616
          %2872 = vmatprep.mubr.bf16.mxu0 %v2069
          %2873 = vmatmul.mubr.bf16.gmra.mxu0 %v2068
          %v2874 = vpop.f32.mrf.mxu0
          %v2875 = vadd.f32 0.0, %v2874
          %v2876 = vpop.f32.mrf.mxu0
          %v2877 = vadd.f32 0.0, %v2876
          %v2878 = vpop.f32.mrf.mxu0
          %v2879 = vpop.f32.mrf.mxu0
          %2880 = vdwg.mxu0
          %2881 = vmatprep.subr.bf16.mxu0 %v2677
          %2882 = vmatpush1.bf16.msra.mxu0 %v2676
          %2883 = vmatprep.subr.bf16.mxu0 %v2673
          %2884 = vmatpush1.bf16.msra.mxu0 %v2672
          %2885 = vmatprep.subr.bf16.mxu0 %v2669
          %2886 = vmatpush1.bf16.msra.mxu0 %v2668
          %2887 = vmatprep.subr.bf16.mxu0 %v2665
          %2888 = vmatpush1.bf16.msra.mxu0 %v2664
          %2889 = vmatprep.subr.bf16.mxu0 %v2661
          %2890 = vmatpush1.bf16.msra.mxu0 %v2660
          %2891 = vmatprep.subr.bf16.mxu0 %v2657
          %2892 = vmatpush1.bf16.msra.mxu0 %v2656
          %2893 = vmatprep.subr.bf16.mxu0 %v2653
          %2894 = vmatpush1.bf16.msra.mxu0 %v2652
          %2895 = vmatprep.subr.bf16.mxu0 %v2649
          %2896 = vmatpush1.bf16.msra.mxu0 %v2648
          %2897 = vmatprep.subr.bf16.mxu0 %v2709
          %2898 = vmatpush2.bf16.msra.mxu0 %v2708
          %2899 = vmatprep.subr.bf16.mxu0 %v2705
          %2900 = vmatpush2.bf16.msra.mxu0 %v2704
          %2901 = vmatprep.subr.bf16.mxu0 %v2701
          %2902 = vmatpush2.bf16.msra.mxu0 %v2700
          %2903 = vmatprep.subr.bf16.mxu0 %v2697
          %2904 = vmatpush2.bf16.msra.mxu0 %v2696
          %2905 = vmatprep.subr.bf16.mxu0 %v2693
          %2906 = vmatpush2.bf16.msra.mxu0 %v2692
          %2907 = vmatprep.subr.bf16.mxu0 %v2689
          %2908 = vmatpush2.bf16.msra.mxu0 %v2688
          %2909 = vmatprep.subr.bf16.mxu0 %v2685
          %2910 = vmatpush2.bf16.msra.mxu0 %v2684
          %2911 = vmatprep.subr.bf16.mxu0 %v2681
          %2912 = vmatpush2.bf16.msra.mxu0 %v2680
          %2913 = vmatprep.mubr.bf16.mxu0 %v2071
          %2914 = vmatmul.mubr.bf16.gmra.mxu0 %v2070
          %v2915 = vpop.f32.mrf.mxu0
          %v2916 = vadd.f32 %v2875, %v2915
          %v2917 = vpop.f32.mrf.mxu0
          %v2918 = vadd.f32 %v2877, %v2917
          %v2919 = vpop.f32.mrf.mxu0
          %v2920 = vpop.f32.mrf.mxu0
          %2921 = vdwg.mxu0
          %2922 = vmatprep.subr.bf16.mxu0 %v2615
          %2923 = vmatpush1.bf16.msra.mxu0 %v2614
          %2924 = vmatprep.subr.bf16.mxu0 %v2611
          %2925 = vmatpush1.bf16.msra.mxu0 %v2610
          %2926 = vmatprep.subr.bf16.mxu0 %v2607
          %2927 = vmatpush1.bf16.msra.mxu0 %v2606
          %2928 = vmatprep.subr.bf16.mxu0 %v2603
          %2929 = vmatpush1.bf16.msra.mxu0 %v2602
          %2930 = vmatprep.subr.bf16.mxu0 %v2599
          %2931 = vmatpush1.bf16.msra.mxu0 %v2598
          %2932 = vmatprep.subr.bf16.mxu0 %v2595
          %2933 = vmatpush1.bf16.msra.mxu0 %v2594
          %2934 = vmatprep.subr.bf16.mxu0 %v2591
          %2935 = vmatpush1.bf16.msra.mxu0 %v2590
          %2936 = vmatprep.subr.bf16.mxu0 %v2587
          %2937 = vmatpush1.bf16.msra.mxu0 %v2586
          %2938 = vmatprep.subr.bf16.mxu0 %v2647
          %2939 = vmatpush2.bf16.msra.mxu0 %v2646
          %2940 = vmatprep.subr.bf16.mxu0 %v2643
          %2941 = vmatpush2.bf16.msra.mxu0 %v2642
          %2942 = vmatprep.subr.bf16.mxu0 %v2639
          %2943 = vmatpush2.bf16.msra.mxu0 %v2638
          %2944 = vmatprep.subr.bf16.mxu0 %v2635
          %2945 = vmatpush2.bf16.msra.mxu0 %v2634
          %2946 = vmatprep.subr.bf16.mxu0 %v2631
          %2947 = vmatpush2.bf16.msra.mxu0 %v2630
          %2948 = vmatprep.subr.bf16.mxu0 %v2627
          %2949 = vmatpush2.bf16.msra.mxu0 %v2626
          %2950 = vmatprep.subr.bf16.mxu0 %v2623
          %2951 = vmatpush2.bf16.msra.mxu0 %v2622
          %2952 = vmatprep.subr.bf16.mxu0 %v2619
          %2953 = vmatpush2.bf16.msra.mxu0 %v2618
          %2954 = vmatprep.mubr.bf16.mxu0 %v2069
          %2955 = vmatmul.mubr.bf16.gmra.mxu0 %v2068
          %v2956 = vpop.f32.mrf.mxu0
          %v2957 = vadd.f32 0.0, %v2956
          %v2958 = vpop.f32.mrf.mxu0
          %v2959 = vadd.f32 0.0, %v2958
          %v2960 = vpop.f32.mrf.mxu0
          %v2961 = vpop.f32.mrf.mxu0
          %2962 = vdwg.mxu0
          %2963 = vmatprep.subr.bf16.mxu0 %v2679
          %2964 = vmatpush1.bf16.msra.mxu0 %v2678
          %2965 = vmatprep.subr.bf16.mxu0 %v2675
          %2966 = vmatpush1.bf16.msra.mxu0 %v2674
          %2967 = vmatprep.subr.bf16.mxu0 %v2671
          %2968 = vmatpush1.bf16.msra.mxu0 %v2670
          %2969 = vmatprep.subr.bf16.mxu0 %v2667
          %2970 = vmatpush1.bf16.msra.mxu0 %v2666
          %2971 = vmatprep.subr.bf16.mxu0 %v2663
          %2972 = vmatpush1.bf16.msra.mxu0 %v2662
          %2973 = vmatprep.subr.bf16.mxu0 %v2659
          %2974 = vmatpush1.bf16.msra.mxu0 %v2658
          %2975 = vmatprep.subr.bf16.mxu0 %v2655
          %2976 = vmatpush1.bf16.msra.mxu0 %v2654
          %2977 = vmatprep.subr.bf16.mxu0 %v2651
          %2978 = vmatpush1.bf16.msra.mxu0 %v2650
          %2979 = vmatprep.subr.bf16.mxu0 %v2711
          %2980 = vmatpush2.bf16.msra.mxu0 %v2710
          %2981 = vmatprep.subr.bf16.mxu0 %v2707
          %2982 = vmatpush2.bf16.msra.mxu0 %v2706
          %2983 = vmatprep.subr.bf16.mxu0 %v2703
          %2984 = vmatpush2.bf16.msra.mxu0 %v2702
          %2985 = vmatprep.subr.bf16.mxu0 %v2699
          %2986 = vmatpush2.bf16.msra.mxu0 %v2698
          %2987 = vmatprep.subr.bf16.mxu0 %v2695
          %2988 = vmatpush2.bf16.msra.mxu0 %v2694
          %2989 = vmatprep.subr.bf16.mxu0 %v2691
          %2990 = vmatpush2.bf16.msra.mxu0 %v2690
          %2991 = vmatprep.subr.bf16.mxu0 %v2687
          %2992 = vmatpush2.bf16.msra.mxu0 %v2686
          %2993 = vmatprep.subr.bf16.mxu0 %v2683
          %2994 = vmatpush2.bf16.msra.mxu0 %v2682
          %2995 = vmatprep.mubr.bf16.mxu0 %v2071
          %2996 = vmatmul.mubr.bf16.gmra.mxu0 %v2070
          %v2997 = vpop.f32.mrf.mxu0
          %v2998 = vadd.f32 %v2957, %v2997
          %v2999 = vpop.f32.mrf.mxu0
          %v3000 = vadd.f32 %v2959, %v2999
          %v3001 = vpop.f32.mrf.mxu0
          %v3002 = vpop.f32.mrf.mxu0
          %3003 = vdwg.mxu0
          %v3132 = vunpack.c.l.b16 %v1918
          %v3133 = vunpack.c.h.b16 %v1918
          %v3134 = vunpack.c.l.b16 %v1919
          %v3135 = vunpack.c.h.b16 %v1919
          %v3136 = vunpack.c.l.b16 %v1920
          %v3137 = vunpack.c.h.b16 %v1920
          %v3138 = vunpack.c.l.b16 %v1921
          %v3139 = vunpack.c.h.b16 %v1921
          %v3140 = vunpack.c.l.b16 %v1922
          %v3141 = vunpack.c.h.b16 %v1922
          %v3142 = vunpack.c.l.b16 %v1923
          %v3143 = vunpack.c.h.b16 %v1923
          %v3144 = vunpack.c.l.b16 %v1924
          %v3145 = vunpack.c.h.b16 %v1924
          %v3146 = vunpack.c.l.b16 %v1925
          %v3147 = vunpack.c.h.b16 %v1925
          %v3148 = vunpack.c.l.b16 %v1926
          %v3149 = vunpack.c.h.b16 %v1926
          %v3150 = vunpack.c.l.b16 %v1927
          %v3151 = vunpack.c.h.b16 %v1927
          %v3152 = vunpack.c.l.b16 %v1928
          %v3153 = vunpack.c.h.b16 %v1928
          %v3154 = vunpack.c.l.b16 %v1929
          %v3155 = vunpack.c.h.b16 %v1929
          %v3156 = vunpack.c.l.b16 %v1930
          %v3157 = vunpack.c.h.b16 %v1930
          %v3158 = vunpack.c.l.b16 %v1931
          %v3159 = vunpack.c.h.b16 %v1931
          %v3160 = vunpack.c.l.b16 %v1932
          %v3161 = vunpack.c.h.b16 %v1932
          %v3162 = vunpack.c.l.b16 %v1933
          %v3163 = vunpack.c.h.b16 %v1933
          %v3164 = vunpack.c.l.b16 %v1934
          %v3165 = vunpack.c.h.b16 %v1934
          %v3166 = vunpack.c.l.b16 %v1935
          %v3167 = vunpack.c.h.b16 %v1935
          %v3168 = vunpack.c.l.b16 %v1936
          %v3169 = vunpack.c.h.b16 %v1936
          %v3170 = vunpack.c.l.b16 %v1937
          %v3171 = vunpack.c.h.b16 %v1937
          %v3172 = vunpack.c.l.b16 %v1938
          %v3173 = vunpack.c.h.b16 %v1938
          %v3174 = vunpack.c.l.b16 %v1939
          %v3175 = vunpack.c.h.b16 %v1939
          %v3176 = vunpack.c.l.b16 %v1940
          %v3177 = vunpack.c.h.b16 %v1940
          %v3178 = vunpack.c.l.b16 %v1941
          %v3179 = vunpack.c.h.b16 %v1941
          %v3180 = vunpack.c.l.b16 %v1942
          %v3181 = vunpack.c.h.b16 %v1942
          %v3182 = vunpack.c.l.b16 %v1943
          %v3183 = vunpack.c.h.b16 %v1943
          %v3184 = vunpack.c.l.b16 %v1944
          %v3185 = vunpack.c.h.b16 %v1944
          %v3186 = vunpack.c.l.b16 %v1945
          %v3187 = vunpack.c.h.b16 %v1945
          %v3188 = vunpack.c.l.b16 %v1946
          %v3189 = vunpack.c.h.b16 %v1946
          %v3190 = vunpack.c.l.b16 %v1947
          %v3191 = vunpack.c.h.b16 %v1947
          %v3192 = vunpack.c.l.b16 %v1948
          %v3193 = vunpack.c.h.b16 %v1948
          %v3194 = vunpack.c.l.b16 %v1949
          %v3195 = vunpack.c.h.b16 %v1949
          %v3196 = vunpack.c.l.b16 %v1950
          %v3197 = vunpack.c.h.b16 %v1950
          %v3198 = vunpack.c.l.b16 %v1951
          %v3199 = vunpack.c.h.b16 %v1951
          %v3200 = vunpack.c.l.b16 %v1952
          %v3201 = vunpack.c.h.b16 %v1952
          %v3202 = vunpack.c.l.b16 %v1953
          %v3203 = vunpack.c.h.b16 %v1953
          %v3204 = vunpack.c.l.b16 %v1954
          %v3205 = vunpack.c.h.b16 %v1954
          %v3206 = vunpack.c.l.b16 %v1955
          %v3207 = vunpack.c.h.b16 %v1955
          %v3208 = vunpack.c.l.b16 %v1956
          %v3209 = vunpack.c.h.b16 %v1956
          %v3210 = vunpack.c.l.b16 %v1957
          %v3211 = vunpack.c.h.b16 %v1957
          %v3212 = vunpack.c.l.b16 %v1958
          %v3213 = vunpack.c.h.b16 %v1958
          %v3214 = vunpack.c.l.b16 %v1959
          %v3215 = vunpack.c.h.b16 %v1959
          %v3216 = vunpack.c.l.b16 %v1960
          %v3217 = vunpack.c.h.b16 %v1960
          %v3218 = vunpack.c.l.b16 %v1961
          %v3219 = vunpack.c.h.b16 %v1961
          %v3220 = vunpack.c.l.b16 %v1962
          %v3221 = vunpack.c.h.b16 %v1962
          %v3222 = vunpack.c.l.b16 %v1963
          %v3223 = vunpack.c.h.b16 %v1963
          %v3224 = vunpack.c.l.b16 %v1964
          %v3225 = vunpack.c.h.b16 %v1964
          %v3226 = vunpack.c.l.b16 %v1965
          %v3227 = vunpack.c.h.b16 %v1965
          %v3228 = vunpack.c.l.b16 %v1966
          %v3229 = vunpack.c.h.b16 %v1966
          %v3230 = vunpack.c.l.b16 %v1967
          %v3231 = vunpack.c.h.b16 %v1967
          %v3232 = vunpack.c.l.b16 %v1968
          %v3233 = vunpack.c.h.b16 %v1968
          %v3234 = vunpack.c.l.b16 %v1969
          %v3235 = vunpack.c.h.b16 %v1969
          %v3236 = vunpack.c.l.b16 %v1970
          %v3237 = vunpack.c.h.b16 %v1970
          %v3238 = vunpack.c.l.b16 %v1971
          %v3239 = vunpack.c.h.b16 %v1971
          %v3240 = vunpack.c.l.b16 %v1972
          %v3241 = vunpack.c.h.b16 %v1972
          %v3242 = vunpack.c.l.b16 %v1973
          %v3243 = vunpack.c.h.b16 %v1973
          %v3244 = vunpack.c.l.b16 %v1974
          %v3245 = vunpack.c.h.b16 %v1974
          %v3246 = vunpack.c.l.b16 %v1975
          %v3247 = vunpack.c.h.b16 %v1975
          %v3248 = vunpack.c.l.b16 %v1976
          %v3249 = vunpack.c.h.b16 %v1976
          %v3250 = vunpack.c.l.b16 %v1977
          %v3251 = vunpack.c.h.b16 %v1977
          %v3252 = vunpack.c.l.b16 %v1978
          %v3253 = vunpack.c.h.b16 %v1978
          %v3254 = vunpack.c.l.b16 %v1979
          %v3255 = vunpack.c.h.b16 %v1979
          %v3256 = vunpack.c.l.b16 %v1980
          %v3257 = vunpack.c.h.b16 %v1980
          %v3258 = vunpack.c.l.b16 %v1981
          %v3259 = vunpack.c.h.b16 %v1981
          %v3260 = vunpack.c.l.b16 %v1982
          %v3261 = vunpack.c.h.b16 %v1982
          %v3262 = vunpack.c.l.b16 %v1983
          %v3263 = vunpack.c.h.b16 %v1983
          %v3264 = vunpack.c.l.b16 %v1984
          %v3265 = vunpack.c.h.b16 %v1984
          %v3266 = vunpack.c.l.b16 %v1985
          %v3267 = vunpack.c.h.b16 %v1985
          %v3268 = vunpack.c.l.b16 %v1986
          %v3269 = vunpack.c.h.b16 %v1986
          %v3270 = vunpack.c.l.b16 %v1987
          %v3271 = vunpack.c.h.b16 %v1987
          %v3272 = vunpack.c.l.b16 %v1988
          %v3273 = vunpack.c.h.b16 %v1988
          %v3274 = vunpack.c.l.b16 %v1989
          %v3275 = vunpack.c.h.b16 %v1989
          %v3276 = vunpack.c.l.b16 %v1990
          %v3277 = vunpack.c.h.b16 %v1990
          %v3278 = vunpack.c.l.b16 %v1991
          %v3279 = vunpack.c.h.b16 %v1991
          %v3280 = vunpack.c.l.b16 %v1992
          %v3281 = vunpack.c.h.b16 %v1992
          %v3282 = vunpack.c.l.b16 %v1993
          %v3283 = vunpack.c.h.b16 %v1993
          %v3284 = vunpack.c.l.b16 %v1994
          %v3285 = vunpack.c.h.b16 %v1994
          %v3286 = vunpack.c.l.b16 %v1995
          %v3287 = vunpack.c.h.b16 %v1995
          %v3288 = vunpack.c.l.b16 %v1996
          %v3289 = vunpack.c.h.b16 %v1996
          %v3290 = vunpack.c.l.b16 %v1997
          %v3291 = vunpack.c.h.b16 %v1997
          %v3292 = vunpack.c.l.b16 %v1998
          %v3293 = vunpack.c.h.b16 %v1998
          %v3294 = vunpack.c.l.b16 %v1999
          %v3295 = vunpack.c.h.b16 %v1999
          %v3296 = vunpack.c.l.b16 %v2000
          %v3297 = vunpack.c.h.b16 %v2000
          %v3298 = vunpack.c.l.b16 %v2001
          %v3299 = vunpack.c.h.b16 %v2001
          %v3300 = vunpack.c.l.b16 %v2002
          %v3301 = vunpack.c.h.b16 %v2002
          %v3302 = vunpack.c.l.b16 %v2003
          %v3303 = vunpack.c.h.b16 %v2003
          %v3304 = vunpack.c.l.b16 %v2004
          %v3305 = vunpack.c.h.b16 %v2004
          %v3306 = vunpack.c.l.b16 %v2005
          %v3307 = vunpack.c.h.b16 %v2005
          %v3308 = vunpack.c.l.b16 %v2006
          %v3309 = vunpack.c.h.b16 %v2006
          %v3310 = vunpack.c.l.b16 %v2007
          %v3311 = vunpack.c.h.b16 %v2007
          %v3312 = vunpack.c.l.b16 %v2008
          %v3313 = vunpack.c.h.b16 %v2008
          %v3314 = vunpack.c.l.b16 %v2009
          %v3315 = vunpack.c.h.b16 %v2009
          %v3316 = vunpack.c.l.b16 %v2010
          %v3317 = vunpack.c.h.b16 %v2010
          %v3318 = vunpack.c.l.b16 %v2011
          %v3319 = vunpack.c.h.b16 %v2011
          %v3320 = vunpack.c.l.b16 %v2012
          %v3321 = vunpack.c.h.b16 %v2012
          %v3322 = vunpack.c.l.b16 %v2013
          %v3323 = vunpack.c.h.b16 %v2013
          %v3324 = vunpack.c.l.b16 %v2014
          %v3325 = vunpack.c.h.b16 %v2014
          %v3326 = vunpack.c.l.b16 %v2015
          %v3327 = vunpack.c.h.b16 %v2015
          %v3328 = vunpack.c.l.b16 %v2016
          %v3329 = vunpack.c.h.b16 %v2016
          %v3330 = vunpack.c.l.b16 %v2017
          %v3331 = vunpack.c.h.b16 %v2017
          %v3332 = vunpack.c.l.b16 %v2018
          %v3333 = vunpack.c.h.b16 %v2018
          %v3334 = vunpack.c.l.b16 %v2019
          %v3335 = vunpack.c.h.b16 %v2019
          %v3336 = vunpack.c.l.b16 %v2020
          %v3337 = vunpack.c.h.b16 %v2020
          %v3338 = vunpack.c.l.b16 %v2021
          %v3339 = vunpack.c.h.b16 %v2021
          %v3340 = vunpack.c.l.b16 %v2022
          %v3341 = vunpack.c.h.b16 %v2022
          %v3342 = vunpack.c.l.b16 %v2023
          %v3343 = vunpack.c.h.b16 %v2023
          %v3344 = vunpack.c.l.b16 %v2024
          %v3345 = vunpack.c.h.b16 %v2024
          %v3346 = vunpack.c.l.b16 %v2025
          %v3347 = vunpack.c.h.b16 %v2025
          %v3348 = vunpack.c.l.b16 %v2026
          %v3349 = vunpack.c.h.b16 %v2026
          %v3350 = vunpack.c.l.b16 %v2027
          %v3351 = vunpack.c.h.b16 %v2027
          %v3352 = vunpack.c.l.b16 %v2028
          %v3353 = vunpack.c.h.b16 %v2028
          %v3354 = vunpack.c.l.b16 %v2029
          %v3355 = vunpack.c.h.b16 %v2029
          %v3356 = vunpack.c.l.b16 %v2030
          %v3357 = vunpack.c.h.b16 %v2030
          %v3358 = vunpack.c.l.b16 %v2031
          %v3359 = vunpack.c.h.b16 %v2031
          %v3360 = vunpack.c.l.b16 %v2032
          %v3361 = vunpack.c.h.b16 %v2032
          %v3362 = vunpack.c.l.b16 %v2033
          %v3363 = vunpack.c.h.b16 %v2033
          %v3364 = vunpack.c.l.b16 %v2034
          %v3365 = vunpack.c.h.b16 %v2034
          %v3366 = vunpack.c.l.b16 %v2035
          %v3367 = vunpack.c.h.b16 %v2035
          %v3368 = vunpack.c.l.b16 %v2036
          %v3369 = vunpack.c.h.b16 %v2036
          %v3370 = vunpack.c.l.b16 %v2037
          %v3371 = vunpack.c.h.b16 %v2037
          %v3372 = vunpack.c.l.b16 %v2038
          %v3373 = vunpack.c.h.b16 %v2038
          %v3374 = vunpack.c.l.b16 %v2039
          %v3375 = vunpack.c.h.b16 %v2039
          %v3376 = vunpack.c.l.b16 %v2040
          %v3377 = vunpack.c.h.b16 %v2040
          %v3378 = vunpack.c.l.b16 %v2041
          %v3379 = vunpack.c.h.b16 %v2041
          %v3380 = vunpack.c.l.b16 %v2042
          %v3381 = vunpack.c.h.b16 %v2042
          %v3382 = vunpack.c.l.b16 %v2043
          %v3383 = vunpack.c.h.b16 %v2043
          %v3384 = vunpack.c.l.b16 %v2044
          %v3385 = vunpack.c.h.b16 %v2044
          %v3386 = vunpack.c.l.b16 %v2045
          %v3387 = vunpack.c.h.b16 %v2045
          %v3388 = vpack.c.b16 %v3136, %v3132
          %v3389 = vpack.c.b16 %v3137, %v3133
          %v3390 = vpack.c.b16 %v3138, %v3134
          %v3391 = vpack.c.b16 %v3139, %v3135
          %v3392 = vpack.c.b16 %v3144, %v3140
          %v3393 = vpack.c.b16 %v3145, %v3141
          %v3394 = vpack.c.b16 %v3146, %v3142
          %v3395 = vpack.c.b16 %v3147, %v3143
          %v3396 = vpack.c.b16 %v3152, %v3148
          %v3397 = vpack.c.b16 %v3153, %v3149
          %v3398 = vpack.c.b16 %v3154, %v3150
          %v3399 = vpack.c.b16 %v3155, %v3151
          %v3400 = vpack.c.b16 %v3160, %v3156
          %v3401 = vpack.c.b16 %v3161, %v3157
          %v3402 = vpack.c.b16 %v3162, %v3158
          %v3403 = vpack.c.b16 %v3163, %v3159
          %v3404 = vpack.c.b16 %v3168, %v3164
          %v3405 = vpack.c.b16 %v3169, %v3165
          %v3406 = vpack.c.b16 %v3170, %v3166
          %v3407 = vpack.c.b16 %v3171, %v3167
          %v3408 = vpack.c.b16 %v3176, %v3172
          %v3409 = vpack.c.b16 %v3177, %v3173
          %v3410 = vpack.c.b16 %v3178, %v3174
          %v3411 = vpack.c.b16 %v3179, %v3175
          %v3412 = vpack.c.b16 %v3184, %v3180
          %v3413 = vpack.c.b16 %v3185, %v3181
          %v3414 = vpack.c.b16 %v3186, %v3182
          %v3415 = vpack.c.b16 %v3187, %v3183
          %v3416 = vpack.c.b16 %v3192, %v3188
          %v3417 = vpack.c.b16 %v3193, %v3189
          %v3418 = vpack.c.b16 %v3194, %v3190
          %v3419 = vpack.c.b16 %v3195, %v3191
          %v3420 = vpack.c.b16 %v3200, %v3196
          %v3421 = vpack.c.b16 %v3201, %v3197
          %v3422 = vpack.c.b16 %v3202, %v3198
          %v3423 = vpack.c.b16 %v3203, %v3199
          %v3424 = vpack.c.b16 %v3208, %v3204
          %v3425 = vpack.c.b16 %v3209, %v3205
          %v3426 = vpack.c.b16 %v3210, %v3206
          %v3427 = vpack.c.b16 %v3211, %v3207
          %v3428 = vpack.c.b16 %v3216, %v3212
          %v3429 = vpack.c.b16 %v3217, %v3213
          %v3430 = vpack.c.b16 %v3218, %v3214
          %v3431 = vpack.c.b16 %v3219, %v3215
          %v3432 = vpack.c.b16 %v3224, %v3220
          %v3433 = vpack.c.b16 %v3225, %v3221
          %v3434 = vpack.c.b16 %v3226, %v3222
          %v3435 = vpack.c.b16 %v3227, %v3223
          %v3436 = vpack.c.b16 %v3232, %v3228
          %v3437 = vpack.c.b16 %v3233, %v3229
          %v3438 = vpack.c.b16 %v3234, %v3230
          %v3439 = vpack.c.b16 %v3235, %v3231
          %v3440 = vpack.c.b16 %v3240, %v3236
          %v3441 = vpack.c.b16 %v3241, %v3237
          %v3442 = vpack.c.b16 %v3242, %v3238
          %v3443 = vpack.c.b16 %v3243, %v3239
          %v3444 = vpack.c.b16 %v3248, %v3244
          %v3445 = vpack.c.b16 %v3249, %v3245
          %v3446 = vpack.c.b16 %v3250, %v3246
          %v3447 = vpack.c.b16 %v3251, %v3247
          %v3448 = vpack.c.b16 %v3256, %v3252
          %v3449 = vpack.c.b16 %v3257, %v3253
          %v3450 = vpack.c.b16 %v3258, %v3254
          %v3451 = vpack.c.b16 %v3259, %v3255
          %v3452 = vpack.c.b16 %v3264, %v3260
          %v3453 = vpack.c.b16 %v3265, %v3261
          %v3454 = vpack.c.b16 %v3266, %v3262
          %v3455 = vpack.c.b16 %v3267, %v3263
          %v3456 = vpack.c.b16 %v3272, %v3268
          %v3457 = vpack.c.b16 %v3273, %v3269
          %v3458 = vpack.c.b16 %v3274, %v3270
          %v3459 = vpack.c.b16 %v3275, %v3271
          %v3460 = vpack.c.b16 %v3280, %v3276
          %v3461 = vpack.c.b16 %v3281, %v3277
          %v3462 = vpack.c.b16 %v3282, %v3278
          %v3463 = vpack.c.b16 %v3283, %v3279
          %v3464 = vpack.c.b16 %v3288, %v3284
          %v3465 = vpack.c.b16 %v3289, %v3285
          %v3466 = vpack.c.b16 %v3290, %v3286
          %v3467 = vpack.c.b16 %v3291, %v3287
          %v3468 = vpack.c.b16 %v3296, %v3292
          %v3469 = vpack.c.b16 %v3297, %v3293
          %v3470 = vpack.c.b16 %v3298, %v3294
          %v3471 = vpack.c.b16 %v3299, %v3295
          %v3472 = vpack.c.b16 %v3304, %v3300
          %v3473 = vpack.c.b16 %v3305, %v3301
          %v3474 = vpack.c.b16 %v3306, %v3302
          %v3475 = vpack.c.b16 %v3307, %v3303
          %v3476 = vpack.c.b16 %v3312, %v3308
          %v3477 = vpack.c.b16 %v3313, %v3309
          %v3478 = vpack.c.b16 %v3314, %v3310
          %v3479 = vpack.c.b16 %v3315, %v3311
          %v3480 = vpack.c.b16 %v3320, %v3316
          %v3481 = vpack.c.b16 %v3321, %v3317
          %v3482 = vpack.c.b16 %v3322, %v3318
          %v3483 = vpack.c.b16 %v3323, %v3319
          %v3484 = vpack.c.b16 %v3328, %v3324
          %v3485 = vpack.c.b16 %v3329, %v3325
          %v3486 = vpack.c.b16 %v3330, %v3326
          %v3487 = vpack.c.b16 %v3331, %v3327
          %v3488 = vpack.c.b16 %v3336, %v3332
          %v3489 = vpack.c.b16 %v3337, %v3333
          %v3490 = vpack.c.b16 %v3338, %v3334
          %v3491 = vpack.c.b16 %v3339, %v3335
          %v3492 = vpack.c.b16 %v3344, %v3340
          %v3493 = vpack.c.b16 %v3345, %v3341
          %v3494 = vpack.c.b16 %v3346, %v3342
          %v3495 = vpack.c.b16 %v3347, %v3343
          %v3496 = vpack.c.b16 %v3352, %v3348
          %v3497 = vpack.c.b16 %v3353, %v3349
          %v3498 = vpack.c.b16 %v3354, %v3350
          %v3499 = vpack.c.b16 %v3355, %v3351
          %v3500 = vpack.c.b16 %v3360, %v3356
          %v3501 = vpack.c.b16 %v3361, %v3357
          %v3502 = vpack.c.b16 %v3362, %v3358
          %v3503 = vpack.c.b16 %v3363, %v3359
          %v3504 = vpack.c.b16 %v3368, %v3364
          %v3505 = vpack.c.b16 %v3369, %v3365
          %v3506 = vpack.c.b16 %v3370, %v3366
          %v3507 = vpack.c.b16 %v3371, %v3367
          %v3508 = vpack.c.b16 %v3376, %v3372
          %v3509 = vpack.c.b16 %v3377, %v3373
          %v3510 = vpack.c.b16 %v3378, %v3374
          %v3511 = vpack.c.b16 %v3379, %v3375
          %v3512 = vpack.c.b16 %v3384, %v3380
          %v3513 = vpack.c.b16 %v3385, %v3381
          %v3514 = vpack.c.b16 %v3386, %v3382
          %v3515 = vpack.c.b16 %v3387, %v3383
          %3644 = vmatprep.subr.bf16.mxu0 %v3417
          %3645 = vmatpush1.bf16.msra.mxu0 %v3416
          %3646 = vmatprep.subr.bf16.mxu0 %v3413
          %3647 = vmatpush1.bf16.msra.mxu0 %v3412
          %3648 = vmatprep.subr.bf16.mxu0 %v3409
          %3649 = vmatpush1.bf16.msra.mxu0 %v3408
          %3650 = vmatprep.subr.bf16.mxu0 %v3405
          %3651 = vmatpush1.bf16.msra.mxu0 %v3404
          %3652 = vmatprep.subr.bf16.mxu0 %v3401
          %3653 = vmatpush1.bf16.msra.mxu0 %v3400
          %3654 = vmatprep.subr.bf16.mxu0 %v3397
          %3655 = vmatpush1.bf16.msra.mxu0 %v3396
          %3656 = vmatprep.subr.bf16.mxu0 %v3393
          %3657 = vmatpush1.bf16.msra.mxu0 %v3392
          %3658 = vmatprep.subr.bf16.mxu0 %v3389
          %3659 = vmatpush1.bf16.msra.mxu0 %v3388
          %3660 = vmatprep.subr.bf16.mxu0 %v3449
          %3661 = vmatpush2.bf16.msra.mxu0 %v3448
          %3662 = vmatprep.subr.bf16.mxu0 %v3445
          %3663 = vmatpush2.bf16.msra.mxu0 %v3444
          %3664 = vmatprep.subr.bf16.mxu0 %v3441
          %3665 = vmatpush2.bf16.msra.mxu0 %v3440
          %3666 = vmatprep.subr.bf16.mxu0 %v3437
          %3667 = vmatpush2.bf16.msra.mxu0 %v3436
          %3668 = vmatprep.subr.bf16.mxu0 %v3433
          %3669 = vmatpush2.bf16.msra.mxu0 %v3432
          %3670 = vmatprep.subr.bf16.mxu0 %v3429
          %3671 = vmatpush2.bf16.msra.mxu0 %v3428
          %3672 = vmatprep.subr.bf16.mxu0 %v3425
          %3673 = vmatpush2.bf16.msra.mxu0 %v3424
          %3674 = vmatprep.subr.bf16.mxu0 %v3421
          %3675 = vmatpush2.bf16.msra.mxu0 %v3420
          %3676 = vmatprep.mubr.bf16.mxu0 %v1915
          %3677 = vmatmul.mubr.bf16.gmra.mxu0 %v1914
          %v3678 = vpop.f32.mrf.mxu0
          %v3679 = vadd.f32 %v2916, %v3678
          %v3680 = vpop.f32.mrf.mxu0
          %v3681 = vadd.f32 %v2918, %v3680
          %v3682 = vpop.f32.mrf.mxu0
          %v3683 = vpop.f32.mrf.mxu0
          %3684 = vdwg.mxu0
          %3685 = vmatprep.subr.bf16.mxu0 %v3481
          %3686 = vmatpush1.bf16.msra.mxu0 %v3480
          %3687 = vmatprep.subr.bf16.mxu0 %v3477
          %3688 = vmatpush1.bf16.msra.mxu0 %v3476
          %3689 = vmatprep.subr.bf16.mxu0 %v3473
          %3690 = vmatpush1.bf16.msra.mxu0 %v3472
          %3691 = vmatprep.subr.bf16.mxu0 %v3469
          %3692 = vmatpush1.bf16.msra.mxu0 %v3468
          %3693 = vmatprep.subr.bf16.mxu0 %v3465
          %3694 = vmatpush1.bf16.msra.mxu0 %v3464
          %3695 = vmatprep.subr.bf16.mxu0 %v3461
          %3696 = vmatpush1.bf16.msra.mxu0 %v3460
          %3697 = vmatprep.subr.bf16.mxu0 %v3457
          %3698 = vmatpush1.bf16.msra.mxu0 %v3456
          %3699 = vmatprep.subr.bf16.mxu0 %v3453
          %3700 = vmatpush1.bf16.msra.mxu0 %v3452
          %3701 = vmatprep.subr.bf16.mxu0 %v3513
          %3702 = vmatpush2.bf16.msra.mxu0 %v3512
          %3703 = vmatprep.subr.bf16.mxu0 %v3509
          %3704 = vmatpush2.bf16.msra.mxu0 %v3508
          %3705 = vmatprep.subr.bf16.mxu0 %v3505
          %3706 = vmatpush2.bf16.msra.mxu0 %v3504
          %3707 = vmatprep.subr.bf16.mxu0 %v3501
          %3708 = vmatpush2.bf16.msra.mxu0 %v3500
          %3709 = vmatprep.subr.bf16.mxu0 %v3497
          %3710 = vmatpush2.bf16.msra.mxu0 %v3496
          %3711 = vmatprep.subr.bf16.mxu0 %v3493
          %3712 = vmatpush2.bf16.msra.mxu0 %v3492
          %3713 = vmatprep.subr.bf16.mxu0 %v3489
          %3714 = vmatpush2.bf16.msra.mxu0 %v3488
          %3715 = vmatprep.subr.bf16.mxu0 %v3485
          %3716 = vmatpush2.bf16.msra.mxu0 %v3484
          %3717 = vmatprep.mubr.bf16.mxu0 %v1917
          %3718 = vmatmul.mubr.bf16.gmra.mxu0 %v1916
          %v3719 = vpop.f32.mrf.mxu0
          %v3720 = vadd.f32 %v3679, %v3719
          %v3721 = vpop.f32.mrf.mxu0
          %v3722 = vadd.f32 %v3681, %v3721
          %v3723 = vpop.f32.mrf.mxu0
          %v3724 = vpop.f32.mrf.mxu0
          %3725 = vdwg.mxu0
          %3726 = vmatprep.subr.bf16.mxu0 %v3419
          %3727 = vmatpush1.bf16.msra.mxu0 %v3418
          %3728 = vmatprep.subr.bf16.mxu0 %v3415
          %3729 = vmatpush1.bf16.msra.mxu0 %v3414
          %3730 = vmatprep.subr.bf16.mxu0 %v3411
          %3731 = vmatpush1.bf16.msra.mxu0 %v3410
          %3732 = vmatprep.subr.bf16.mxu0 %v3407
          %3733 = vmatpush1.bf16.msra.mxu0 %v3406
          %3734 = vmatprep.subr.bf16.mxu0 %v3403
          %3735 = vmatpush1.bf16.msra.mxu0 %v3402
          %3736 = vmatprep.subr.bf16.mxu0 %v3399
          %3737 = vmatpush1.bf16.msra.mxu0 %v3398
          %3738 = vmatprep.subr.bf16.mxu0 %v3395
          %3739 = vmatpush1.bf16.msra.mxu0 %v3394
          %3740 = vmatprep.subr.bf16.mxu0 %v3391
          %3741 = vmatpush1.bf16.msra.mxu0 %v3390
          %3742 = vmatprep.subr.bf16.mxu0 %v3451
          %3743 = vmatpush2.bf16.msra.mxu0 %v3450
          %3744 = vmatprep.subr.bf16.mxu0 %v3447
          %3745 = vmatpush2.bf16.msra.mxu0 %v3446
          %3746 = vmatprep.subr.bf16.mxu0 %v3443
          %3747 = vmatpush2.bf16.msra.mxu0 %v3442
          %3748 = vmatprep.subr.bf16.mxu0 %v3439
          %3749 = vmatpush2.bf16.msra.mxu0 %v3438
          %3750 = vmatprep.subr.bf16.mxu0 %v3435
          %3751 = vmatpush2.bf16.msra.mxu0 %v3434
          %3752 = vmatprep.subr.bf16.mxu0 %v3431
          %3753 = vmatpush2.bf16.msra.mxu0 %v3430
          %3754 = vmatprep.subr.bf16.mxu0 %v3427
          %3755 = vmatpush2.bf16.msra.mxu0 %v3426
          %3756 = vmatprep.subr.bf16.mxu0 %v3423
          %3757 = vmatpush2.bf16.msra.mxu0 %v3422
          %3758 = vmatprep.mubr.bf16.mxu0 %v1915
          %3759 = vmatmul.mubr.bf16.gmra.mxu0 %v1914
          %v3760 = vpop.f32.mrf.mxu0
          %v3761 = vadd.f32 %v2998, %v3760
          %v3762 = vpop.f32.mrf.mxu0
          %v3763 = vadd.f32 %v3000, %v3762
          %v3764 = vpop.f32.mrf.mxu0
          %v3765 = vpop.f32.mrf.mxu0
          %3766 = vdwg.mxu0
          %3767 = vmatprep.subr.bf16.mxu0 %v3483
          %3768 = vmatpush1.bf16.msra.mxu0 %v3482
          %3769 = vmatprep.subr.bf16.mxu0 %v3479
          %3770 = vmatpush1.bf16.msra.mxu0 %v3478
          %3771 = vmatprep.subr.bf16.mxu0 %v3475
          %3772 = vmatpush1.bf16.msra.mxu0 %v3474
          %3773 = vmatprep.subr.bf16.mxu0 %v3471
          %3774 = vmatpush1.bf16.msra.mxu0 %v3470
          %3775 = vmatprep.subr.bf16.mxu0 %v3467
          %3776 = vmatpush1.bf16.msra.mxu0 %v3466
          %3777 = vmatprep.subr.bf16.mxu0 %v3463
          %3778 = vmatpush1.bf16.msra.mxu0 %v3462
          %3779 = vmatprep.subr.bf16.mxu0 %v3459
          %3780 = vmatpush1.bf16.msra.mxu0 %v3458
          %3781 = vmatprep.subr.bf16.mxu0 %v3455
          %3782 = vmatpush1.bf16.msra.mxu0 %v3454
          %3783 = vmatprep.subr.bf16.mxu0 %v3515
          %3784 = vmatpush2.bf16.msra.mxu0 %v3514
          %3785 = vmatprep.subr.bf16.mxu0 %v3511
          %3786 = vmatpush2.bf16.msra.mxu0 %v3510
          %3787 = vmatprep.subr.bf16.mxu0 %v3507
          %3788 = vmatpush2.bf16.msra.mxu0 %v3506
          %3789 = vmatprep.subr.bf16.mxu0 %v3503
          %3790 = vmatpush2.bf16.msra.mxu0 %v3502
          %3791 = vmatprep.subr.bf16.mxu0 %v3499
          %3792 = vmatpush2.bf16.msra.mxu0 %v3498
          %3793 = vmatprep.subr.bf16.mxu0 %v3495
          %3794 = vmatpush2.bf16.msra.mxu0 %v3494
          %3795 = vmatprep.subr.bf16.mxu0 %v3491
          %3796 = vmatpush2.bf16.msra.mxu0 %v3490
          %3797 = vmatprep.subr.bf16.mxu0 %v3487
          %3798 = vmatpush2.bf16.msra.mxu0 %v3486
          %3799 = vmatprep.mubr.bf16.mxu0 %v1917
          %3800 = vmatmul.mubr.bf16.gmra.mxu0 %v1916
          %v3801 = vpop.f32.mrf.mxu0
          %v3802 = vadd.f32 %v3761, %v3801
          %v3803 = vpop.f32.mrf.mxu0
          %v3804 = vadd.f32 %v3763, %v3803
          %v3805 = vpop.f32.mrf.mxu0
          %v3806 = vpop.f32.mrf.mxu0
          %3807 = vdwg.mxu0
          %v3808 = vld [vmem:[%s8] sm:$0xf]
          %v3810 = vlaneseq
          %v3811 = vshrl.u32 %v3810, 7
          %v3812 = vsub.s32 0, %v3811
          %v3813 = vrot.slane %v3808, %v3812
          %v3814 = vlaneseq
          %v3815 = vshrl.u32 %v3814, 7
          %v3816 = vsub.s32 1, %v3815
          %v3817 = vrot.slane %v3808, %v3816
          %v3818 = vlaneseq
          %v3819 = vshrl.u32 %v3818, 7
          %v3820 = vsub.s32 2, %v3819
          %v3821 = vrot.slane %v3808, %v3820
          %v3822 = vlaneseq
          %v3823 = vshrl.u32 %v3822, 7
          %v3824 = vsub.s32 3, %v3823
          %v3825 = vrot.slane %v3808, %v3824
          %v3830 = vadd.f32 %v3720, %v3813
          %v3831 = vadd.f32 %v3722, %v3817
          %v3832 = vadd.f32 %v3802, %v3821
          %v3833 = vadd.f32 %v3804, %v3825
          %v3834 = vtanh.pop %v3830
          %v3835 = vtanh.pop %v3831
          %v3836 = vtanh.pop %v3832
          %v3837 = vtanh.pop %v3833
          %vm3838 = vcmask 1041408
          %v3839 = vsel %vm3838, %v3834, 0.0
          %v3840 = vsel %vm3838, %v3835, 0.0
          %v3841 = vadd.f32 %v3839, %v3840
          %v3842 = vsel %vm3838, %v3836, 0.0
          %v3843 = vadd.f32 %v3841, %v3842
          %v3844 = vsel %vm3838, %v3837, 0.0
          %v3845 = vadd.f32 %v3843, %v3844
          %3846 = vadd.xlane.f32.xlu0 %v3845
          %v3847 = vpop.xlane.xlu0 %3846
          %v3848 = vrcp.pop 512.0
          %v3849 = vmul.f32 %v3847, %v3848
          %v3850 = vsub.f32 %v3834, %v3849
          %v3851 = vsub.f32 %v3835, %v3849
          %v3852 = vsub.f32 %v3836, %v3849
          %v3853 = vsub.f32 %v3837, %v3849
          %v3854 = vmul.f32 %v3850, %v3850
          %v3855 = vmul.f32 %v3851, %v3851
          %v3856 = vmul.f32 %v3852, %v3852
          %v3857 = vmul.f32 %v3853, %v3853
          %v3858 = vsel %vm3838, %v3854, 0.0
          %v3859 = vsel %vm3838, %v3855, 0.0
          %v3860 = vadd.f32 %v3858, %v3859
          %v3861 = vsel %vm3838, %v3856, 0.0
          %v3862 = vadd.f32 %v3860, %v3861
          %v3863 = vsel %vm3838, %v3857, 0.0
          %v3864 = vadd.f32 %v3862, %v3863
          %3865 = vadd.xlane.f32.xlu0 %v3864
          %v3866 = vpop.xlane.xlu0 %3865
          %v3867 = vmul.f32 %v3866, %v3848
          %v3868 = vadd.f32 %v3867, 1e-05
          %v3869 = vrsqrt.pop %v3868
          %v3870 = vmul.f32 %v3850, %v3869
          %v3871 = vmul.f32 %v3851, %v3869
          %v3872 = vmul.f32 %v3852, %v3869
          %v3873 = vmul.f32 %v3853, %v3869
          %v3874 = vld [vmem:[%s9] sm:$0xf]
          %v3876 = vlaneseq
          %v3877 = vshrl.u32 %v3876, 7
          %v3878 = vsub.s32 0, %v3877
          %v3879 = vrot.slane %v3874, %v3878
          %v3880 = vlaneseq
          %v3881 = vshrl.u32 %v3880, 7
          %v3882 = vsub.s32 1, %v3881
          %v3883 = vrot.slane %v3874, %v3882
          %v3884 = vlaneseq
          %v3885 = vshrl.u32 %v3884, 7
          %v3886 = vsub.s32 2, %v3885
          %v3887 = vrot.slane %v3874, %v3886
          %v3888 = vlaneseq
          %v3889 = vshrl.u32 %v3888, 7
          %v3890 = vsub.s32 3, %v3889
          %v3891 = vrot.slane %v3874, %v3890
          %v3896 = vmul.f32 %v3870, %v3879
          %v3897 = vmul.f32 %v3871, %v3883
          %v3898 = vmul.f32 %v3872, %v3887
          %v3899 = vmul.f32 %v3873, %v3891
          %v3900 = vld [vmem:[%s10] sm:$0xf]
          %v3902 = vlaneseq
          %v3903 = vshrl.u32 %v3902, 7
          %v3904 = vsub.s32 0, %v3903
          %v3905 = vrot.slane %v3900, %v3904
          %v3906 = vlaneseq
          %v3907 = vshrl.u32 %v3906, 7
          %v3908 = vsub.s32 1, %v3907
          %v3909 = vrot.slane %v3900, %v3908
          %v3910 = vlaneseq
          %v3911 = vshrl.u32 %v3910, 7
          %v3912 = vsub.s32 2, %v3911
          %v3913 = vrot.slane %v3900, %v3912
          %v3914 = vlaneseq
          %v3915 = vshrl.u32 %v3914, 7
          %v3916 = vsub.s32 3, %v3915
          %v3917 = vrot.slane %v3900, %v3916
          %v3922 = vadd.f32 %v3896, %v3905
          %v3923 = vadd.f32 %v3897, %v3909
          %v3924 = vadd.f32 %v3898, %v3913
          %v3925 = vadd.f32 %v3899, %v3917
          %v3926 = vpack.c.bf16 %v3922, %v3922
          %v3927 = vpack.c.bf16 %v3923, %v3923
          %v3928 = vpack.c.bf16 %v3924, %v3924
          %v3929 = vpack.c.bf16 %v3925, %v3925
          %v3930 = vld [vmem:[%s11] sm:$0xf]
          %v3931 = vld [vmem:[%s11 + $0x4] sm:$0xf]
          %v3932 = vld [vmem:[%s11 + $0x8] sm:$0xf]
          %v3933 = vld [vmem:[%s11 + $0xc] sm:$0xf]
          %v3934 = vld [vmem:[%s11 + $0x10] sm:$0xf]
          %v3935 = vld [vmem:[%s11 + $0x14] sm:$0xf]
          %v3936 = vld [vmem:[%s11 + $0x18] sm:$0xf]
          %v3937 = vld [vmem:[%s11 + $0x1c] sm:$0xf]
          %v3938 = vld [vmem:[%s11 + $0x20] sm:$0xf]
          %v3939 = vld [vmem:[%s11 + $0x24] sm:$0xf]
          %v3940 = vld [vmem:[%s11 + $0x28] sm:$0xf]
          %v3941 = vld [vmem:[%s11 + $0x2c] sm:$0xf]
          %v3942 = vld [vmem:[%s11 + $0x30] sm:$0xf]
          %v3943 = vld [vmem:[%s11 + $0x34] sm:$0xf]
          %v3944 = vld [vmem:[%s11 + $0x38] sm:$0xf]
          %v3945 = vld [vmem:[%s11 + $0x3c] sm:$0xf]
          %v3946 = vld [vmem:[%s11 + $0x40] sm:$0xf]
          %v3947 = vld [vmem:[%s11 + $0x44] sm:$0xf]
          %v3948 = vld [vmem:[%s11 + $0x48] sm:$0xf]
          %v3949 = vld [vmem:[%s11 + $0x4c] sm:$0xf]
          %v3950 = vld [vmem:[%s11 + $0x50] sm:$0xf]
          %v3951 = vld [vmem:[%s11 + $0x54] sm:$0xf]
          %v3952 = vld [vmem:[%s11 + $0x58] sm:$0xf]
          %v3953 = vld [vmem:[%s11 + $0x5c] sm:$0xf]
          %v3954 = vld [vmem:[%s11 + $0x60] sm:$0xf]
          %v3955 = vld [vmem:[%s11 + $0x64] sm:$0xf]
          %v3956 = vld [vmem:[%s11 + $0x68] sm:$0xf]
          %v3957 = vld [vmem:[%s11 + $0x6c] sm:$0xf]
          %v3958 = vld [vmem:[%s11 + $0x70] sm:$0xf]
          %v3959 = vld [vmem:[%s11 + $0x74] sm:$0xf]
          %v3960 = vld [vmem:[%s11 + $0x78] sm:$0xf]
          %v3961 = vld [vmem:[%s11 + $0x7c] sm:$0xf]
          %v3962 = vld [vmem:[%s11 + $0x80] sm:$0xf]
          %v3963 = vld [vmem:[%s11 + $0x84] sm:$0xf]
          %v3964 = vld [vmem:[%s11 + $0x88] sm:$0xf]
          %v3965 = vld [vmem:[%s11 + $0x8c] sm:$0xf]
          %v3966 = vld [vmem:[%s11 + $0x90] sm:$0xf]
          %v3967 = vld [vmem:[%s11 + $0x94] sm:$0xf]
          %v3968 = vld [vmem:[%s11 + $0x98] sm:$0xf]
          %v3969 = vld [vmem:[%s11 + $0x9c] sm:$0xf]
          %v3970 = vld [vmem:[%s11 + $0xa0] sm:$0xf]
          %v3971 = vld [vmem:[%s11 + $0xa4] sm:$0xf]
          %v3972 = vld [vmem:[%s11 + $0xa8] sm:$0xf]
          %v3973 = vld [vmem:[%s11 + $0xac] sm:$0xf]
          %v3974 = vld [vmem:[%s11 + $0xb0] sm:$0xf]
          %v3975 = vld [vmem:[%s11 + $0xb4] sm:$0xf]
          %v3976 = vld [vmem:[%s11 + $0xb8] sm:$0xf]
          %v3977 = vld [vmem:[%s11 + $0xbc] sm:$0xf]
          %v3978 = vld [vmem:[%s11 + $0xc0] sm:$0xf]
          %v3979 = vld [vmem:[%s11 + $0xc4] sm:$0xf]
          %v3980 = vld [vmem:[%s11 + $0xc8] sm:$0xf]
          %v3981 = vld [vmem:[%s11 + $0xcc] sm:$0xf]
          %v3982 = vld [vmem:[%s11 + $0xd0] sm:$0xf]
          %v3983 = vld [vmem:[%s11 + $0xd4] sm:$0xf]
          %v3984 = vld [vmem:[%s11 + $0xd8] sm:$0xf]
          %v3985 = vld [vmem:[%s11 + $0xdc] sm:$0xf]
          %v3986 = vld [vmem:[%s11 + $0xe0] sm:$0xf]
          %v3987 = vld [vmem:[%s11 + $0xe4] sm:$0xf]
          %v3988 = vld [vmem:[%s11 + $0xe8] sm:$0xf]
          %v3989 = vld [vmem:[%s11 + $0xec] sm:$0xf]
          %v3990 = vld [vmem:[%s11 + $0xf0] sm:$0xf]
          %v3991 = vld [vmem:[%s11 + $0xf4] sm:$0xf]
          %v3992 = vld [vmem:[%s11 + $0xf8] sm:$0xf]
          %v3993 = vld [vmem:[%s11 + $0xfc] sm:$0xf]
          %v3994 = vld [vmem:[%s12] sm:$0x1]
          %v3996 = vlaneseq
          %v3997 = vshrl.u32 %v3996, 7
          %v3998 = vsub.s32 0, %v3997
          %v3999 = vrot.slane %v3994, %v3998
          %v4065 = vunpack.c.l.b16 %v3930
          %v4066 = vunpack.c.l.b16 %v3931
          %v4067 = vunpack.c.l.b16 %v3932
          %v4068 = vunpack.c.l.b16 %v3933
          %v4069 = vunpack.c.l.b16 %v3934
          %v4070 = vunpack.c.l.b16 %v3935
          %v4071 = vunpack.c.l.b16 %v3936
          %v4072 = vunpack.c.l.b16 %v3937
          %v4073 = vunpack.c.l.b16 %v3938
          %v4074 = vunpack.c.l.b16 %v3939
          %v4075 = vunpack.c.l.b16 %v3940
          %v4076 = vunpack.c.l.b16 %v3941
          %v4077 = vunpack.c.l.b16 %v3942
          %v4078 = vunpack.c.l.b16 %v3943
          %v4079 = vunpack.c.l.b16 %v3944
          %v4080 = vunpack.c.l.b16 %v3945
          %v4081 = vunpack.c.l.b16 %v3946
          %v4082 = vunpack.c.l.b16 %v3947
          %v4083 = vunpack.c.l.b16 %v3948
          %v4084 = vunpack.c.l.b16 %v3949
          %v4085 = vunpack.c.l.b16 %v3950
          %v4086 = vunpack.c.l.b16 %v3951
          %v4087 = vunpack.c.l.b16 %v3952
          %v4088 = vunpack.c.l.b16 %v3953
          %v4089 = vunpack.c.l.b16 %v3954
          %v4090 = vunpack.c.l.b16 %v3955
          %v4091 = vunpack.c.l.b16 %v3956
          %v4092 = vunpack.c.l.b16 %v3957
          %v4093 = vunpack.c.l.b16 %v3958
          %v4094 = vunpack.c.l.b16 %v3959
          %v4095 = vunpack.c.l.b16 %v3960
          %v4096 = vunpack.c.l.b16 %v3961
          %v4097 = vunpack.c.l.b16 %v3962
          %v4098 = vunpack.c.l.b16 %v3963
          %v4099 = vunpack.c.l.b16 %v3964
          %v4100 = vunpack.c.l.b16 %v3965
          %v4101 = vunpack.c.l.b16 %v3966
          %v4102 = vunpack.c.l.b16 %v3967
          %v4103 = vunpack.c.l.b16 %v3968
          %v4104 = vunpack.c.l.b16 %v3969
          %v4105 = vunpack.c.l.b16 %v3970
          %v4106 = vunpack.c.l.b16 %v3971
          %v4107 = vunpack.c.l.b16 %v3972
          %v4108 = vunpack.c.l.b16 %v3973
          %v4109 = vunpack.c.l.b16 %v3974
          %v4110 = vunpack.c.l.b16 %v3975
          %v4111 = vunpack.c.l.b16 %v3976
          %v4112 = vunpack.c.l.b16 %v3977
          %v4113 = vunpack.c.l.b16 %v3978
          %v4114 = vunpack.c.l.b16 %v3979
          %v4115 = vunpack.c.l.b16 %v3980
          %v4116 = vunpack.c.l.b16 %v3981
          %v4117 = vunpack.c.l.b16 %v3982
          %v4118 = vunpack.c.l.b16 %v3983
          %v4119 = vunpack.c.l.b16 %v3984
          %v4120 = vunpack.c.l.b16 %v3985
          %v4121 = vunpack.c.l.b16 %v3986
          %v4122 = vunpack.c.l.b16 %v3987
          %v4123 = vunpack.c.l.b16 %v3988
          %v4124 = vunpack.c.l.b16 %v3989
          %v4125 = vunpack.c.l.b16 %v3990
          %v4126 = vunpack.c.l.b16 %v3991
          %v4127 = vunpack.c.l.b16 %v3992
          %v4128 = vunpack.c.l.b16 %v3993
          %v4129 = vpack.c.b16 %v4066, %v4065
          %v4130 = vpack.c.b16 %v4068, %v4067
          %v4131 = vpack.c.b16 %v4070, %v4069
          %v4132 = vpack.c.b16 %v4072, %v4071
          %v4133 = vpack.c.b16 %v4074, %v4073
          %v4134 = vpack.c.b16 %v4076, %v4075
          %v4135 = vpack.c.b16 %v4078, %v4077
          %v4136 = vpack.c.b16 %v4080, %v4079
          %v4137 = vpack.c.b16 %v4082, %v4081
          %v4138 = vpack.c.b16 %v4084, %v4083
          %v4139 = vpack.c.b16 %v4086, %v4085
          %v4140 = vpack.c.b16 %v4088, %v4087
          %v4141 = vpack.c.b16 %v4090, %v4089
          %v4142 = vpack.c.b16 %v4092, %v4091
          %v4143 = vpack.c.b16 %v4094, %v4093
          %v4144 = vpack.c.b16 %v4096, %v4095
          %v4145 = vpack.c.b16 %v4098, %v4097
          %v4146 = vpack.c.b16 %v4100, %v4099
          %v4147 = vpack.c.b16 %v4102, %v4101
          %v4148 = vpack.c.b16 %v4104, %v4103
          %v4149 = vpack.c.b16 %v4106, %v4105
          %v4150 = vpack.c.b16 %v4108, %v4107
          %v4151 = vpack.c.b16 %v4110, %v4109
          %v4152 = vpack.c.b16 %v4112, %v4111
          %v4153 = vpack.c.b16 %v4114, %v4113
          %v4154 = vpack.c.b16 %v4116, %v4115
          %v4155 = vpack.c.b16 %v4118, %v4117
          %v4156 = vpack.c.b16 %v4120, %v4119
          %v4157 = vpack.c.b16 %v4122, %v4121
          %v4158 = vpack.c.b16 %v4124, %v4123
          %v4159 = vpack.c.b16 %v4126, %v4125
          %v4160 = vpack.c.b16 %v4128, %v4127
          %4193 = vmatprep.subr.bf16.mxu0 0
          %4194 = vmatpush1.bf16.msra.mxu0 %v4136
          %4195 = vmatprep.subr.bf16.mxu0 0
          %4196 = vmatpush1.bf16.msra.mxu0 %v4135
          %4197 = vmatprep.subr.bf16.mxu0 0
          %4198 = vmatpush1.bf16.msra.mxu0 %v4134
          %4199 = vmatprep.subr.bf16.mxu0 0
          %4200 = vmatpush1.bf16.msra.mxu0 %v4133
          %4201 = vmatprep.subr.bf16.mxu0 0
          %4202 = vmatpush1.bf16.msra.mxu0 %v4132
          %4203 = vmatprep.subr.bf16.mxu0 0
          %4204 = vmatpush1.bf16.msra.mxu0 %v4131
          %4205 = vmatprep.subr.bf16.mxu0 0
          %4206 = vmatpush1.bf16.msra.mxu0 %v4130
          %4207 = vmatprep.subr.bf16.mxu0 0
          %4208 = vmatpush1.bf16.msra.mxu0 %v4129
          %4209 = vmatprep.subr.bf16.mxu0 0
          %4210 = vmatpush2.bf16.msra.mxu0 %v4144
          %4211 = vmatprep.subr.bf16.mxu0 0
          %4212 = vmatpush2.bf16.msra.mxu0 %v4143
          %4213 = vmatprep.subr.bf16.mxu0 0
          %4214 = vmatpush2.bf16.msra.mxu0 %v4142
          %4215 = vmatprep.subr.bf16.mxu0 0
          %4216 = vmatpush2.bf16.msra.mxu0 %v4141
          %4217 = vmatprep.subr.bf16.mxu0 0
          %4218 = vmatpush2.bf16.msra.mxu0 %v4140
          %4219 = vmatprep.subr.bf16.mxu0 0
          %4220 = vmatpush2.bf16.msra.mxu0 %v4139
          %4221 = vmatprep.subr.bf16.mxu0 0
          %4222 = vmatpush2.bf16.msra.mxu0 %v4138
          %4223 = vmatprep.subr.bf16.mxu0 0
          %4224 = vmatpush2.bf16.msra.mxu0 %v4137
          %4225 = vmatprep.mubr.bf16.mxu0 %v3927
          %4226 = vmatmul.mubr.bf16.gmra.mxu0 %v3926
          %v4227 = vpop.f32.mrf.mxu0
          %v4228 = vadd.f32 %v3999, %v4227
          %v4229 = vpop.f32.mrf.mxu0
          %v4230 = vpop.f32.mrf.mxu0
          %v4231 = vpop.f32.mrf.mxu0
          %4232 = vdwg.mxu0
          %4233 = vmatprep.subr.bf16.mxu0 0
          %4234 = vmatpush1.bf16.msra.mxu0 %v4152
          %4235 = vmatprep.subr.bf16.mxu0 0
          %4236 = vmatpush1.bf16.msra.mxu0 %v4151
          %4237 = vmatprep.subr.bf16.mxu0 0
          %4238 = vmatpush1.bf16.msra.mxu0 %v4150
          %4239 = vmatprep.subr.bf16.mxu0 0
          %4240 = vmatpush1.bf16.msra.mxu0 %v4149
          %4241 = vmatprep.subr.bf16.mxu0 0
          %4242 = vmatpush1.bf16.msra.mxu0 %v4148
          %4243 = vmatprep.subr.bf16.mxu0 0
          %4244 = vmatpush1.bf16.msra.mxu0 %v4147
          %4245 = vmatprep.subr.bf16.mxu0 0
          %4246 = vmatpush1.bf16.msra.mxu0 %v4146
          %4247 = vmatprep.subr.bf16.mxu0 0
          %4248 = vmatpush1.bf16.msra.mxu0 %v4145
          %4249 = vmatprep.subr.bf16.mxu0 0
          %4250 = vmatpush2.bf16.msra.mxu0 %v4160
          %4251 = vmatprep.subr.bf16.mxu0 0
          %4252 = vmatpush2.bf16.msra.mxu0 %v4159
          %4253 = vmatprep.subr.bf16.mxu0 0
          %4254 = vmatpush2.bf16.msra.mxu0 %v4158
          %4255 = vmatprep.subr.bf16.mxu0 0
          %4256 = vmatpush2.bf16.msra.mxu0 %v4157
          %4257 = vmatprep.subr.bf16.mxu0 0
          %4258 = vmatpush2.bf16.msra.mxu0 %v4156
          %4259 = vmatprep.subr.bf16.mxu0 0
          %4260 = vmatpush2.bf16.msra.mxu0 %v4155
          %4261 = vmatprep.subr.bf16.mxu0 0
          %4262 = vmatpush2.bf16.msra.mxu0 %v4154
          %4263 = vmatprep.subr.bf16.mxu0 0
          %4264 = vmatpush2.bf16.msra.mxu0 %v4153
          %4265 = vmatprep.mubr.bf16.mxu0 %v3929
          %4266 = vmatmul.mubr.bf16.gmra.mxu0 %v3928
          %v4267 = vpop.f32.mrf.mxu0
          %v4268 = vadd.f32 %v4228, %v4267
          %v4269 = vpop.f32.mrf.mxu0
          %v4270 = vpop.f32.mrf.mxu0
          %v4271 = vpop.f32.mrf.mxu0
          %4272 = vdwg.mxu0
          %v4273 = vsel %vm3838, %v4268, -inf
          %4274 = vmax.xlane.f32.xlu0 %v4273
          %v4275 = vpop.xlane.xlu0 %4274
          %v4276 = vsub.f32 %v4268, %v4275
          %v4277 = vmul.f32 %v4276, 1.442695
          %v4278 = vpow.pop %v4277
          %v4279 = vsel %vm3838, %v4278, 0.0
          %4280 = vadd.xlane.f32.xlu0 %v4279
          %v4281 = vpop.xlane.xlu0 %4280
          %v4282 = vrcp.pop %v4281
          %v4283 = vmul.f32 %v4278, %v4282
          %4284 = vst [vmem:[#allocation4] sm:$0x3] %v4283
        $region118: #{model1_1_forward.1} parent=105 // pred_fallthru
          _
        // Predicated region
        $region119: #{model1_1_forward.1} parent=105 // pred_check
          %p4285 = pneg %p340
        $region120: #{model1_1_forward.1} parent=105 // pred_check_branch
          %4287 = sbr.rel (%p4285) target = $region122
        $region121: #{model1_1_forward.1} parent=105 // pred_region
          %s4289 = ssub.s32 32, 32
          %4290 = vsyncadd [#allocation5], %s4289
          %s4291 = smul.addr %s29, 32
          %s4292 = scalar_lea.hbm %s13, %s4291
          %s4294 = sshll.u32 [#allocation4], 4
          %s4295 = int_to_ptr.vmem [resolvable:$true] %s4294
          %4297 = dma.vmem_to_hbm [thread:$0]  %s4295, 32, %s4292, [#allocation5]
        $region122: #{model1_1_forward.1} parent=105 // pred_fallthru
          _
        // Predicated region
        $region123: #{model1_1_forward.1} parent=105 // pred_check
          %p4298 = pneg %p340
        $region124: #{model1_1_forward.1} parent=105 // pred_check_branch
          %4300 = sbr.rel (%p4298) target = $region126
        $region125: #{model1_1_forward.1} parent=105 // pred_region
          %4301 = dma.done [#allocation5], 32
        $region126: #{model1_1_forward.1} parent=105 // pred_fallthru
          _
      $region106: #{model1_1_forward.1} parent=5 // pred_fallthru
        _
      %p4302 = scmp.le.s32.totalorder 2, %s20
      // Predicated region
      $region127: #{model1_1_forward.1} parent=5 // pred_check
        %p4303 = pneg %p4302
      $region128: #{model1_1_forward.1} parent=5 // pred_check_branch
        %4305 = sbr.rel (%p4303) target = $region130
      $region129: #{model1_1_forward.1} parent=5 // pred_region
        %s4306 = ssub.s32 %s20, 2
      $region130: #{model1_1_forward.1} parent=5 // pred_fallthru
        _
    $region6: #{model1_1_forward.1} parent=1 // loop_footer
      %s24 = sadd.s32 1, %s20
    $region7: #{model1_1_forward.1} parent=1 // loop_footer_branch
      %19 = sbr.rel target = $region3
    $region8: #{model1_1_forward.1} parent=1 // loop_exit
      _
    %4307 = vsyncpa [#allocation5], 1
    %s4308 = scalar_lea.sflag [#allocation5], 1
    %4309 = vsyncpa %s4308, 1

</llo_original>
